<compile_context>
chip_gen: v7x
topology: tpu7x:2x2x1
jax: 0.10.0
libtpu: 0.0.40
codegen_flags: <defaults>
</compile_context>

<pallas_src>
import jax
import jax.numpy as jnp
from jax.experimental import pallas as pl
from jax.experimental.pallas import tpu as pltpu  # noqa: F401  (TPU backend)

PAD = 0


def _gru_gates(gi, gh, H):
    # gi / gh: [B, 3H] with PyTorch gate order (r, z, n); biases already added.
    r = jax.nn.sigmoid(gi[:, :H] + gh[:, :H])
    z = jax.nn.sigmoid(gi[:, H:2 * H] + gh[:, H:2 * H])
    n = jnp.tanh(gi[:, 2 * H:] + r * gh[:, 2 * H:])
    return z, n


def mose_vae_kernel(
    x_flat_ref, len_ref, eps_ref, emb_ref,
    enc_wi_ref, enc_wh_ref, enc_bih_ref, enc_bhh_ref,
    w_mu_ref, b_mu_ref, w_lv_ref, b_lv_ref,
    w_lat_ref, b_lat_ref,
    dec_wi_e_ref, dec_wi_z_ref, dec_wh_ref, dec_bih_ref, dec_bhh_ref,
    w_fc_ref, b_fc_ref,
    kl_ref, recon_ref,
):
    TB = x_flat_ref.shape[0]
    B = eps_ref.shape[0]
    T = TB // B
    V = emb_ref.shape[0]
    He = enc_wh_ref.shape[0]
    Hd = dec_wh_ref.shape[0]

    x_flat = x_flat_ref[...]                       # [T*B, 1] int32, time-major
    lengths = len_ref[...]                         # [B, 1]   int32

    # ---------- embedding lookup via one-hot matmul (V tiny) ----------
    vid = jax.lax.broadcasted_iota(jnp.int32, (TB, V), 1)
    onehot = (vid == x_flat).astype(jnp.float32)   # [T*B, V]
    emb_all = jnp.dot(onehot, emb_ref[...],
                      preferred_element_type=jnp.float32)        # [T*B, E]

    # ---------- encoder GRU: hoisted input projection + unrolled loop ----------
    gi_enc_all = jnp.dot(emb_all, enc_wi_ref[...],
                         preferred_element_type=jnp.float32) + enc_bih_ref[...]
    h_e = jnp.zeros((B, He), jnp.float32)
    for t in range(T):
        gi = gi_enc_all[t * B:(t + 1) * B, :]
        gh = jnp.dot(h_e, enc_wh_ref[...],
                     preferred_element_type=jnp.float32) + enc_bhh_ref[...]
        zg, n = _gru_gates(gi, gh, He)
        h_new = (1.0 - zg) * n + zg * h_e
        # pack_sequence emulation: freeze hidden after the last valid step.
        m = (jnp.int32(t) < lengths).astype(jnp.float32)         # [B, 1]
        h_e = m * h_new + (1.0 - m) * h_e

    # ---------- Gaussian sampling (reparameterization) + KL ----------
    mu = jnp.dot(h_e, w_mu_ref[...],
                 preferred_element_type=jnp.float32) + b_mu_ref[...]
    lv = jnp.dot(h_e, w_lv_ref[...],
                 preferred_element_type=jnp.float32) + b_lv_ref[...]
    z = mu + jnp.exp(0.5 * lv) * eps_ref[...]
    kl_per = 0.5 * jnp.sum(jnp.exp(lv) + mu * mu - 1.0 - lv, axis=1,
                           keepdims=True)                        # [B, 1]
    kl_ref[...] = jnp.sum(kl_per, keepdims=True) / jnp.float32(B)

    # ---------- decoder GRU + fc + cross-entropy (fused, logits never stored) ----------
    h_d = jnp.dot(z, w_lat_ref[...],
                  preferred_element_type=jnp.float32) + b_lat_ref[...]
    gi_dec_e = jnp.dot(emb_all, dec_wi_e_ref[...],
                       preferred_element_type=jnp.float32)       # [T*B, 3Hd]
    gi_dec_z = jnp.dot(z, dec_wi_z_ref[...],
                       preferred_element_type=jnp.float32) + dec_bih_ref[...]

    nll_sum = jnp.zeros((1, 1), jnp.float32)
    cnt_sum = jnp.zeros((1, 1), jnp.float32)
    # CE uses logits[:, :-1] vs targets x[:, 1:] -> only steps 0..T-2 matter.
    for t in range(T - 1):
        gi = gi_dec_e[t * B:(t + 1) * B, :] + gi_dec_z
        gh = jnp.dot(h_d, dec_wh_ref[...],
                     preferred_element_type=jnp.float32) + dec_bhh_ref[...]
        zg, n = _gru_gates(gi, gh, Hd)
        h_d = (1.0 - zg) * n + zg * h_d

        logits = jnp.dot(h_d, w_fc_ref[...],
                         preferred_element_type=jnp.float32) + b_fc_ref[...]  # [B, V]
        tgt = x_flat[(t + 1) * B:(t + 2) * B, :]                 # [B, 1] int32
        oh_tgt = onehot[(t + 1) * B:(t + 2) * B, :]              # [B, V]

        mx = jnp.max(logits, axis=1, keepdims=True)
        lse = mx + jnp.log(jnp.sum(jnp.exp(logits - mx), axis=1, keepdims=True))
        picked = jnp.sum(logits * oh_tgt, axis=1, keepdims=True)
        valid = (tgt != PAD).astype(jnp.float32)

        nll_sum = nll_sum + jnp.sum((lse - picked) * valid, keepdims=True)
        cnt_sum = cnt_sum + jnp.sum(valid, keepdims=True)

    recon_ref[...] = nll_sum / jnp.maximum(cnt_sum, 1.0)


# ----------------------------- parameter init -----------------------------


def init_params(key, n_vocab, d_emb, q_d_h, d_z, d_d_h):
    ks = jax.random.split(key, 18)

    def u(k, shape, fan):
        s = 1.0 / jnp.sqrt(jnp.float32(fan))
        return jax.random.uniform(k, shape, jnp.float32, -s, s)

    return dict(
        emb=jax.random.normal(ks[0], (n_vocab, d_emb), jnp.float32),
        # encoder GRU: gate-stacked [in, 3H] (r, z, n order) + separate ih/hh biases
        enc_wi=u(ks[1], (d_emb, 3 * q_d_h), q_d_h),
        enc_wh=u(ks[2], (q_d_h, 3 * q_d_h), q_d_h),
        enc_bih=u(ks[3], (1, 3 * q_d_h), q_d_h),
        enc_bhh=u(ks[4], (1, 3 * q_d_h), q_d_h),
        # GaussianSampling
        w_mu=u(ks[5], (q_d_h, d_z), q_d_h),
        b_mu=u(ks[6], (1, d_z), q_d_h),
        w_lv=u(ks[7], (q_d_h, d_z), q_d_h),
        b_lv=u(ks[8], (1, d_z), q_d_h),
        # decoder latent -> h0
        w_lat=u(ks[9], (d_z, d_d_h), d_z),
        b_lat=u(ks[10], (1, d_d_h), d_z),
        # decoder GRU: input weight split into emb-part and z-part (concat hoisted)
        dec_wi_e=u(ks[11], (d_emb, 3 * d_d_h), d_d_h),
        dec_wi_z=u(ks[12], (d_z, 3 * d_d_h), d_d_h),
        dec_wh=u(ks[13], (d_d_h, 3 * d_d_h), d_d_h),
        dec_bih=u(ks[14], (1, 3 * d_d_h), d_d_h),
        dec_bhh=u(ks[15], (1, 3 * d_d_h), d_d_h),
        # decoder fc -> vocab
        w_fc=u(ks[16], (d_d_h, n_vocab), d_d_h),
        b_fc=u(ks[17], (1, n_vocab), d_d_h),
    )


# ----------------------------- moseVAE forward -----------------------------


@jax.jit
def mose_vae_forward(params, x_ids, lengths, eps):
    # x_ids: [B, T] int32 padded with PAD; lengths: [B] int32; eps: [B, d_z] f32
    B, T = x_ids.shape
    x_flat = x_ids.T.reshape(T * B, 1).astype(jnp.int32)   # time-major flat ids
    len_b = lengths.reshape(B, 1).astype(jnp.int32)

    shp = jax.ShapeDtypeStruct((1, 1), jnp.float32)
    kl, recon = pl.pallas_call(
        mose_vae_kernel,
        out_shape=(shp, shp),
    )(
        x_flat, len_b, eps, params["emb"],
        params["enc_wi"], params["enc_wh"], params["enc_bih"], params["enc_bhh"],
        params["w_mu"], params["b_mu"], params["w_lv"], params["b_lv"],
        params["w_lat"], params["b_lat"],
        params["dec_wi_e"], params["dec_wi_z"], params["dec_wh"],
        params["dec_bih"], params["dec_bhh"],
        params["w_fc"], params["b_fc"],
    )
    # TODO(synk): dropout / bidirectional / multi-layer GRU paths not exercised
    # (q_n_layers=d_n_layers=1, q_bidir=False), matching the chosen config.
    return kl[0, 0], recon[0, 0], jnp.zeros((1,), jnp.float32)


# ----------------------------- main -----------------------------

if __name__ == "__main__":
    n_vocab, d_emb = 16, 8
    q_d_h, d_z, d_d_h = 32, 16, 32
    B, T = 2, 8
    bos, eos = 1, 2

    key = jax.random.PRNGKey(0)
    k_par, k_tok, k_eps = jax.random.split(key, 3)

    params = init_params(k_par, n_vocab, d_emb, q_d_h, d_z, d_d_h)

    # small padded batch (bos ... eos, pad-filled), lengths sorted decreasing
    # as pack_sequence requires.
    lengths = jnp.array([8, 6], dtype=jnp.int32)
    body = jax.random.randint(k_tok, (B, T), 3, n_vocab, dtype=jnp.int32)
    pos = jnp.arange(T, dtype=jnp.int32)[None, :]
    x_ids = jnp.where(pos == 0, bos, body)
    x_ids = jnp.where(pos == (lengths[:, None] - 1), eos, x_ids)
    x_ids = jnp.where(pos < lengths[:, None], x_ids, PAD).astype(jnp.int32)

    eps = jax.random.normal(k_eps, (B, d_z), jnp.float32)

    kl, recon, extra = mose_vae_forward(params, x_ids, lengths, eps)
    jax.block_until_ready((kl, recon, extra))
    assert jnp.isfinite(kl) and jnp.isfinite(recon)
    print("KERNEL_OK")
</pallas_src>

<mosaic_0001>
module attributes {stable_mosaic.version = 11 : i64} {
  func.func @mose_vae_kernel(%arg0: memref<16x1xi32, #tpu.memory_space<vmem>>, %arg1: memref<2x1xi32, #tpu.memory_space<vmem>>, %arg2: memref<2x16xf32, #tpu.memory_space<vmem>>, %arg3: memref<16x8xf32, #tpu.memory_space<vmem>>, %arg4: memref<8x96xf32, #tpu.memory_space<vmem>>, %arg5: memref<32x96xf32, #tpu.memory_space<vmem>>, %arg6: memref<1x96xf32, #tpu.memory_space<vmem>>, %arg7: memref<1x96xf32, #tpu.memory_space<vmem>>, %arg8: memref<32x16xf32, #tpu.memory_space<vmem>>, %arg9: memref<1x16xf32, #tpu.memory_space<vmem>>, %arg10: memref<32x16xf32, #tpu.memory_space<vmem>>, %arg11: memref<1x16xf32, #tpu.memory_space<vmem>>, %arg12: memref<16x32xf32, #tpu.memory_space<vmem>>, %arg13: memref<1x32xf32, #tpu.memory_space<vmem>>, %arg14: memref<8x96xf32, #tpu.memory_space<vmem>>, %arg15: memref<16x96xf32, #tpu.memory_space<vmem>>, %arg16: memref<32x96xf32, #tpu.memory_space<vmem>>, %arg17: memref<1x96xf32, #tpu.memory_space<vmem>>, %arg18: memref<1x96xf32, #tpu.memory_space<vmem>>, %arg19: memref<32x16xf32, #tpu.memory_space<vmem>>, %arg20: memref<1x16xf32, #tpu.memory_space<vmem>>, %arg21: memref<1x1xf32, #tpu.memory_space<vmem>>, %arg22: memref<1x1xf32, #tpu.memory_space<vmem>>) attributes {dimension_semantics = [], scalar_prefetch = 0 : i64, scratch_operands = 0 : i64, tpu.core_type = #tpu.core_type<tc>} {
    %c0 = arith.constant 0 : index
    %c0_0 = arith.constant 0 : index
    %0 = vector.load %arg0[%c0, %c0_0] : memref<16x1xi32, #tpu.memory_space<vmem>>, vector<16x1xi32>
    %c0_1 = arith.constant 0 : index
    %c0_2 = arith.constant 0 : index
    %1 = vector.load %arg1[%c0_1, %c0_2] : memref<2x1xi32, #tpu.memory_space<vmem>>, vector<2x1xi32>
    %2 = tpu.iota {dimensions = array<i32: 1>} : vector<16x16xi32>
    %3 = vector.broadcast %0 : vector<16x1xi32> to vector<16x16xi32>
    %4 = arith.cmpi eq, %2, %3 : vector<16x16xi32>
    %5 = arith.extui %4 : vector<16x16xi1> to vector<16x16xi32>
    %6 = arith.sitofp %5 : vector<16x16xi32> to vector<16x16xf32>
    %c0_3 = arith.constant 0 : index
    %c0_4 = arith.constant 0 : index
    %7 = vector.load %arg3[%c0_3, %c0_4] : memref<16x8xf32, #tpu.memory_space<vmem>>, vector<16x8xf32>
    %cst = arith.constant dense<0.000000e+00> : vector<16x8xf32>
    %8 = tpu.matmul %6, %7, %cst {dimension_numbers = #tpu.dot_dimension_numbers<[1], [0], [0], [1], [0, 0, 1, 1], [], []>} : vector<16x16xf32>, vector<16x8xf32>, vector<16x8xf32> -> vector<16x8xf32>
    %c0_5 = arith.constant 0 : index
    %c0_6 = arith.constant 0 : index
    %9 = vector.load %arg4[%c0_5, %c0_6] : memref<8x96xf32, #tpu.memory_space<vmem>>, vector<8x96xf32>
    %cst_7 = arith.constant dense<0.000000e+00> : vector<16x96xf32>
    %10 = tpu.matmul %8, %9, %cst_7 {dimension_numbers = #tpu.dot_dimension_numbers<[1], [0], [0], [1], [0, 0, 1, 1], [], []>} : vector<16x8xf32>, vector<8x96xf32>, vector<16x96xf32> -> vector<16x96xf32>
    %c0_8 = arith.constant 0 : index
    %c0_9 = arith.constant 0 : index
    %11 = vector.load %arg6[%c0_8, %c0_9] : memref<1x96xf32, #tpu.memory_space<vmem>>, vector<1x96xf32>
    %12 = vector.broadcast %11 : vector<1x96xf32> to vector<16x96xf32>
    %13 = arith.addf %10, %12 : vector<16x96xf32>
    %cst_10 = arith.constant 0.000000e+00 : f32
    %14 = vector.broadcast %cst_10 : f32 to vector<2x32xf32>
    %15 = vector.extract_strided_slice %13 {offsets = [0, 0], sizes = [2, 96], strides = [1, 1]} : vector<16x96xf32> to vector<2x96xf32>
    %c0_11 = arith.constant 0 : index
    %c0_12 = arith.constant 0 : index
    %16 = vector.load %arg5[%c0_11, %c0_12] : memref<32x96xf32, #tpu.memory_space<vmem>>, vector<32x96xf32>
    %cst_13 = arith.constant dense<0.000000e+00> : vector<2x96xf32>
    %17 = tpu.matmul %14, %16, %cst_13 {dimension_numbers = #tpu.dot_dimension_numbers<[1], [0], [0], [1], [0, 0, 1, 1], [], []>} : vector<2x32xf32>, vector<32x96xf32>, vector<2x96xf32> -> vector<2x96xf32>
    %c0_14 = arith.constant 0 : index
    %c0_15 = arith.constant 0 : index
    %18 = vector.load %arg7[%c0_14, %c0_15] : memref<1x96xf32, #tpu.memory_space<vmem>>, vector<1x96xf32>
    %19 = vector.broadcast %18 : vector<1x96xf32> to vector<2x96xf32>
    %20 = arith.addf %17, %19 : vector<2x96xf32>
    %21 = vector.extract_strided_slice %15 {offsets = [0, 0], sizes = [2, 32], strides = [1, 1]} : vector<2x96xf32> to vector<2x32xf32>
    %22 = vector.extract_strided_slice %20 {offsets = [0, 0], sizes = [2, 32], strides = [1, 1]} : vector<2x96xf32> to vector<2x32xf32>
    %23 = arith.addf %21, %22 : vector<2x32xf32>
    %24 = arith.negf %23 : vector<2x32xf32>
    %25 = math.exp %24 : vector<2x32xf32>
    %cst_16 = arith.constant 1.000000e+00 : f32
    %26 = vector.broadcast %cst_16 : f32 to vector<2x32xf32>
    %27 = arith.addf %26, %25 : vector<2x32xf32>
    %28 = arith.divf %26, %27 : vector<2x32xf32>
    %29 = vector.extract_strided_slice %15 {offsets = [0, 32], sizes = [2, 32], strides = [1, 1]} : vector<2x96xf32> to vector<2x32xf32>
    %30 = vector.extract_strided_slice %20 {offsets = [0, 32], sizes = [2, 32], strides = [1, 1]} : vector<2x96xf32> to vector<2x32xf32>
    %31 = arith.addf %29, %30 : vector<2x32xf32>
    %32 = arith.negf %31 : vector<2x32xf32>
    %33 = math.exp %32 : vector<2x32xf32>
    %cst_17 = arith.constant 1.000000e+00 : f32
    %34 = vector.broadcast %cst_17 : f32 to vector<2x32xf32>
    %35 = arith.addf %34, %33 : vector<2x32xf32>
    %36 = arith.divf %34, %35 : vector<2x32xf32>
    %37 = vector.extract_strided_slice %15 {offsets = [0, 64], sizes = [2, 32], strides = [1, 1]} : vector<2x96xf32> to vector<2x32xf32>
    %38 = vector.extract_strided_slice %20 {offsets = [0, 64], sizes = [2, 32], strides = [1, 1]} : vector<2x96xf32> to vector<2x32xf32>
    %39 = arith.mulf %28, %38 : vector<2x32xf32>
    %40 = arith.addf %37, %39 : vector<2x32xf32>
    %41 = math.tanh %40 : vector<2x32xf32>
    %cst_18 = arith.constant 1.000000e+00 : f32
    %42 = vector.broadcast %cst_18 : f32 to vector<2x32xf32>
    %43 = arith.subf %42, %36 : vector<2x32xf32>
    %44 = arith.mulf %43, %41 : vector<2x32xf32>
    %45 = arith.mulf %36, %14 : vector<2x32xf32>
    %46 = arith.addf %44, %45 : vector<2x32xf32>
    %c0_i32 = arith.constant 0 : i32
    %47 = vector.broadcast %c0_i32 : i32 to vector<2x1xi32>
    %48 = arith.cmpi slt, %47, %1 : vector<2x1xi32>
    %49 = arith.extui %48 : vector<2x1xi1> to vector<2x1xi32>
    %50 = arith.sitofp %49 : vector<2x1xi32> to vector<2x1xf32>
    %51 = vector.broadcast %50 : vector<2x1xf32> to vector<2x32xf32>
    %52 = arith.mulf %51, %46 : vector<2x32xf32>
    %cst_19 = arith.constant 1.000000e+00 : f32
    %53 = vector.broadcast %cst_19 : f32 to vector<2x1xf32>
    %54 = arith.subf %53, %50 : vector<2x1xf32>
    %55 = vector.broadcast %54 : vector<2x1xf32> to vector<2x32xf32>
    %56 = arith.mulf %55, %14 : vector<2x32xf32>
    %57 = arith.addf %52, %56 : vector<2x32xf32>
    %58 = vector.extract_strided_slice %13 {offsets = [2, 0], sizes = [2, 96], strides = [1, 1]} : vector<16x96xf32> to vector<2x96xf32>
    %c0_20 = arith.constant 0 : index
    %c0_21 = arith.constant 0 : index
    %59 = vector.load %arg5[%c0_20, %c0_21] : memref<32x96xf32, #tpu.memory_space<vmem>>, vector<32x96xf32>
    %cst_22 = arith.constant dense<0.000000e+00> : vector<2x96xf32>
    %60 = tpu.matmul %57, %59, %cst_22 {dimension_numbers = #tpu.dot_dimension_numbers<[1], [0], [0], [1], [0, 0, 1, 1], [], []>} : vector<2x32xf32>, vector<32x96xf32>, vector<2x96xf32> -> vector<2x96xf32>
    %c0_23 = arith.constant 0 : index
    %c0_24 = arith.constant 0 : index
    %61 = vector.load %arg7[%c0_23, %c0_24] : memref<1x96xf32, #tpu.memory_space<vmem>>, vector<1x96xf32>
    %62 = vector.broadcast %61 : vector<1x96xf32> to vector<2x96xf32>
    %63 = arith.addf %60, %62 : vector<2x96xf32>
    %64 = vector.extract_strided_slice %58 {offsets = [0, 0], sizes = [2, 32], strides = [1, 1]} : vector<2x96xf32> to vector<2x32xf32>
    %65 = vector.extract_strided_slice %63 {offsets = [0, 0], sizes = [2, 32], strides = [1, 1]} : vector<2x96xf32> to vector<2x32xf32>
    %66 = arith.addf %64, %65 : vector<2x32xf32>
    %67 = arith.negf %66 : vector<2x32xf32>
    %68 = math.exp %67 : vector<2x32xf32>
    %cst_25 = arith.constant 1.000000e+00 : f32
    %69 = vector.broadcast %cst_25 : f32 to vector<2x32xf32>
    %70 = arith.addf %69, %68 : vector<2x32xf32>
    %71 = arith.divf %69, %70 : vector<2x32xf32>
    %72 = vector.extract_strided_slice %58 {offsets = [0, 32], sizes = [2, 32], strides = [1, 1]} : vector<2x96xf32> to vector<2x32xf32>
    %73 = vector.extract_strided_slice %63 {offsets = [0, 32], sizes = [2, 32], strides = [1, 1]} : vector<2x96xf32> to vector<2x32xf32>
    %74 = arith.addf %72, %73 : vector<2x32xf32>
    %75 = arith.negf %74 : vector<2x32xf32>
    %76 = math.exp %75 : vector<2x32xf32>
    %cst_26 = arith.constant 1.000000e+00 : f32
    %77 = vector.broadcast %cst_26 : f32 to vector<2x32xf32>
    %78 = arith.addf %77, %76 : vector<2x32xf32>
    %79 = arith.divf %77, %78 : vector<2x32xf32>
    %80 = vector.extract_strided_slice %58 {offsets = [0, 64], sizes = [2, 32], strides = [1, 1]} : vector<2x96xf32> to vector<2x32xf32>
    %81 = vector.extract_strided_slice %63 {offsets = [0, 64], sizes = [2, 32], strides = [1, 1]} : vector<2x96xf32> to vector<2x32xf32>
    %82 = arith.mulf %71, %81 : vector<2x32xf32>
    %83 = arith.addf %80, %82 : vector<2x32xf32>
    %84 = math.tanh %83 : vector<2x32xf32>
    %cst_27 = arith.constant 1.000000e+00 : f32
    %85 = vector.broadcast %cst_27 : f32 to vector<2x32xf32>
    %86 = arith.subf %85, %79 : vector<2x32xf32>
    %87 = arith.mulf %86, %84 : vector<2x32xf32>
    %88 = arith.mulf %79, %57 : vector<2x32xf32>
    %89 = arith.addf %87, %88 : vector<2x32xf32>
    %c1_i32 = arith.constant 1 : i32
    %90 = vector.broadcast %c1_i32 : i32 to vector<2x1xi32>
    %91 = arith.cmpi slt, %90, %1 : vector<2x1xi32>
    %92 = arith.extui %91 : vector<2x1xi1> to vector<2x1xi32>
    %93 = arith.sitofp %92 : vector<2x1xi32> to vector<2x1xf32>
    %94 = vector.broadcast %93 : vector<2x1xf32> to vector<2x32xf32>
    %95 = arith.mulf %94, %89 : vector<2x32xf32>
    %cst_28 = arith.constant 1.000000e+00 : f32
    %96 = vector.broadcast %cst_28 : f32 to vector<2x1xf32>
    %97 = arith.subf %96, %93 : vector<2x1xf32>
    %98 = vector.broadcast %97 : vector<2x1xf32> to vector<2x32xf32>
    %99 = arith.mulf %98, %57 : vector<2x32xf32>
    %100 = arith.addf %95, %99 : vector<2x32xf32>
    %101 = vector.extract_strided_slice %13 {offsets = [4, 0], sizes = [2, 96], strides = [1, 1]} : vector<16x96xf32> to vector<2x96xf32>
    %c0_29 = arith.constant 0 : index
    %c0_30 = arith.constant 0 : index
    %102 = vector.load %arg5[%c0_29, %c0_30] : memref<32x96xf32, #tpu.memory_space<vmem>>, vector<32x96xf32>
    %cst_31 = arith.constant dense<0.000000e+00> : vector<2x96xf32>
    %103 = tpu.matmul %100, %102, %cst_31 {dimension_numbers = #tpu.dot_dimension_numbers<[1], [0], [0], [1], [0, 0, 1, 1], [], []>} : vector<2x32xf32>, vector<32x96xf32>, vector<2x96xf32> -> vector<2x96xf32>
    %c0_32 = arith.constant 0 : index
    %c0_33 = arith.constant 0 : index
    %104 = vector.load %arg7[%c0_32, %c0_33] : memref<1x96xf32, #tpu.memory_space<vmem>>, vector<1x96xf32>
    %105 = vector.broadcast %104 : vector<1x96xf32> to vector<2x96xf32>
    %106 = arith.addf %103, %105 : vector<2x96xf32>
    %107 = vector.extract_strided_slice %101 {offsets = [0, 0], sizes = [2, 32], strides = [1, 1]} : vector<2x96xf32> to vector<2x32xf32>
    %108 = vector.extract_strided_slice %106 {offsets = [0, 0], sizes = [2, 32], strides = [1, 1]} : vector<2x96xf32> to vector<2x32xf32>
    %109 = arith.addf %107, %108 : vector<2x32xf32>
    %110 = arith.negf %109 : vector<2x32xf32>
    %111 = math.exp %110 : vector<2x32xf32>
    %cst_34 = arith.constant 1.000000e+00 : f32
    %112 = vector.broadcast %cst_34 : f32 to vector<2x32xf32>
    %113 = arith.addf %112, %111 : vector<2x32xf32>
    %114 = arith.divf %112, %113 : vector<2x32xf32>
    %115 = vector.extract_strided_slice %101 {offsets = [0, 32], sizes = [2, 32], strides = [1, 1]} : vector<2x96xf32> to vector<2x32xf32>
    %116 = vector.extract_strided_slice %106 {offsets = [0, 32], sizes = [2, 32], strides = [1, 1]} : vector<2x96xf32> to vector<2x32xf32>
    %117 = arith.addf %115, %116 : vector<2x32xf32>
    %118 = arith.negf %117 : vector<2x32xf32>
    %119 = math.exp %118 : vector<2x32xf32>
    %cst_35 = arith.constant 1.000000e+00 : f32
    %120 = vector.broadcast %cst_35 : f32 to vector<2x32xf32>
    %121 = arith.addf %120, %119 : vector<2x32xf32>
    %122 = arith.divf %120, %121 : vector<2x32xf32>
    %123 = vector.extract_strided_slice %101 {offsets = [0, 64], sizes = [2, 32], strides = [1, 1]} : vector<2x96xf32> to vector<2x32xf32>
    %124 = vector.extract_strided_slice %106 {offsets = [0, 64], sizes = [2, 32], strides = [1, 1]} : vector<2x96xf32> to vector<2x32xf32>
    %125 = arith.mulf %114, %124 : vector<2x32xf32>
    %126 = arith.addf %123, %125 : vector<2x32xf32>
    %127 = math.tanh %126 : vector<2x32xf32>
    %cst_36 = arith.constant 1.000000e+00 : f32
    %128 = vector.broadcast %cst_36 : f32 to vector<2x32xf32>
    %129 = arith.subf %128, %122 : vector<2x32xf32>
    %130 = arith.mulf %129, %127 : vector<2x32xf32>
    %131 = arith.mulf %122, %100 : vector<2x32xf32>
    %132 = arith.addf %130, %131 : vector<2x32xf32>
    %c2_i32 = arith.constant 2 : i32
    %133 = vector.broadcast %c2_i32 : i32 to vector<2x1xi32>
    %134 = arith.cmpi slt, %133, %1 : vector<2x1xi32>
    %135 = arith.extui %134 : vector<2x1xi1> to vector<2x1xi32>
    %136 = arith.sitofp %135 : vector<2x1xi32> to vector<2x1xf32>
    %137 = vector.broadcast %136 : vector<2x1xf32> to vector<2x32xf32>
    %138 = arith.mulf %137, %132 : vector<2x32xf32>
    %cst_37 = arith.constant 1.000000e+00 : f32
    %139 = vector.broadcast %cst_37 : f32 to vector<2x1xf32>
    %140 = arith.subf %139, %136 : vector<2x1xf32>
    %141 = vector.broadcast %140 : vector<2x1xf32> to vector<2x32xf32>
    %142 = arith.mulf %141, %100 : vector<2x32xf32>
    %143 = arith.addf %138, %142 : vector<2x32xf32>
    %144 = vector.extract_strided_slice %13 {offsets = [6, 0], sizes = [2, 96], strides = [1, 1]} : vector<16x96xf32> to vector<2x96xf32>
    %c0_38 = arith.constant 0 : index
    %c0_39 = arith.constant 0 : index
    %145 = vector.load %arg5[%c0_38, %c0_39] : memref<32x96xf32, #tpu.memory_space<vmem>>, vector<32x96xf32>
    %cst_40 = arith.constant dense<0.000000e+00> : vector<2x96xf32>
    %146 = tpu.matmul %143, %145, %cst_40 {dimension_numbers = #tpu.dot_dimension_numbers<[1], [0], [0], [1], [0, 0, 1, 1], [], []>} : vector<2x32xf32>, vector<32x96xf32>, vector<2x96xf32> -> vector<2x96xf32>
    %c0_41 = arith.constant 0 : index
    %c0_42 = arith.constant 0 : index
    %147 = vector.load %arg7[%c0_41, %c0_42] : memref<1x96xf32, #tpu.memory_space<vmem>>, vector<1x96xf32>
    %148 = vector.broadcast %147 : vector<1x96xf32> to vector<2x96xf32>
    %149 = arith.addf %146, %148 : vector<2x96xf32>
    %150 = vector.extract_strided_slice %144 {offsets = [0, 0], sizes = [2, 32], strides = [1, 1]} : vector<2x96xf32> to vector<2x32xf32>
    %151 = vector.extract_strided_slice %149 {offsets = [0, 0], sizes = [2, 32], strides = [1, 1]} : vector<2x96xf32> to vector<2x32xf32>
    %152 = arith.addf %150, %151 : vector<2x32xf32>
    %153 = arith.negf %152 : vector<2x32xf32>
    %154 = math.exp %153 : vector<2x32xf32>
    %cst_43 = arith.constant 1.000000e+00 : f32
    %155 = vector.broadcast %cst_43 : f32 to vector<2x32xf32>
    %156 = arith.addf %155, %154 : vector<2x32xf32>
    %157 = arith.divf %155, %156 : vector<2x32xf32>
    %158 = vector.extract_strided_slice %144 {offsets = [0, 32], sizes = [2, 32], strides = [1, 1]} : vector<2x96xf32> to vector<2x32xf32>
    %159 = vector.extract_strided_slice %149 {offsets = [0, 32], sizes = [2, 32], strides = [1, 1]} : vector<2x96xf32> to vector<2x32xf32>
    %160 = arith.addf %158, %159 : vector<2x32xf32>
    %161 = arith.negf %160 : vector<2x32xf32>
    %162 = math.exp %161 : vector<2x32xf32>
    %cst_44 = arith.constant 1.000000e+00 : f32
    %163 = vector.broadcast %cst_44 : f32 to vector<2x32xf32>
    %164 = arith.addf %163, %162 : vector<2x32xf32>
    %165 = arith.divf %163, %164 : vector<2x32xf32>
    %166 = vector.extract_strided_slice %144 {offsets = [0, 64], sizes = [2, 32], strides = [1, 1]} : vector<2x96xf32> to vector<2x32xf32>
    %167 = vector.extract_strided_slice %149 {offsets = [0, 64], sizes = [2, 32], strides = [1, 1]} : vector<2x96xf32> to vector<2x32xf32>
    %168 = arith.mulf %157, %167 : vector<2x32xf32>
    %169 = arith.addf %166, %168 : vector<2x32xf32>
    %170 = math.tanh %169 : vector<2x32xf32>
    %cst_45 = arith.constant 1.000000e+00 : f32
    %171 = vector.broadcast %cst_45 : f32 to vector<2x32xf32>
    %172 = arith.subf %171, %165 : vector<2x32xf32>
    %173 = arith.mulf %172, %170 : vector<2x32xf32>
    %174 = arith.mulf %165, %143 : vector<2x32xf32>
    %175 = arith.addf %173, %174 : vector<2x32xf32>
    %c3_i32 = arith.constant 3 : i32
    %176 = vector.broadcast %c3_i32 : i32 to vector<2x1xi32>
    %177 = arith.cmpi slt, %176, %1 : vector<2x1xi32>
    %178 = arith.extui %177 : vector<2x1xi1> to vector<2x1xi32>
    %179 = arith.sitofp %178 : vector<2x1xi32> to vector<2x1xf32>
    %180 = vector.broadcast %179 : vector<2x1xf32> to vector<2x32xf32>
    %181 = arith.mulf %180, %175 : vector<2x32xf32>
    %cst_46 = arith.constant 1.000000e+00 : f32
    %182 = vector.broadcast %cst_46 : f32 to vector<2x1xf32>
    %183 = arith.subf %182, %179 : vector<2x1xf32>
    %184 = vector.broadcast %183 : vector<2x1xf32> to vector<2x32xf32>
    %185 = arith.mulf %184, %143 : vector<2x32xf32>
    %186 = arith.addf %181, %185 : vector<2x32xf32>
    %187 = vector.extract_strided_slice %13 {offsets = [8, 0], sizes = [2, 96], strides = [1, 1]} : vector<16x96xf32> to vector<2x96xf32>
    %c0_47 = arith.constant 0 : index
    %c0_48 = arith.constant 0 : index
    %188 = vector.load %arg5[%c0_47, %c0_48] : memref<32x96xf32, #tpu.memory_space<vmem>>, vector<32x96xf32>
    %cst_49 = arith.constant dense<0.000000e+00> : vector<2x96xf32>
    %189 = tpu.matmul %186, %188, %cst_49 {dimension_numbers = #tpu.dot_dimension_numbers<[1], [0], [0], [1], [0, 0, 1, 1], [], []>} : vector<2x32xf32>, vector<32x96xf32>, vector<2x96xf32> -> vector<2x96xf32>
    %c0_50 = arith.constant 0 : index
    %c0_51 = arith.constant 0 : index
    %190 = vector.load %arg7[%c0_50, %c0_51] : memref<1x96xf32, #tpu.memory_space<vmem>>, vector<1x96xf32>
    %191 = vector.broadcast %190 : vector<1x96xf32> to vector<2x96xf32>
    %192 = arith.addf %189, %191 : vector<2x96xf32>
    %193 = vector.extract_strided_slice %187 {offsets = [0, 0], sizes = [2, 32], strides = [1, 1]} : vector<2x96xf32> to vector<2x32xf32>
    %194 = vector.extract_strided_slice %192 {offsets = [0, 0], sizes = [2, 32], strides = [1, 1]} : vector<2x96xf32> to vector<2x32xf32>
    %195 = arith.addf %193, %194 : vector<2x32xf32>
    %196 = arith.negf %195 : vector<2x32xf32>
    %197 = math.exp %196 : vector<2x32xf32>
    %cst_52 = arith.constant 1.000000e+00 : f32
    %198 = vector.broadcast %cst_52 : f32 to vector<2x32xf32>
    %199 = arith.addf %198, %197 : vector<2x32xf32>
    %200 = arith.divf %198, %199 : vector<2x32xf32>
    %201 = vector.extract_strided_slice %187 {offsets = [0, 32], sizes = [2, 32], strides = [1, 1]} : vector<2x96xf32> to vector<2x32xf32>
    %202 = vector.extract_strided_slice %192 {offsets = [0, 32], sizes = [2, 32], strides = [1, 1]} : vector<2x96xf32> to vector<2x32xf32>
    %203 = arith.addf %201, %202 : vector<2x32xf32>
    %204 = arith.negf %203 : vector<2x32xf32>
    %205 = math.exp %204 : vector<2x32xf32>
    %cst_53 = arith.constant 1.000000e+00 : f32
    %206 = vector.broadcast %cst_53 : f32 to vector<2x32xf32>
    %207 = arith.addf %206, %205 : vector<2x32xf32>
    %208 = arith.divf %206, %207 : vector<2x32xf32>
    %209 = vector.extract_strided_slice %187 {offsets = [0, 64], sizes = [2, 32], strides = [1, 1]} : vector<2x96xf32> to vector<2x32xf32>
    %210 = vector.extract_strided_slice %192 {offsets = [0, 64], sizes = [2, 32], strides = [1, 1]} : vector<2x96xf32> to vector<2x32xf32>
    %211 = arith.mulf %200, %210 : vector<2x32xf32>
    %212 = arith.addf %209, %211 : vector<2x32xf32>
    %213 = math.tanh %212 : vector<2x32xf32>
    %cst_54 = arith.constant 1.000000e+00 : f32
    %214 = vector.broadcast %cst_54 : f32 to vector<2x32xf32>
    %215 = arith.subf %214, %208 : vector<2x32xf32>
    %216 = arith.mulf %215, %213 : vector<2x32xf32>
    %217 = arith.mulf %208, %186 : vector<2x32xf32>
    %218 = arith.addf %216, %217 : vector<2x32xf32>
    %c4_i32 = arith.constant 4 : i32
    %219 = vector.broadcast %c4_i32 : i32 to vector<2x1xi32>
    %220 = arith.cmpi slt, %219, %1 : vector<2x1xi32>
    %221 = arith.extui %220 : vector<2x1xi1> to vector<2x1xi32>
    %222 = arith.sitofp %221 : vector<2x1xi32> to vector<2x1xf32>
    %223 = vector.broadcast %222 : vector<2x1xf32> to vector<2x32xf32>
    %224 = arith.mulf %223, %218 : vector<2x32xf32>
    %cst_55 = arith.constant 1.000000e+00 : f32
    %225 = vector.broadcast %cst_55 : f32 to vector<2x1xf32>
    %226 = arith.subf %225, %222 : vector<2x1xf32>
    %227 = vector.broadcast %226 : vector<2x1xf32> to vector<2x32xf32>
    %228 = arith.mulf %227, %186 : vector<2x32xf32>
    %229 = arith.addf %224, %228 : vector<2x32xf32>
    %230 = vector.extract_strided_slice %13 {offsets = [10, 0], sizes = [2, 96], strides = [1, 1]} : vector<16x96xf32> to vector<2x96xf32>
    %c0_56 = arith.constant 0 : index
    %c0_57 = arith.constant 0 : index
    %231 = vector.load %arg5[%c0_56, %c0_57] : memref<32x96xf32, #tpu.memory_space<vmem>>, vector<32x96xf32>
    %cst_58 = arith.constant dense<0.000000e+00> : vector<2x96xf32>
    %232 = tpu.matmul %229, %231, %cst_58 {dimension_numbers = #tpu.dot_dimension_numbers<[1], [0], [0], [1], [0, 0, 1, 1], [], []>} : vector<2x32xf32>, vector<32x96xf32>, vector<2x96xf32> -> vector<2x96xf32>
    %c0_59 = arith.constant 0 : index
    %c0_60 = arith.constant 0 : index
    %233 = vector.load %arg7[%c0_59, %c0_60] : memref<1x96xf32, #tpu.memory_space<vmem>>, vector<1x96xf32>
    %234 = vector.broadcast %233 : vector<1x96xf32> to vector<2x96xf32>
    %235 = arith.addf %232, %234 : vector<2x96xf32>
    %236 = vector.extract_strided_slice %230 {offsets = [0, 0], sizes = [2, 32], strides = [1, 1]} : vector<2x96xf32> to vector<2x32xf32>
    %237 = vector.extract_strided_slice %235 {offsets = [0, 0], sizes = [2, 32], strides = [1, 1]} : vector<2x96xf32> to vector<2x32xf32>
    %238 = arith.addf %236, %237 : vector<2x32xf32>
    %239 = arith.negf %238 : vector<2x32xf32>
    %240 = math.exp %239 : vector<2x32xf32>
    %cst_61 = arith.constant 1.000000e+00 : f32
    %241 = vector.broadcast %cst_61 : f32 to vector<2x32xf32>
    %242 = arith.addf %241, %240 : vector<2x32xf32>
    %243 = arith.divf %241, %242 : vector<2x32xf32>
    %244 = vector.extract_strided_slice %230 {offsets = [0, 32], sizes = [2, 32], strides = [1, 1]} : vector<2x96xf32> to vector<2x32xf32>
    %245 = vector.extract_strided_slice %235 {offsets = [0, 32], sizes = [2, 32], strides = [1, 1]} : vector<2x96xf32> to vector<2x32xf32>
    %246 = arith.addf %244, %245 : vector<2x32xf32>
    %247 = arith.negf %246 : vector<2x32xf32>
    %248 = math.exp %247 : vector<2x32xf32>
    %cst_62 = arith.constant 1.000000e+00 : f32
    %249 = vector.broadcast %cst_62 : f32 to vector<2x32xf32>
    %250 = arith.addf %249, %248 : vector<2x32xf32>
    %251 = arith.divf %249, %250 : vector<2x32xf32>
    %252 = vector.extract_strided_slice %230 {offsets = [0, 64], sizes = [2, 32], strides = [1, 1]} : vector<2x96xf32> to vector<2x32xf32>
    %253 = vector.extract_strided_slice %235 {offsets = [0, 64], sizes = [2, 32], strides = [1, 1]} : vector<2x96xf32> to vector<2x32xf32>
    %254 = arith.mulf %243, %253 : vector<2x32xf32>
    %255 = arith.addf %252, %254 : vector<2x32xf32>
    %256 = math.tanh %255 : vector<2x32xf32>
    %cst_63 = arith.constant 1.000000e+00 : f32
    %257 = vector.broadcast %cst_63 : f32 to vector<2x32xf32>
    %258 = arith.subf %257, %251 : vector<2x32xf32>
    %259 = arith.mulf %258, %256 : vector<2x32xf32>
    %260 = arith.mulf %251, %229 : vector<2x32xf32>
    %261 = arith.addf %259, %260 : vector<2x32xf32>
    %c5_i32 = arith.constant 5 : i32
    %262 = vector.broadcast %c5_i32 : i32 to vector<2x1xi32>
    %263 = arith.cmpi slt, %262, %1 : vector<2x1xi32>
    %264 = arith.extui %263 : vector<2x1xi1> to vector<2x1xi32>
    %265 = arith.sitofp %264 : vector<2x1xi32> to vector<2x1xf32>
    %266 = vector.broadcast %265 : vector<2x1xf32> to vector<2x32xf32>
    %267 = arith.mulf %266, %261 : vector<2x32xf32>
    %cst_64 = arith.constant 1.000000e+00 : f32
    %268 = vector.broadcast %cst_64 : f32 to vector<2x1xf32>
    %269 = arith.subf %268, %265 : vector<2x1xf32>
    %270 = vector.broadcast %269 : vector<2x1xf32> to vector<2x32xf32>
    %271 = arith.mulf %270, %229 : vector<2x32xf32>
    %272 = arith.addf %267, %271 : vector<2x32xf32>
    %273 = vector.extract_strided_slice %13 {offsets = [12, 0], sizes = [2, 96], strides = [1, 1]} : vector<16x96xf32> to vector<2x96xf32>
    %c0_65 = arith.constant 0 : index
    %c0_66 = arith.constant 0 : index
    %274 = vector.load %arg5[%c0_65, %c0_66] : memref<32x96xf32, #tpu.memory_space<vmem>>, vector<32x96xf32>
    %cst_67 = arith.constant dense<0.000000e+00> : vector<2x96xf32>
    %275 = tpu.matmul %272, %274, %cst_67 {dimension_numbers = #tpu.dot_dimension_numbers<[1], [0], [0], [1], [0, 0, 1, 1], [], []>} : vector<2x32xf32>, vector<32x96xf32>, vector<2x96xf32> -> vector<2x96xf32>
    %c0_68 = arith.constant 0 : index
    %c0_69 = arith.constant 0 : index
    %276 = vector.load %arg7[%c0_68, %c0_69] : memref<1x96xf32, #tpu.memory_space<vmem>>, vector<1x96xf32>
    %277 = vector.broadcast %276 : vector<1x96xf32> to vector<2x96xf32>
    %278 = arith.addf %275, %277 : vector<2x96xf32>
    %279 = vector.extract_strided_slice %273 {offsets = [0, 0], sizes = [2, 32], strides = [1, 1]} : vector<2x96xf32> to vector<2x32xf32>
    %280 = vector.extract_strided_slice %278 {offsets = [0, 0], sizes = [2, 32], strides = [1, 1]} : vector<2x96xf32> to vector<2x32xf32>
    %281 = arith.addf %279, %280 : vector<2x32xf32>
    %282 = arith.negf %281 : vector<2x32xf32>
    %283 = math.exp %282 : vector<2x32xf32>
    %cst_70 = arith.constant 1.000000e+00 : f32
    %284 = vector.broadcast %cst_70 : f32 to vector<2x32xf32>
    %285 = arith.addf %284, %283 : vector<2x32xf32>
    %286 = arith.divf %284, %285 : vector<2x32xf32>
    %287 = vector.extract_strided_slice %273 {offsets = [0, 32], sizes = [2, 32], strides = [1, 1]} : vector<2x96xf32> to vector<2x32xf32>
    %288 = vector.extract_strided_slice %278 {offsets = [0, 32], sizes = [2, 32], strides = [1, 1]} : vector<2x96xf32> to vector<2x32xf32>
    %289 = arith.addf %287, %288 : vector<2x32xf32>
    %290 = arith.negf %289 : vector<2x32xf32>
    %291 = math.exp %290 : vector<2x32xf32>
    %cst_71 = arith.constant 1.000000e+00 : f32
    %292 = vector.broadcast %cst_71 : f32 to vector<2x32xf32>
    %293 = arith.addf %292, %291 : vector<2x32xf32>
    %294 = arith.divf %292, %293 : vector<2x32xf32>
    %295 = vector.extract_strided_slice %273 {offsets = [0, 64], sizes = [2, 32], strides = [1, 1]} : vector<2x96xf32> to vector<2x32xf32>
    %296 = vector.extract_strided_slice %278 {offsets = [0, 64], sizes = [2, 32], strides = [1, 1]} : vector<2x96xf32> to vector<2x32xf32>
    %297 = arith.mulf %286, %296 : vector<2x32xf32>
    %298 = arith.addf %295, %297 : vector<2x32xf32>
    %299 = math.tanh %298 : vector<2x32xf32>
    %cst_72 = arith.constant 1.000000e+00 : f32
    %300 = vector.broadcast %cst_72 : f32 to vector<2x32xf32>
    %301 = arith.subf %300, %294 : vector<2x32xf32>
    %302 = arith.mulf %301, %299 : vector<2x32xf32>
    %303 = arith.mulf %294, %272 : vector<2x32xf32>
    %304 = arith.addf %302, %303 : vector<2x32xf32>
    %c6_i32 = arith.constant 6 : i32
    %305 = vector.broadcast %c6_i32 : i32 to vector<2x1xi32>
    %306 = arith.cmpi slt, %305, %1 : vector<2x1xi32>
    %307 = arith.extui %306 : vector<2x1xi1> to vector<2x1xi32>
    %308 = arith.sitofp %307 : vector<2x1xi32> to vector<2x1xf32>
    %309 = vector.broadcast %308 : vector<2x1xf32> to vector<2x32xf32>
    %310 = arith.mulf %309, %304 : vector<2x32xf32>
    %cst_73 = arith.constant 1.000000e+00 : f32
    %311 = vector.broadcast %cst_73 : f32 to vector<2x1xf32>
    %312 = arith.subf %311, %308 : vector<2x1xf32>
    %313 = vector.broadcast %312 : vector<2x1xf32> to vector<2x32xf32>
    %314 = arith.mulf %313, %272 : vector<2x32xf32>
    %315 = arith.addf %310, %314 : vector<2x32xf32>
    %316 = vector.extract_strided_slice %13 {offsets = [14, 0], sizes = [2, 96], strides = [1, 1]} : vector<16x96xf32> to vector<2x96xf32>
    %c0_74 = arith.constant 0 : index
    %c0_75 = arith.constant 0 : index
    %317 = vector.load %arg5[%c0_74, %c0_75] : memref<32x96xf32, #tpu.memory_space<vmem>>, vector<32x96xf32>
    %cst_76 = arith.constant dense<0.000000e+00> : vector<2x96xf32>
    %318 = tpu.matmul %315, %317, %cst_76 {dimension_numbers = #tpu.dot_dimension_numbers<[1], [0], [0], [1], [0, 0, 1, 1], [], []>} : vector<2x32xf32>, vector<32x96xf32>, vector<2x96xf32> -> vector<2x96xf32>
    %c0_77 = arith.constant 0 : index
    %c0_78 = arith.constant 0 : index
    %319 = vector.load %arg7[%c0_77, %c0_78] : memref<1x96xf32, #tpu.memory_space<vmem>>, vector<1x96xf32>
    %320 = vector.broadcast %319 : vector<1x96xf32> to vector<2x96xf32>
    %321 = arith.addf %318, %320 : vector<2x96xf32>
    %322 = vector.extract_strided_slice %316 {offsets = [0, 0], sizes = [2, 32], strides = [1, 1]} : vector<2x96xf32> to vector<2x32xf32>
    %323 = vector.extract_strided_slice %321 {offsets = [0, 0], sizes = [2, 32], strides = [1, 1]} : vector<2x96xf32> to vector<2x32xf32>
    %324 = arith.addf %322, %323 : vector<2x32xf32>
    %325 = arith.negf %324 : vector<2x32xf32>
    %326 = math.exp %325 : vector<2x32xf32>
    %cst_79 = arith.constant 1.000000e+00 : f32
    %327 = vector.broadcast %cst_79 : f32 to vector<2x32xf32>
    %328 = arith.addf %327, %326 : vector<2x32xf32>
    %329 = arith.divf %327, %328 : vector<2x32xf32>
    %330 = vector.extract_strided_slice %316 {offsets = [0, 32], sizes = [2, 32], strides = [1, 1]} : vector<2x96xf32> to vector<2x32xf32>
    %331 = vector.extract_strided_slice %321 {offsets = [0, 32], sizes = [2, 32], strides = [1, 1]} : vector<2x96xf32> to vector<2x32xf32>
    %332 = arith.addf %330, %331 : vector<2x32xf32>
    %333 = arith.negf %332 : vector<2x32xf32>
    %334 = math.exp %333 : vector<2x32xf32>
    %cst_80 = arith.constant 1.000000e+00 : f32
    %335 = vector.broadcast %cst_80 : f32 to vector<2x32xf32>
    %336 = arith.addf %335, %334 : vector<2x32xf32>
    %337 = arith.divf %335, %336 : vector<2x32xf32>
    %338 = vector.extract_strided_slice %316 {offsets = [0, 64], sizes = [2, 32], strides = [1, 1]} : vector<2x96xf32> to vector<2x32xf32>
    %339 = vector.extract_strided_slice %321 {offsets = [0, 64], sizes = [2, 32], strides = [1, 1]} : vector<2x96xf32> to vector<2x32xf32>
    %340 = arith.mulf %329, %339 : vector<2x32xf32>
    %341 = arith.addf %338, %340 : vector<2x32xf32>
    %342 = math.tanh %341 : vector<2x32xf32>
    %cst_81 = arith.constant 1.000000e+00 : f32
    %343 = vector.broadcast %cst_81 : f32 to vector<2x32xf32>
    %344 = arith.subf %343, %337 : vector<2x32xf32>
    %345 = arith.mulf %344, %342 : vector<2x32xf32>
    %346 = arith.mulf %337, %315 : vector<2x32xf32>
    %347 = arith.addf %345, %346 : vector<2x32xf32>
    %c7_i32 = arith.constant 7 : i32
    %348 = vector.broadcast %c7_i32 : i32 to vector<2x1xi32>
    %349 = arith.cmpi slt, %348, %1 : vector<2x1xi32>
    %350 = arith.extui %349 : vector<2x1xi1> to vector<2x1xi32>
    %351 = arith.sitofp %350 : vector<2x1xi32> to vector<2x1xf32>
    %352 = vector.broadcast %351 : vector<2x1xf32> to vector<2x32xf32>
    %353 = arith.mulf %352, %347 : vector<2x32xf32>
    %cst_82 = arith.constant 1.000000e+00 : f32
    %354 = vector.broadcast %cst_82 : f32 to vector<2x1xf32>
    %355 = arith.subf %354, %351 : vector<2x1xf32>
    %356 = vector.broadcast %355 : vector<2x1xf32> to vector<2x32xf32>
    %357 = arith.mulf %356, %315 : vector<2x32xf32>
    %358 = arith.addf %353, %357 : vector<2x32xf32>
    %c0_83 = arith.constant 0 : index
    %c0_84 = arith.constant 0 : index
    %359 = vector.load %arg8[%c0_83, %c0_84] : memref<32x16xf32, #tpu.memory_space<vmem>>, vector<32x16xf32>
    %cst_85 = arith.constant dense<0.000000e+00> : vector<2x16xf32>
    %360 = tpu.matmul %358, %359, %cst_85 {dimension_numbers = #tpu.dot_dimension_numbers<[1], [0], [0], [1], [0, 0, 1, 1], [], []>} : vector<2x32xf32>, vector<32x16xf32>, vector<2x16xf32> -> vector<2x16xf32>
    %c0_86 = arith.constant 0 : index
    %c0_87 = arith.constant 0 : index
    %361 = vector.load %arg9[%c0_86, %c0_87] : memref<1x16xf32, #tpu.memory_space<vmem>>, vector<1x16xf32>
    %362 = vector.broadcast %361 : vector<1x16xf32> to vector<2x16xf32>
    %363 = arith.addf %360, %362 : vector<2x16xf32>
    %c0_88 = arith.constant 0 : index
    %c0_89 = arith.constant 0 : index
    %364 = vector.load %arg10[%c0_88, %c0_89] : memref<32x16xf32, #tpu.memory_space<vmem>>, vector<32x16xf32>
    %cst_90 = arith.constant dense<0.000000e+00> : vector<2x16xf32>
    %365 = tpu.matmul %358, %364, %cst_90 {dimension_numbers = #tpu.dot_dimension_numbers<[1], [0], [0], [1], [0, 0, 1, 1], [], []>} : vector<2x32xf32>, vector<32x16xf32>, vector<2x16xf32> -> vector<2x16xf32>
    %c0_91 = arith.constant 0 : index
    %c0_92 = arith.constant 0 : index
    %366 = vector.load %arg11[%c0_91, %c0_92] : memref<1x16xf32, #tpu.memory_space<vmem>>, vector<1x16xf32>
    %367 = vector.broadcast %366 : vector<1x16xf32> to vector<2x16xf32>
    %368 = arith.addf %365, %367 : vector<2x16xf32>
    %cst_93 = arith.constant 5.000000e-01 : f32
    %369 = vector.broadcast %cst_93 : f32 to vector<2x16xf32>
    %370 = arith.mulf %369, %368 : vector<2x16xf32>
    %371 = math.exp %370 : vector<2x16xf32>
    %c0_94 = arith.constant 0 : index
    %c0_95 = arith.constant 0 : index
    %372 = vector.load %arg2[%c0_94, %c0_95] : memref<2x16xf32, #tpu.memory_space<vmem>>, vector<2x16xf32>
    %373 = arith.mulf %371, %372 : vector<2x16xf32>
    %374 = arith.addf %363, %373 : vector<2x16xf32>
    %375 = math.exp %368 : vector<2x16xf32>
    %376 = arith.mulf %363, %363 : vector<2x16xf32>
    %377 = arith.addf %375, %376 : vector<2x16xf32>
    %cst_96 = arith.constant 1.000000e+00 : f32
    %378 = vector.broadcast %cst_96 : f32 to vector<2x16xf32>
    %379 = arith.subf %377, %378 : vector<2x16xf32>
    %380 = arith.subf %379, %368 : vector<2x16xf32>
    %cst_97 = arith.constant dense<0.000000e+00> : vector<2xf32>
    %381 = vector.multi_reduction <add>, %380, %cst_97 [1] : vector<2x16xf32> to vector<2xf32>
    %382 = vector.shape_cast %381 : vector<2xf32> to vector<2x1xf32>
    %cst_98 = arith.constant 5.000000e-01 : f32
    %383 = vector.broadcast %cst_98 : f32 to vector<2x1xf32>
    %384 = arith.mulf %383, %382 : vector<2x1xf32>
    %385 = vector.shape_cast %384 : vector<2x1xf32> to vector<1x2x1xf32>
    %cst_99 = arith.constant dense<0.000000e+00> : vector<1xf32>
    %386 = vector.multi_reduction <add>, %385, %cst_99 [1, 2] : vector<1x2x1xf32> to vector<1xf32>
    %387 = vector.shape_cast %386 : vector<1xf32> to vector<1x1x1xf32>
    %388 = vector.extract %387[0, 0, 0] : f32 from vector<1x1x1xf32>
    %389 = vector.broadcast %388 : f32 to vector<1x1xf32>
    %cst_100 = arith.constant 2.000000e+00 : f32
    %390 = vector.broadcast %cst_100 : f32 to vector<1x1xf32>
    %391 = arith.divf %389, %390 : vector<1x1xf32>
    %c0_101 = arith.constant 0 : index
    %c0_102 = arith.constant 0 : index
    %392 = vector.load %arg21[%c0_101, %c0_102] : memref<1x1xf32, #tpu.memory_space<vmem>>, vector<1x1xf32>
    tpu.vector_store %arg21[%c0_101, %c0_102], %391 {strides = array<i32>} : memref<1x1xf32, #tpu.memory_space<vmem>>, vector<1x1xf32>,
    %c0_103 = arith.constant 0 : index
    %c0_104 = arith.constant 0 : index
    %393 = vector.load %arg12[%c0_103, %c0_104] : memref<16x32xf32, #tpu.memory_space<vmem>>, vector<16x32xf32>
    %cst_105 = arith.constant dense<0.000000e+00> : vector<2x32xf32>
    %394 = tpu.matmul %374, %393, %cst_105 {dimension_numbers = #tpu.dot_dimension_numbers<[1], [0], [0], [1], [0, 0, 1, 1], [], []>} : vector<2x16xf32>, vector<16x32xf32>, vector<2x32xf32> -> vector<2x32xf32>
    %c0_106 = arith.constant 0 : index
    %c0_107 = arith.constant 0 : index
    %395 = vector.load %arg13[%c0_106, %c0_107] : memref<1x32xf32, #tpu.memory_space<vmem>>, vector<1x32xf32>
    %396 = vector.broadcast %395 : vector<1x32xf32> to vector<2x32xf32>
    %397 = arith.addf %394, %396 : vector<2x32xf32>
    %c0_108 = arith.constant 0 : index
    %c0_109 = arith.constant 0 : index
    %398 = vector.load %arg14[%c0_108, %c0_109] : memref<8x96xf32, #tpu.memory_space<vmem>>, vector<8x96xf32>
    %cst_110 = arith.constant dense<0.000000e+00> : vector<16x96xf32>
    %399 = tpu.matmul %8, %398, %cst_110 {dimension_numbers = #tpu.dot_dimension_numbers<[1], [0], [0], [1], [0, 0, 1, 1], [], []>} : vector<16x8xf32>, vector<8x96xf32>, vector<16x96xf32> -> vector<16x96xf32>
    %c0_111 = arith.constant 0 : index
    %c0_112 = arith.constant 0 : index
    %400 = vector.load %arg15[%c0_111, %c0_112] : memref<16x96xf32, #tpu.memory_space<vmem>>, vector<16x96xf32>
    %cst_113 = arith.constant dense<0.000000e+00> : vector<2x96xf32>
    %401 = tpu.matmul %374, %400, %cst_113 {dimension_numbers = #tpu.dot_dimension_numbers<[1], [0], [0], [1], [0, 0, 1, 1], [], []>} : vector<2x16xf32>, vector<16x96xf32>, vector<2x96xf32> -> vector<2x96xf32>
    %c0_114 = arith.constant 0 : index
    %c0_115 = arith.constant 0 : index
    %402 = vector.load %arg17[%c0_114, %c0_115] : memref<1x96xf32, #tpu.memory_space<vmem>>, vector<1x96xf32>
    %403 = vector.broadcast %402 : vector<1x96xf32> to vector<2x96xf32>
    %404 = arith.addf %401, %403 : vector<2x96xf32>
    %cst_116 = arith.constant 0.000000e+00 : f32
    %405 = vector.broadcast %cst_116 : f32 to vector<1x1xf32>
    %cst_117 = arith.constant 0.000000e+00 : f32
    %406 = vector.broadcast %cst_117 : f32 to vector<1x1xf32>
    %407 = vector.extract_strided_slice %399 {offsets = [0, 0], sizes = [2, 96], strides = [1, 1]} : vector<16x96xf32> to vector<2x96xf32>
    %408 = arith.addf %407, %404 : vector<2x96xf32>
    %c0_118 = arith.constant 0 : index
    %c0_119 = arith.constant 0 : index
    %409 = vector.load %arg16[%c0_118, %c0_119] : memref<32x96xf32, #tpu.memory_space<vmem>>, vector<32x96xf32>
    %cst_120 = arith.constant dense<0.000000e+00> : vector<2x96xf32>
    %410 = tpu.matmul %397, %409, %cst_120 {dimension_numbers = #tpu.dot_dimension_numbers<[1], [0], [0], [1], [0, 0, 1, 1], [], []>} : vector<2x32xf32>, vector<32x96xf32>, vector<2x96xf32> -> vector<2x96xf32>
    %c0_121 = arith.constant 0 : index
    %c0_122 = arith.constant 0 : index
    %411 = vector.load %arg18[%c0_121, %c0_122] : memref<1x96xf32, #tpu.memory_space<vmem>>, vector<1x96xf32>
    %412 = vector.broadcast %411 : vector<1x96xf32> to vector<2x96xf32>
    %413 = arith.addf %410, %412 : vector<2x96xf32>
    %414 = vector.extract_strided_slice %408 {offsets = [0, 0], sizes = [2, 32], strides = [1, 1]} : vector<2x96xf32> to vector<2x32xf32>
    %415 = vector.extract_strided_slice %413 {offsets = [0, 0], sizes = [2, 32], strides = [1, 1]} : vector<2x96xf32> to vector<2x32xf32>
    %416 = arith.addf %414, %415 : vector<2x32xf32>
    %417 = arith.negf %416 : vector<2x32xf32>
    %418 = math.exp %417 : vector<2x32xf32>
    %cst_123 = arith.constant 1.000000e+00 : f32
    %419 = vector.broadcast %cst_123 : f32 to vector<2x32xf32>
    %420 = arith.addf %419, %418 : vector<2x32xf32>
    %421 = arith.divf %419, %420 : vector<2x32xf32>
    %422 = vector.extract_strided_slice %408 {offsets = [0, 32], sizes = [2, 32], strides = [1, 1]} : vector<2x96xf32> to vector<2x32xf32>
    %423 = vector.extract_strided_slice %413 {offsets = [0, 32], sizes = [2, 32], strides = [1, 1]} : vector<2x96xf32> to vector<2x32xf32>
    %424 = arith.addf %422, %423 : vector<2x32xf32>
    %425 = arith.negf %424 : vector<2x32xf32>
    %426 = math.exp %425 : vector<2x32xf32>
    %cst_124 = arith.constant 1.000000e+00 : f32
    %427 = vector.broadcast %cst_124 : f32 to vector<2x32xf32>
    %428 = arith.addf %427, %426 : vector<2x32xf32>
    %429 = arith.divf %427, %428 : vector<2x32xf32>
    %430 = vector.extract_strided_slice %408 {offsets = [0, 64], sizes = [2, 32], strides = [1, 1]} : vector<2x96xf32> to vector<2x32xf32>
    %431 = vector.extract_strided_slice %413 {offsets = [0, 64], sizes = [2, 32], strides = [1, 1]} : vector<2x96xf32> to vector<2x32xf32>
    %432 = arith.mulf %421, %431 : vector<2x32xf32>
    %433 = arith.addf %430, %432 : vector<2x32xf32>
    %434 = math.tanh %433 : vector<2x32xf32>
    %cst_125 = arith.constant 1.000000e+00 : f32
    %435 = vector.broadcast %cst_125 : f32 to vector<2x32xf32>
    %436 = arith.subf %435, %429 : vector<2x32xf32>
    %437 = arith.mulf %436, %434 : vector<2x32xf32>
    %438 = arith.mulf %429, %397 : vector<2x32xf32>
    %439 = arith.addf %437, %438 : vector<2x32xf32>
    %c0_126 = arith.constant 0 : index
    %c0_127 = arith.constant 0 : index
    %440 = vector.load %arg19[%c0_126, %c0_127] : memref<32x16xf32, #tpu.memory_space<vmem>>, vector<32x16xf32>
    %cst_128 = arith.constant dense<0.000000e+00> : vector<2x16xf32>
    %441 = tpu.matmul %439, %440, %cst_128 {dimension_numbers = #tpu.dot_dimension_numbers<[1], [0], [0], [1], [0, 0, 1, 1], [], []>} : vector<2x32xf32>, vector<32x16xf32>, vector<2x16xf32> -> vector<2x16xf32>
    %c0_129 = arith.constant 0 : index
    %c0_130 = arith.constant 0 : index
    %442 = vector.load %arg20[%c0_129, %c0_130] : memref<1x16xf32, #tpu.memory_space<vmem>>, vector<1x16xf32>
    %443 = vector.broadcast %442 : vector<1x16xf32> to vector<2x16xf32>
    %444 = arith.addf %441, %443 : vector<2x16xf32>
    %445 = vector.extract_strided_slice %0 {offsets = [2, 0], sizes = [2, 1], strides = [1, 1]} : vector<16x1xi32> to vector<2x1xi32>
    %446 = vector.extract_strided_slice %6 {offsets = [2, 0], sizes = [2, 16], strides = [1, 1]} : vector<16x16xf32> to vector<2x16xf32>
    %cst_131 = arith.constant dense<0xFF800000> : vector<2xf32>
    %447 = vector.multi_reduction <maximumf>, %444, %cst_131 [1] : vector<2x16xf32> to vector<2xf32>
    %448 = vector.shape_cast %447 : vector<2xf32> to vector<2x1xf32>
    %449 = vector.broadcast %448 : vector<2x1xf32> to vector<2x16xf32>
    %450 = arith.subf %444, %449 : vector<2x16xf32>
    %451 = math.exp %450 : vector<2x16xf32>
    %cst_132 = arith.constant dense<0.000000e+00> : vector<2xf32>
    %452 = vector.multi_reduction <add>, %451, %cst_132 [1] : vector<2x16xf32> to vector<2xf32>
    %453 = vector.shape_cast %452 : vector<2xf32> to vector<2x1xf32>
    %454 = math.log %453 : vector<2x1xf32>
    %455 = arith.addf %448, %454 : vector<2x1xf32>
    %456 = arith.mulf %444, %446 : vector<2x16xf32>
    %cst_133 = arith.constant dense<0.000000e+00> : vector<2xf32>
    %457 = vector.multi_reduction <add>, %456, %cst_133 [1] : vector<2x16xf32> to vector<2xf32>
    %458 = vector.shape_cast %457 : vector<2xf32> to vector<2x1xf32>
    %c0_i32_134 = arith.constant 0 : i32
    %459 = vector.broadcast %c0_i32_134 : i32 to vector<2x1xi32>
    %460 = arith.cmpi ne, %445, %459 : vector<2x1xi32>
    %461 = arith.extui %460 : vector<2x1xi1> to vector<2x1xi32>
    %462 = arith.sitofp %461 : vector<2x1xi32> to vector<2x1xf32>
    %463 = arith.subf %455, %458 : vector<2x1xf32>
    %464 = arith.mulf %463, %462 : vector<2x1xf32>
    %465 = vector.shape_cast %464 : vector<2x1xf32> to vector<1x2x1xf32>
    %cst_135 = arith.constant dense<0.000000e+00> : vector<1xf32>
    %466 = vector.multi_reduction <add>, %465, %cst_135 [1, 2] : vector<1x2x1xf32> to vector<1xf32>
    %467 = vector.shape_cast %466 : vector<1xf32> to vector<1x1x1xf32>
    %468 = vector.extract %467[0, 0, 0] : f32 from vector<1x1x1xf32>
    %469 = vector.broadcast %468 : f32 to vector<1x1xf32>
    %470 = arith.addf %405, %469 : vector<1x1xf32>
    %471 = vector.shape_cast %462 : vector<2x1xf32> to vector<1x2x1xf32>
    %cst_136 = arith.constant dense<0.000000e+00> : vector<1xf32>
    %472 = vector.multi_reduction <add>, %471, %cst_136 [1, 2] : vector<1x2x1xf32> to vector<1xf32>
    %473 = vector.shape_cast %472 : vector<1xf32> to vector<1x1x1xf32>
    %474 = vector.extract %473[0, 0, 0] : f32 from vector<1x1x1xf32>
    %475 = vector.broadcast %474 : f32 to vector<1x1xf32>
    %476 = arith.addf %406, %475 : vector<1x1xf32>
    %477 = vector.extract_strided_slice %399 {offsets = [2, 0], sizes = [2, 96], strides = [1, 1]} : vector<16x96xf32> to vector<2x96xf32>
    %478 = arith.addf %477, %404 : vector<2x96xf32>
    %c0_137 = arith.constant 0 : index
    %c0_138 = arith.constant 0 : index
    %479 = vector.load %arg16[%c0_137, %c0_138] : memref<32x96xf32, #tpu.memory_space<vmem>>, vector<32x96xf32>
    %cst_139 = arith.constant dense<0.000000e+00> : vector<2x96xf32>
    %480 = tpu.matmul %439, %479, %cst_139 {dimension_numbers = #tpu.dot_dimension_numbers<[1], [0], [0], [1], [0, 0, 1, 1], [], []>} : vector<2x32xf32>, vector<32x96xf32>, vector<2x96xf32> -> vector<2x96xf32>
    %c0_140 = arith.constant 0 : index
    %c0_141 = arith.constant 0 : index
    %481 = vector.load %arg18[%c0_140, %c0_141] : memref<1x96xf32, #tpu.memory_space<vmem>>, vector<1x96xf32>
    %482 = vector.broadcast %481 : vector<1x96xf32> to vector<2x96xf32>
    %483 = arith.addf %480, %482 : vector<2x96xf32>
    %484 = vector.extract_strided_slice %478 {offsets = [0, 0], sizes = [2, 32], strides = [1, 1]} : vector<2x96xf32> to vector<2x32xf32>
    %485 = vector.extract_strided_slice %483 {offsets = [0, 0], sizes = [2, 32], strides = [1, 1]} : vector<2x96xf32> to vector<2x32xf32>
    %486 = arith.addf %484, %485 : vector<2x32xf32>
    %487 = arith.negf %486 : vector<2x32xf32>
    %488 = math.exp %487 : vector<2x32xf32>
    %cst_142 = arith.constant 1.000000e+00 : f32
    %489 = vector.broadcast %cst_142 : f32 to vector<2x32xf32>
    %490 = arith.addf %489, %488 : vector<2x32xf32>
    %491 = arith.divf %489, %490 : vector<2x32xf32>
    %492 = vector.extract_strided_slice %478 {offsets = [0, 32], sizes = [2, 32], strides = [1, 1]} : vector<2x96xf32> to vector<2x32xf32>
    %493 = vector.extract_strided_slice %483 {offsets = [0, 32], sizes = [2, 32], strides = [1, 1]} : vector<2x96xf32> to vector<2x32xf32>
    %494 = arith.addf %492, %493 : vector<2x32xf32>
    %495 = arith.negf %494 : vector<2x32xf32>
    %496 = math.exp %495 : vector<2x32xf32>
    %cst_143 = arith.constant 1.000000e+00 : f32
    %497 = vector.broadcast %cst_143 : f32 to vector<2x32xf32>
    %498 = arith.addf %497, %496 : vector<2x32xf32>
    %499 = arith.divf %497, %498 : vector<2x32xf32>
    %500 = vector.extract_strided_slice %478 {offsets = [0, 64], sizes = [2, 32], strides = [1, 1]} : vector<2x96xf32> to vector<2x32xf32>
    %501 = vector.extract_strided_slice %483 {offsets = [0, 64], sizes = [2, 32], strides = [1, 1]} : vector<2x96xf32> to vector<2x32xf32>
    %502 = arith.mulf %491, %501 : vector<2x32xf32>
    %503 = arith.addf %500, %502 : vector<2x32xf32>
    %504 = math.tanh %503 : vector<2x32xf32>
    %cst_144 = arith.constant 1.000000e+00 : f32
    %505 = vector.broadcast %cst_144 : f32 to vector<2x32xf32>
    %506 = arith.subf %505, %499 : vector<2x32xf32>
    %507 = arith.mulf %506, %504 : vector<2x32xf32>
    %508 = arith.mulf %499, %439 : vector<2x32xf32>
    %509 = arith.addf %507, %508 : vector<2x32xf32>
    %c0_145 = arith.constant 0 : index
    %c0_146 = arith.constant 0 : index
    %510 = vector.load %arg19[%c0_145, %c0_146] : memref<32x16xf32, #tpu.memory_space<vmem>>, vector<32x16xf32>
    %cst_147 = arith.constant dense<0.000000e+00> : vector<2x16xf32>
    %511 = tpu.matmul %509, %510, %cst_147 {dimension_numbers = #tpu.dot_dimension_numbers<[1], [0], [0], [1], [0, 0, 1, 1], [], []>} : vector<2x32xf32>, vector<32x16xf32>, vector<2x16xf32> -> vector<2x16xf32>
    %c0_148 = arith.constant 0 : index
    %c0_149 = arith.constant 0 : index
    %512 = vector.load %arg20[%c0_148, %c0_149] : memref<1x16xf32, #tpu.memory_space<vmem>>, vector<1x16xf32>
    %513 = vector.broadcast %512 : vector<1x16xf32> to vector<2x16xf32>
    %514 = arith.addf %511, %513 : vector<2x16xf32>
    %515 = vector.extract_strided_slice %0 {offsets = [4, 0], sizes = [2, 1], strides = [1, 1]} : vector<16x1xi32> to vector<2x1xi32>
    %516 = vector.extract_strided_slice %6 {offsets = [4, 0], sizes = [2, 16], strides = [1, 1]} : vector<16x16xf32> to vector<2x16xf32>
    %cst_150 = arith.constant dense<0xFF800000> : vector<2xf32>
    %517 = vector.multi_reduction <maximumf>, %514, %cst_150 [1] : vector<2x16xf32> to vector<2xf32>
    %518 = vector.shape_cast %517 : vector<2xf32> to vector<2x1xf32>
    %519 = vector.broadcast %518 : vector<2x1xf32> to vector<2x16xf32>
    %520 = arith.subf %514, %519 : vector<2x16xf32>
    %521 = math.exp %520 : vector<2x16xf32>
    %cst_151 = arith.constant dense<0.000000e+00> : vector<2xf32>
    %522 = vector.multi_reduction <add>, %521, %cst_151 [1] : vector<2x16xf32> to vector<2xf32>
    %523 = vector.shape_cast %522 : vector<2xf32> to vector<2x1xf32>
    %524 = math.log %523 : vector<2x1xf32>
    %525 = arith.addf %518, %524 : vector<2x1xf32>
    %526 = arith.mulf %514, %516 : vector<2x16xf32>
    %cst_152 = arith.constant dense<0.000000e+00> : vector<2xf32>
    %527 = vector.multi_reduction <add>, %526, %cst_152 [1] : vector<2x16xf32> to vector<2xf32>
    %528 = vector.shape_cast %527 : vector<2xf32> to vector<2x1xf32>
    %c0_i32_153 = arith.constant 0 : i32
    %529 = vector.broadcast %c0_i32_153 : i32 to vector<2x1xi32>
    %530 = arith.cmpi ne, %515, %529 : vector<2x1xi32>
    %531 = arith.extui %530 : vector<2x1xi1> to vector<2x1xi32>
    %532 = arith.sitofp %531 : vector<2x1xi32> to vector<2x1xf32>
    %533 = arith.subf %525, %528 : vector<2x1xf32>
    %534 = arith.mulf %533, %532 : vector<2x1xf32>
    %535 = vector.shape_cast %534 : vector<2x1xf32> to vector<1x2x1xf32>
    %cst_154 = arith.constant dense<0.000000e+00> : vector<1xf32>
    %536 = vector.multi_reduction <add>, %535, %cst_154 [1, 2] : vector<1x2x1xf32> to vector<1xf32>
    %537 = vector.shape_cast %536 : vector<1xf32> to vector<1x1x1xf32>
    %538 = vector.extract %537[0, 0, 0] : f32 from vector<1x1x1xf32>
    %539 = vector.broadcast %538 : f32 to vector<1x1xf32>
    %540 = arith.addf %470, %539 : vector<1x1xf32>
    %541 = vector.shape_cast %532 : vector<2x1xf32> to vector<1x2x1xf32>
    %cst_155 = arith.constant dense<0.000000e+00> : vector<1xf32>
    %542 = vector.multi_reduction <add>, %541, %cst_155 [1, 2] : vector<1x2x1xf32> to vector<1xf32>
    %543 = vector.shape_cast %542 : vector<1xf32> to vector<1x1x1xf32>
    %544 = vector.extract %543[0, 0, 0] : f32 from vector<1x1x1xf32>
    %545 = vector.broadcast %544 : f32 to vector<1x1xf32>
    %546 = arith.addf %476, %545 : vector<1x1xf32>
    %547 = vector.extract_strided_slice %399 {offsets = [4, 0], sizes = [2, 96], strides = [1, 1]} : vector<16x96xf32> to vector<2x96xf32>
    %548 = arith.addf %547, %404 : vector<2x96xf32>
    %c0_156 = arith.constant 0 : index
    %c0_157 = arith.constant 0 : index
    %549 = vector.load %arg16[%c0_156, %c0_157] : memref<32x96xf32, #tpu.memory_space<vmem>>, vector<32x96xf32>
    %cst_158 = arith.constant dense<0.000000e+00> : vector<2x96xf32>
    %550 = tpu.matmul %509, %549, %cst_158 {dimension_numbers = #tpu.dot_dimension_numbers<[1], [0], [0], [1], [0, 0, 1, 1], [], []>} : vector<2x32xf32>, vector<32x96xf32>, vector<2x96xf32> -> vector<2x96xf32>
    %c0_159 = arith.constant 0 : index
    %c0_160 = arith.constant 0 : index
    %551 = vector.load %arg18[%c0_159, %c0_160] : memref<1x96xf32, #tpu.memory_space<vmem>>, vector<1x96xf32>
    %552 = vector.broadcast %551 : vector<1x96xf32> to vector<2x96xf32>
    %553 = arith.addf %550, %552 : vector<2x96xf32>
    %554 = vector.extract_strided_slice %548 {offsets = [0, 0], sizes = [2, 32], strides = [1, 1]} : vector<2x96xf32> to vector<2x32xf32>
    %555 = vector.extract_strided_slice %553 {offsets = [0, 0], sizes = [2, 32], strides = [1, 1]} : vector<2x96xf32> to vector<2x32xf32>
    %556 = arith.addf %554, %555 : vector<2x32xf32>
    %557 = arith.negf %556 : vector<2x32xf32>
    %558 = math.exp %557 : vector<2x32xf32>
    %cst_161 = arith.constant 1.000000e+00 : f32
    %559 = vector.broadcast %cst_161 : f32 to vector<2x32xf32>
    %560 = arith.addf %559, %558 : vector<2x32xf32>
    %561 = arith.divf %559, %560 : vector<2x32xf32>
    %562 = vector.extract_strided_slice %548 {offsets = [0, 32], sizes = [2, 32], strides = [1, 1]} : vector<2x96xf32> to vector<2x32xf32>
    %563 = vector.extract_strided_slice %553 {offsets = [0, 32], sizes = [2, 32], strides = [1, 1]} : vector<2x96xf32> to vector<2x32xf32>
    %564 = arith.addf %562, %563 : vector<2x32xf32>
    %565 = arith.negf %564 : vector<2x32xf32>
    %566 = math.exp %565 : vector<2x32xf32>
    %cst_162 = arith.constant 1.000000e+00 : f32
    %567 = vector.broadcast %cst_162 : f32 to vector<2x32xf32>
    %568 = arith.addf %567, %566 : vector<2x32xf32>
    %569 = arith.divf %567, %568 : vector<2x32xf32>
    %570 = vector.extract_strided_slice %548 {offsets = [0, 64], sizes = [2, 32], strides = [1, 1]} : vector<2x96xf32> to vector<2x32xf32>
    %571 = vector.extract_strided_slice %553 {offsets = [0, 64], sizes = [2, 32], strides = [1, 1]} : vector<2x96xf32> to vector<2x32xf32>
    %572 = arith.mulf %561, %571 : vector<2x32xf32>
    %573 = arith.addf %570, %572 : vector<2x32xf32>
    %574 = math.tanh %573 : vector<2x32xf32>
    %cst_163 = arith.constant 1.000000e+00 : f32
    %575 = vector.broadcast %cst_163 : f32 to vector<2x32xf32>
    %576 = arith.subf %575, %569 : vector<2x32xf32>
    %577 = arith.mulf %576, %574 : vector<2x32xf32>
    %578 = arith.mulf %569, %509 : vector<2x32xf32>
    %579 = arith.addf %577, %578 : vector<2x32xf32>
    %c0_164 = arith.constant 0 : index
    %c0_165 = arith.constant 0 : index
    %580 = vector.load %arg19[%c0_164, %c0_165] : memref<32x16xf32, #tpu.memory_space<vmem>>, vector<32x16xf32>
    %cst_166 = arith.constant dense<0.000000e+00> : vector<2x16xf32>
    %581 = tpu.matmul %579, %580, %cst_166 {dimension_numbers = #tpu.dot_dimension_numbers<[1], [0], [0], [1], [0, 0, 1, 1], [], []>} : vector<2x32xf32>, vector<32x16xf32>, vector<2x16xf32> -> vector<2x16xf32>
    %c0_167 = arith.constant 0 : index
    %c0_168 = arith.constant 0 : index
    %582 = vector.load %arg20[%c0_167, %c0_168] : memref<1x16xf32, #tpu.memory_space<vmem>>, vector<1x16xf32>
    %583 = vector.broadcast %582 : vector<1x16xf32> to vector<2x16xf32>
    %584 = arith.addf %581, %583 : vector<2x16xf32>
    %585 = vector.extract_strided_slice %0 {offsets = [6, 0], sizes = [2, 1], strides = [1, 1]} : vector<16x1xi32> to vector<2x1xi32>
    %586 = vector.extract_strided_slice %6 {offsets = [6, 0], sizes = [2, 16], strides = [1, 1]} : vector<16x16xf32> to vector<2x16xf32>
    %cst_169 = arith.constant dense<0xFF800000> : vector<2xf32>
    %587 = vector.multi_reduction <maximumf>, %584, %cst_169 [1] : vector<2x16xf32> to vector<2xf32>
    %588 = vector.shape_cast %587 : vector<2xf32> to vector<2x1xf32>
    %589 = vector.broadcast %588 : vector<2x1xf32> to vector<2x16xf32>
    %590 = arith.subf %584, %589 : vector<2x16xf32>
    %591 = math.exp %590 : vector<2x16xf32>
    %cst_170 = arith.constant dense<0.000000e+00> : vector<2xf32>
    %592 = vector.multi_reduction <add>, %591, %cst_170 [1] : vector<2x16xf32> to vector<2xf32>
    %593 = vector.shape_cast %592 : vector<2xf32> to vector<2x1xf32>
    %594 = math.log %593 : vector<2x1xf32>
    %595 = arith.addf %588, %594 : vector<2x1xf32>
    %596 = arith.mulf %584, %586 : vector<2x16xf32>
    %cst_171 = arith.constant dense<0.000000e+00> : vector<2xf32>
    %597 = vector.multi_reduction <add>, %596, %cst_171 [1] : vector<2x16xf32> to vector<2xf32>
    %598 = vector.shape_cast %597 : vector<2xf32> to vector<2x1xf32>
    %c0_i32_172 = arith.constant 0 : i32
    %599 = vector.broadcast %c0_i32_172 : i32 to vector<2x1xi32>
    %600 = arith.cmpi ne, %585, %599 : vector<2x1xi32>
    %601 = arith.extui %600 : vector<2x1xi1> to vector<2x1xi32>
    %602 = arith.sitofp %601 : vector<2x1xi32> to vector<2x1xf32>
    %603 = arith.subf %595, %598 : vector<2x1xf32>
    %604 = arith.mulf %603, %602 : vector<2x1xf32>
    %605 = vector.shape_cast %604 : vector<2x1xf32> to vector<1x2x1xf32>
    %cst_173 = arith.constant dense<0.000000e+00> : vector<1xf32>
    %606 = vector.multi_reduction <add>, %605, %cst_173 [1, 2] : vector<1x2x1xf32> to vector<1xf32>
    %607 = vector.shape_cast %606 : vector<1xf32> to vector<1x1x1xf32>
    %608 = vector.extract %607[0, 0, 0] : f32 from vector<1x1x1xf32>
    %609 = vector.broadcast %608 : f32 to vector<1x1xf32>
    %610 = arith.addf %540, %609 : vector<1x1xf32>
    %611 = vector.shape_cast %602 : vector<2x1xf32> to vector<1x2x1xf32>
    %cst_174 = arith.constant dense<0.000000e+00> : vector<1xf32>
    %612 = vector.multi_reduction <add>, %611, %cst_174 [1, 2] : vector<1x2x1xf32> to vector<1xf32>
    %613 = vector.shape_cast %612 : vector<1xf32> to vector<1x1x1xf32>
    %614 = vector.extract %613[0, 0, 0] : f32 from vector<1x1x1xf32>
    %615 = vector.broadcast %614 : f32 to vector<1x1xf32>
    %616 = arith.addf %546, %615 : vector<1x1xf32>
    %617 = vector.extract_strided_slice %399 {offsets = [6, 0], sizes = [2, 96], strides = [1, 1]} : vector<16x96xf32> to vector<2x96xf32>
    %618 = arith.addf %617, %404 : vector<2x96xf32>
    %c0_175 = arith.constant 0 : index
    %c0_176 = arith.constant 0 : index
    %619 = vector.load %arg16[%c0_175, %c0_176] : memref<32x96xf32, #tpu.memory_space<vmem>>, vector<32x96xf32>
    %cst_177 = arith.constant dense<0.000000e+00> : vector<2x96xf32>
    %620 = tpu.matmul %579, %619, %cst_177 {dimension_numbers = #tpu.dot_dimension_numbers<[1], [0], [0], [1], [0, 0, 1, 1], [], []>} : vector<2x32xf32>, vector<32x96xf32>, vector<2x96xf32> -> vector<2x96xf32>
    %c0_178 = arith.constant 0 : index
    %c0_179 = arith.constant 0 : index
    %621 = vector.load %arg18[%c0_178, %c0_179] : memref<1x96xf32, #tpu.memory_space<vmem>>, vector<1x96xf32>
    %622 = vector.broadcast %621 : vector<1x96xf32> to vector<2x96xf32>
    %623 = arith.addf %620, %622 : vector<2x96xf32>
    %624 = vector.extract_strided_slice %618 {offsets = [0, 0], sizes = [2, 32], strides = [1, 1]} : vector<2x96xf32> to vector<2x32xf32>
    %625 = vector.extract_strided_slice %623 {offsets = [0, 0], sizes = [2, 32], strides = [1, 1]} : vector<2x96xf32> to vector<2x32xf32>
    %626 = arith.addf %624, %625 : vector<2x32xf32>
    %627 = arith.negf %626 : vector<2x32xf32>
    %628 = math.exp %627 : vector<2x32xf32>
    %cst_180 = arith.constant 1.000000e+00 : f32
    %629 = vector.broadcast %cst_180 : f32 to vector<2x32xf32>
    %630 = arith.addf %629, %628 : vector<2x32xf32>
    %631 = arith.divf %629, %630 : vector<2x32xf32>
    %632 = vector.extract_strided_slice %618 {offsets = [0, 32], sizes = [2, 32], strides = [1, 1]} : vector<2x96xf32> to vector<2x32xf32>
    %633 = vector.extract_strided_slice %623 {offsets = [0, 32], sizes = [2, 32], strides = [1, 1]} : vector<2x96xf32> to vector<2x32xf32>
    %634 = arith.addf %632, %633 : vector<2x32xf32>
    %635 = arith.negf %634 : vector<2x32xf32>
    %636 = math.exp %635 : vector<2x32xf32>
    %cst_181 = arith.constant 1.000000e+00 : f32
    %637 = vector.broadcast %cst_181 : f32 to vector<2x32xf32>
    %638 = arith.addf %637, %636 : vector<2x32xf32>
    %639 = arith.divf %637, %638 : vector<2x32xf32>
    %640 = vector.extract_strided_slice %618 {offsets = [0, 64], sizes = [2, 32], strides = [1, 1]} : vector<2x96xf32> to vector<2x32xf32>
    %641 = vector.extract_strided_slice %623 {offsets = [0, 64], sizes = [2, 32], strides = [1, 1]} : vector<2x96xf32> to vector<2x32xf32>
    %642 = arith.mulf %631, %641 : vector<2x32xf32>
    %643 = arith.addf %640, %642 : vector<2x32xf32>
    %644 = math.tanh %643 : vector<2x32xf32>
    %cst_182 = arith.constant 1.000000e+00 : f32
    %645 = vector.broadcast %cst_182 : f32 to vector<2x32xf32>
    %646 = arith.subf %645, %639 : vector<2x32xf32>
    %647 = arith.mulf %646, %644 : vector<2x32xf32>
    %648 = arith.mulf %639, %579 : vector<2x32xf32>
    %649 = arith.addf %647, %648 : vector<2x32xf32>
    %c0_183 = arith.constant 0 : index
    %c0_184 = arith.constant 0 : index
    %650 = vector.load %arg19[%c0_183, %c0_184] : memref<32x16xf32, #tpu.memory_space<vmem>>, vector<32x16xf32>
    %cst_185 = arith.constant dense<0.000000e+00> : vector<2x16xf32>
    %651 = tpu.matmul %649, %650, %cst_185 {dimension_numbers = #tpu.dot_dimension_numbers<[1], [0], [0], [1], [0, 0, 1, 1], [], []>} : vector<2x32xf32>, vector<32x16xf32>, vector<2x16xf32> -> vector<2x16xf32>
    %c0_186 = arith.constant 0 : index
    %c0_187 = arith.constant 0 : index
    %652 = vector.load %arg20[%c0_186, %c0_187] : memref<1x16xf32, #tpu.memory_space<vmem>>, vector<1x16xf32>
    %653 = vector.broadcast %652 : vector<1x16xf32> to vector<2x16xf32>
    %654 = arith.addf %651, %653 : vector<2x16xf32>
    %655 = vector.extract_strided_slice %0 {offsets = [8, 0], sizes = [2, 1], strides = [1, 1]} : vector<16x1xi32> to vector<2x1xi32>
    %656 = vector.extract_strided_slice %6 {offsets = [8, 0], sizes = [2, 16], strides = [1, 1]} : vector<16x16xf32> to vector<2x16xf32>
    %cst_188 = arith.constant dense<0xFF800000> : vector<2xf32>
    %657 = vector.multi_reduction <maximumf>, %654, %cst_188 [1] : vector<2x16xf32> to vector<2xf32>
    %658 = vector.shape_cast %657 : vector<2xf32> to vector<2x1xf32>
    %659 = vector.broadcast %658 : vector<2x1xf32> to vector<2x16xf32>
    %660 = arith.subf %654, %659 : vector<2x16xf32>
    %661 = math.exp %660 : vector<2x16xf32>
    %cst_189 = arith.constant dense<0.000000e+00> : vector<2xf32>
    %662 = vector.multi_reduction <add>, %661, %cst_189 [1] : vector<2x16xf32> to vector<2xf32>
    %663 = vector.shape_cast %662 : vector<2xf32> to vector<2x1xf32>
    %664 = math.log %663 : vector<2x1xf32>
    %665 = arith.addf %658, %664 : vector<2x1xf32>
    %666 = arith.mulf %654, %656 : vector<2x16xf32>
    %cst_190 = arith.constant dense<0.000000e+00> : vector<2xf32>
    %667 = vector.multi_reduction <add>, %666, %cst_190 [1] : vector<2x16xf32> to vector<2xf32>
    %668 = vector.shape_cast %667 : vector<2xf32> to vector<2x1xf32>
    %c0_i32_191 = arith.constant 0 : i32
    %669 = vector.broadcast %c0_i32_191 : i32 to vector<2x1xi32>
    %670 = arith.cmpi ne, %655, %669 : vector<2x1xi32>
    %671 = arith.extui %670 : vector<2x1xi1> to vector<2x1xi32>
    %672 = arith.sitofp %671 : vector<2x1xi32> to vector<2x1xf32>
    %673 = arith.subf %665, %668 : vector<2x1xf32>
    %674 = arith.mulf %673, %672 : vector<2x1xf32>
    %675 = vector.shape_cast %674 : vector<2x1xf32> to vector<1x2x1xf32>
    %cst_192 = arith.constant dense<0.000000e+00> : vector<1xf32>
    %676 = vector.multi_reduction <add>, %675, %cst_192 [1, 2] : vector<1x2x1xf32> to vector<1xf32>
    %677 = vector.shape_cast %676 : vector<1xf32> to vector<1x1x1xf32>
    %678 = vector.extract %677[0, 0, 0] : f32 from vector<1x1x1xf32>
    %679 = vector.broadcast %678 : f32 to vector<1x1xf32>
    %680 = arith.addf %610, %679 : vector<1x1xf32>
    %681 = vector.shape_cast %672 : vector<2x1xf32> to vector<1x2x1xf32>
    %cst_193 = arith.constant dense<0.000000e+00> : vector<1xf32>
    %682 = vector.multi_reduction <add>, %681, %cst_193 [1, 2] : vector<1x2x1xf32> to vector<1xf32>
    %683 = vector.shape_cast %682 : vector<1xf32> to vector<1x1x1xf32>
    %684 = vector.extract %683[0, 0, 0] : f32 from vector<1x1x1xf32>
    %685 = vector.broadcast %684 : f32 to vector<1x1xf32>
    %686 = arith.addf %616, %685 : vector<1x1xf32>
    %687 = vector.extract_strided_slice %399 {offsets = [8, 0], sizes = [2, 96], strides = [1, 1]} : vector<16x96xf32> to vector<2x96xf32>
    %688 = arith.addf %687, %404 : vector<2x96xf32>
    %c0_194 = arith.constant 0 : index
    %c0_195 = arith.constant 0 : index
    %689 = vector.load %arg16[%c0_194, %c0_195] : memref<32x96xf32, #tpu.memory_space<vmem>>, vector<32x96xf32>
    %cst_196 = arith.constant dense<0.000000e+00> : vector<2x96xf32>
    %690 = tpu.matmul %649, %689, %cst_196 {dimension_numbers = #tpu.dot_dimension_numbers<[1], [0], [0], [1], [0, 0, 1, 1], [], []>} : vector<2x32xf32>, vector<32x96xf32>, vector<2x96xf32> -> vector<2x96xf32>
    %c0_197 = arith.constant 0 : index
    %c0_198 = arith.constant 0 : index
    %691 = vector.load %arg18[%c0_197, %c0_198] : memref<1x96xf32, #tpu.memory_space<vmem>>, vector<1x96xf32>
    %692 = vector.broadcast %691 : vector<1x96xf32> to vector<2x96xf32>
    %693 = arith.addf %690, %692 : vector<2x96xf32>
    %694 = vector.extract_strided_slice %688 {offsets = [0, 0], sizes = [2, 32], strides = [1, 1]} : vector<2x96xf32> to vector<2x32xf32>
    %695 = vector.extract_strided_slice %693 {offsets = [0, 0], sizes = [2, 32], strides = [1, 1]} : vector<2x96xf32> to vector<2x32xf32>
    %696 = arith.addf %694, %695 : vector<2x32xf32>
    %697 = arith.negf %696 : vector<2x32xf32>
    %698 = math.exp %697 : vector<2x32xf32>
    %cst_199 = arith.constant 1.000000e+00 : f32
    %699 = vector.broadcast %cst_199 : f32 to vector<2x32xf32>
    %700 = arith.addf %699, %698 : vector<2x32xf32>
    %701 = arith.divf %699, %700 : vector<2x32xf32>
    %702 = vector.extract_strided_slice %688 {offsets = [0, 32], sizes = [2, 32], strides = [1, 1]} : vector<2x96xf32> to vector<2x32xf32>
    %703 = vector.extract_strided_slice %693 {offsets = [0, 32], sizes = [2, 32], strides = [1, 1]} : vector<2x96xf32> to vector<2x32xf32>
    %704 = arith.addf %702, %703 : vector<2x32xf32>
    %705 = arith.negf %704 : vector<2x32xf32>
    %706 = math.exp %705 : vector<2x32xf32>
    %cst_200 = arith.constant 1.000000e+00 : f32
    %707 = vector.broadcast %cst_200 : f32 to vector<2x32xf32>
    %708 = arith.addf %707, %706 : vector<2x32xf32>
    %709 = arith.divf %707, %708 : vector<2x32xf32>
    %710 = vector.extract_strided_slice %688 {offsets = [0, 64], sizes = [2, 32], strides = [1, 1]} : vector<2x96xf32> to vector<2x32xf32>
    %711 = vector.extract_strided_slice %693 {offsets = [0, 64], sizes = [2, 32], strides = [1, 1]} : vector<2x96xf32> to vector<2x32xf32>
    %712 = arith.mulf %701, %711 : vector<2x32xf32>
    %713 = arith.addf %710, %712 : vector<2x32xf32>
    %714 = math.tanh %713 : vector<2x32xf32>
    %cst_201 = arith.constant 1.000000e+00 : f32
    %715 = vector.broadcast %cst_201 : f32 to vector<2x32xf32>
    %716 = arith.subf %715, %709 : vector<2x32xf32>
    %717 = arith.mulf %716, %714 : vector<2x32xf32>
    %718 = arith.mulf %709, %649 : vector<2x32xf32>
    %719 = arith.addf %717, %718 : vector<2x32xf32>
    %c0_202 = arith.constant 0 : index
    %c0_203 = arith.constant 0 : index
    %720 = vector.load %arg19[%c0_202, %c0_203] : memref<32x16xf32, #tpu.memory_space<vmem>>, vector<32x16xf32>
    %cst_204 = arith.constant dense<0.000000e+00> : vector<2x16xf32>
    %721 = tpu.matmul %719, %720, %cst_204 {dimension_numbers = #tpu.dot_dimension_numbers<[1], [0], [0], [1], [0, 0, 1, 1], [], []>} : vector<2x32xf32>, vector<32x16xf32>, vector<2x16xf32> -> vector<2x16xf32>
    %c0_205 = arith.constant 0 : index
    %c0_206 = arith.constant 0 : index
    %722 = vector.load %arg20[%c0_205, %c0_206] : memref<1x16xf32, #tpu.memory_space<vmem>>, vector<1x16xf32>
    %723 = vector.broadcast %722 : vector<1x16xf32> to vector<2x16xf32>
    %724 = arith.addf %721, %723 : vector<2x16xf32>
    %725 = vector.extract_strided_slice %0 {offsets = [10, 0], sizes = [2, 1], strides = [1, 1]} : vector<16x1xi32> to vector<2x1xi32>
    %726 = vector.extract_strided_slice %6 {offsets = [10, 0], sizes = [2, 16], strides = [1, 1]} : vector<16x16xf32> to vector<2x16xf32>
    %cst_207 = arith.constant dense<0xFF800000> : vector<2xf32>
    %727 = vector.multi_reduction <maximumf>, %724, %cst_207 [1] : vector<2x16xf32> to vector<2xf32>
    %728 = vector.shape_cast %727 : vector<2xf32> to vector<2x1xf32>
    %729 = vector.broadcast %728 : vector<2x1xf32> to vector<2x16xf32>
    %730 = arith.subf %724, %729 : vector<2x16xf32>
    %731 = math.exp %730 : vector<2x16xf32>
    %cst_208 = arith.constant dense<0.000000e+00> : vector<2xf32>
    %732 = vector.multi_reduction <add>, %731, %cst_208 [1] : vector<2x16xf32> to vector<2xf32>
    %733 = vector.shape_cast %732 : vector<2xf32> to vector<2x1xf32>
    %734 = math.log %733 : vector<2x1xf32>
    %735 = arith.addf %728, %734 : vector<2x1xf32>
    %736 = arith.mulf %724, %726 : vector<2x16xf32>
    %cst_209 = arith.constant dense<0.000000e+00> : vector<2xf32>
    %737 = vector.multi_reduction <add>, %736, %cst_209 [1] : vector<2x16xf32> to vector<2xf32>
    %738 = vector.shape_cast %737 : vector<2xf32> to vector<2x1xf32>
    %c0_i32_210 = arith.constant 0 : i32
    %739 = vector.broadcast %c0_i32_210 : i32 to vector<2x1xi32>
    %740 = arith.cmpi ne, %725, %739 : vector<2x1xi32>
    %741 = arith.extui %740 : vector<2x1xi1> to vector<2x1xi32>
    %742 = arith.sitofp %741 : vector<2x1xi32> to vector<2x1xf32>
    %743 = arith.subf %735, %738 : vector<2x1xf32>
    %744 = arith.mulf %743, %742 : vector<2x1xf32>
    %745 = vector.shape_cast %744 : vector<2x1xf32> to vector<1x2x1xf32>
    %cst_211 = arith.constant dense<0.000000e+00> : vector<1xf32>
    %746 = vector.multi_reduction <add>, %745, %cst_211 [1, 2] : vector<1x2x1xf32> to vector<1xf32>
    %747 = vector.shape_cast %746 : vector<1xf32> to vector<1x1x1xf32>
    %748 = vector.extract %747[0, 0, 0] : f32 from vector<1x1x1xf32>
    %749 = vector.broadcast %748 : f32 to vector<1x1xf32>
    %750 = arith.addf %680, %749 : vector<1x1xf32>
    %751 = vector.shape_cast %742 : vector<2x1xf32> to vector<1x2x1xf32>
    %cst_212 = arith.constant dense<0.000000e+00> : vector<1xf32>
    %752 = vector.multi_reduction <add>, %751, %cst_212 [1, 2] : vector<1x2x1xf32> to vector<1xf32>
    %753 = vector.shape_cast %752 : vector<1xf32> to vector<1x1x1xf32>
    %754 = vector.extract %753[0, 0, 0] : f32 from vector<1x1x1xf32>
    %755 = vector.broadcast %754 : f32 to vector<1x1xf32>
    %756 = arith.addf %686, %755 : vector<1x1xf32>
    %757 = vector.extract_strided_slice %399 {offsets = [10, 0], sizes = [2, 96], strides = [1, 1]} : vector<16x96xf32> to vector<2x96xf32>
    %758 = arith.addf %757, %404 : vector<2x96xf32>
    %c0_213 = arith.constant 0 : index
    %c0_214 = arith.constant 0 : index
    %759 = vector.load %arg16[%c0_213, %c0_214] : memref<32x96xf32, #tpu.memory_space<vmem>>, vector<32x96xf32>
    %cst_215 = arith.constant dense<0.000000e+00> : vector<2x96xf32>
    %760 = tpu.matmul %719, %759, %cst_215 {dimension_numbers = #tpu.dot_dimension_numbers<[1], [0], [0], [1], [0, 0, 1, 1], [], []>} : vector<2x32xf32>, vector<32x96xf32>, vector<2x96xf32> -> vector<2x96xf32>
    %c0_216 = arith.constant 0 : index
    %c0_217 = arith.constant 0 : index
    %761 = vector.load %arg18[%c0_216, %c0_217] : memref<1x96xf32, #tpu.memory_space<vmem>>, vector<1x96xf32>
    %762 = vector.broadcast %761 : vector<1x96xf32> to vector<2x96xf32>
    %763 = arith.addf %760, %762 : vector<2x96xf32>
    %764 = vector.extract_strided_slice %758 {offsets = [0, 0], sizes = [2, 32], strides = [1, 1]} : vector<2x96xf32> to vector<2x32xf32>
    %765 = vector.extract_strided_slice %763 {offsets = [0, 0], sizes = [2, 32], strides = [1, 1]} : vector<2x96xf32> to vector<2x32xf32>
    %766 = arith.addf %764, %765 : vector<2x32xf32>
    %767 = arith.negf %766 : vector<2x32xf32>
    %768 = math.exp %767 : vector<2x32xf32>
    %cst_218 = arith.constant 1.000000e+00 : f32
    %769 = vector.broadcast %cst_218 : f32 to vector<2x32xf32>
    %770 = arith.addf %769, %768 : vector<2x32xf32>
    %771 = arith.divf %769, %770 : vector<2x32xf32>
    %772 = vector.extract_strided_slice %758 {offsets = [0, 32], sizes = [2, 32], strides = [1, 1]} : vector<2x96xf32> to vector<2x32xf32>
    %773 = vector.extract_strided_slice %763 {offsets = [0, 32], sizes = [2, 32], strides = [1, 1]} : vector<2x96xf32> to vector<2x32xf32>
    %774 = arith.addf %772, %773 : vector<2x32xf32>
    %775 = arith.negf %774 : vector<2x32xf32>
    %776 = math.exp %775 : vector<2x32xf32>
    %cst_219 = arith.constant 1.000000e+00 : f32
    %777 = vector.broadcast %cst_219 : f32 to vector<2x32xf32>
    %778 = arith.addf %777, %776 : vector<2x32xf32>
    %779 = arith.divf %777, %778 : vector<2x32xf32>
    %780 = vector.extract_strided_slice %758 {offsets = [0, 64], sizes = [2, 32], strides = [1, 1]} : vector<2x96xf32> to vector<2x32xf32>
    %781 = vector.extract_strided_slice %763 {offsets = [0, 64], sizes = [2, 32], strides = [1, 1]} : vector<2x96xf32> to vector<2x32xf32>
    %782 = arith.mulf %771, %781 : vector<2x32xf32>
    %783 = arith.addf %780, %782 : vector<2x32xf32>
    %784 = math.tanh %783 : vector<2x32xf32>
    %cst_220 = arith.constant 1.000000e+00 : f32
    %785 = vector.broadcast %cst_220 : f32 to vector<2x32xf32>
    %786 = arith.subf %785, %779 : vector<2x32xf32>
    %787 = arith.mulf %786, %784 : vector<2x32xf32>
    %788 = arith.mulf %779, %719 : vector<2x32xf32>
    %789 = arith.addf %787, %788 : vector<2x32xf32>
    %c0_221 = arith.constant 0 : index
    %c0_222 = arith.constant 0 : index
    %790 = vector.load %arg19[%c0_221, %c0_222] : memref<32x16xf32, #tpu.memory_space<vmem>>, vector<32x16xf32>
    %cst_223 = arith.constant dense<0.000000e+00> : vector<2x16xf32>
    %791 = tpu.matmul %789, %790, %cst_223 {dimension_numbers = #tpu.dot_dimension_numbers<[1], [0], [0], [1], [0, 0, 1, 1], [], []>} : vector<2x32xf32>, vector<32x16xf32>, vector<2x16xf32> -> vector<2x16xf32>
    %c0_224 = arith.constant 0 : index
    %c0_225 = arith.constant 0 : index
    %792 = vector.load %arg20[%c0_224, %c0_225] : memref<1x16xf32, #tpu.memory_space<vmem>>, vector<1x16xf32>
    %793 = vector.broadcast %792 : vector<1x16xf32> to vector<2x16xf32>
    %794 = arith.addf %791, %793 : vector<2x16xf32>
    %795 = vector.extract_strided_slice %0 {offsets = [12, 0], sizes = [2, 1], strides = [1, 1]} : vector<16x1xi32> to vector<2x1xi32>
    %796 = vector.extract_strided_slice %6 {offsets = [12, 0], sizes = [2, 16], strides = [1, 1]} : vector<16x16xf32> to vector<2x16xf32>
    %cst_226 = arith.constant dense<0xFF800000> : vector<2xf32>
    %797 = vector.multi_reduction <maximumf>, %794, %cst_226 [1] : vector<2x16xf32> to vector<2xf32>
    %798 = vector.shape_cast %797 : vector<2xf32> to vector<2x1xf32>
    %799 = vector.broadcast %798 : vector<2x1xf32> to vector<2x16xf32>
    %800 = arith.subf %794, %799 : vector<2x16xf32>
    %801 = math.exp %800 : vector<2x16xf32>
    %cst_227 = arith.constant dense<0.000000e+00> : vector<2xf32>
    %802 = vector.multi_reduction <add>, %801, %cst_227 [1] : vector<2x16xf32> to vector<2xf32>
    %803 = vector.shape_cast %802 : vector<2xf32> to vector<2x1xf32>
    %804 = math.log %803 : vector<2x1xf32>
    %805 = arith.addf %798, %804 : vector<2x1xf32>
    %806 = arith.mulf %794, %796 : vector<2x16xf32>
    %cst_228 = arith.constant dense<0.000000e+00> : vector<2xf32>
    %807 = vector.multi_reduction <add>, %806, %cst_228 [1] : vector<2x16xf32> to vector<2xf32>
    %808 = vector.shape_cast %807 : vector<2xf32> to vector<2x1xf32>
    %c0_i32_229 = arith.constant 0 : i32
    %809 = vector.broadcast %c0_i32_229 : i32 to vector<2x1xi32>
    %810 = arith.cmpi ne, %795, %809 : vector<2x1xi32>
    %811 = arith.extui %810 : vector<2x1xi1> to vector<2x1xi32>
    %812 = arith.sitofp %811 : vector<2x1xi32> to vector<2x1xf32>
    %813 = arith.subf %805, %808 : vector<2x1xf32>
    %814 = arith.mulf %813, %812 : vector<2x1xf32>
    %815 = vector.shape_cast %814 : vector<2x1xf32> to vector<1x2x1xf32>
    %cst_230 = arith.constant dense<0.000000e+00> : vector<1xf32>
    %816 = vector.multi_reduction <add>, %815, %cst_230 [1, 2] : vector<1x2x1xf32> to vector<1xf32>
    %817 = vector.shape_cast %816 : vector<1xf32> to vector<1x1x1xf32>
    %818 = vector.extract %817[0, 0, 0] : f32 from vector<1x1x1xf32>
    %819 = vector.broadcast %818 : f32 to vector<1x1xf32>
    %820 = arith.addf %750, %819 : vector<1x1xf32>
    %821 = vector.shape_cast %812 : vector<2x1xf32> to vector<1x2x1xf32>
    %cst_231 = arith.constant dense<0.000000e+00> : vector<1xf32>
    %822 = vector.multi_reduction <add>, %821, %cst_231 [1, 2] : vector<1x2x1xf32> to vector<1xf32>
    %823 = vector.shape_cast %822 : vector<1xf32> to vector<1x1x1xf32>
    %824 = vector.extract %823[0, 0, 0] : f32 from vector<1x1x1xf32>
    %825 = vector.broadcast %824 : f32 to vector<1x1xf32>
    %826 = arith.addf %756, %825 : vector<1x1xf32>
    %827 = vector.extract_strided_slice %399 {offsets = [12, 0], sizes = [2, 96], strides = [1, 1]} : vector<16x96xf32> to vector<2x96xf32>
    %828 = arith.addf %827, %404 : vector<2x96xf32>
    %c0_232 = arith.constant 0 : index
    %c0_233 = arith.constant 0 : index
    %829 = vector.load %arg16[%c0_232, %c0_233] : memref<32x96xf32, #tpu.memory_space<vmem>>, vector<32x96xf32>
    %cst_234 = arith.constant dense<0.000000e+00> : vector<2x96xf32>
    %830 = tpu.matmul %789, %829, %cst_234 {dimension_numbers = #tpu.dot_dimension_numbers<[1], [0], [0], [1], [0, 0, 1, 1], [], []>} : vector<2x32xf32>, vector<32x96xf32>, vector<2x96xf32> -> vector<2x96xf32>
    %c0_235 = arith.constant 0 : index
    %c0_236 = arith.constant 0 : index
    %831 = vector.load %arg18[%c0_235, %c0_236] : memref<1x96xf32, #tpu.memory_space<vmem>>, vector<1x96xf32>
    %832 = vector.broadcast %831 : vector<1x96xf32> to vector<2x96xf32>
    %833 = arith.addf %830, %832 : vector<2x96xf32>
    %834 = vector.extract_strided_slice %828 {offsets = [0, 0], sizes = [2, 32], strides = [1, 1]} : vector<2x96xf32> to vector<2x32xf32>
    %835 = vector.extract_strided_slice %833 {offsets = [0, 0], sizes = [2, 32], strides = [1, 1]} : vector<2x96xf32> to vector<2x32xf32>
    %836 = arith.addf %834, %835 : vector<2x32xf32>
    %837 = arith.negf %836 : vector<2x32xf32>
    %838 = math.exp %837 : vector<2x32xf32>
    %cst_237 = arith.constant 1.000000e+00 : f32
    %839 = vector.broadcast %cst_237 : f32 to vector<2x32xf32>
    %840 = arith.addf %839, %838 : vector<2x32xf32>
    %841 = arith.divf %839, %840 : vector<2x32xf32>
    %842 = vector.extract_strided_slice %828 {offsets = [0, 32], sizes = [2, 32], strides = [1, 1]} : vector<2x96xf32> to vector<2x32xf32>
    %843 = vector.extract_strided_slice %833 {offsets = [0, 32], sizes = [2, 32], strides = [1, 1]} : vector<2x96xf32> to vector<2x32xf32>
    %844 = arith.addf %842, %843 : vector<2x32xf32>
    %845 = arith.negf %844 : vector<2x32xf32>
    %846 = math.exp %845 : vector<2x32xf32>
    %cst_238 = arith.constant 1.000000e+00 : f32
    %847 = vector.broadcast %cst_238 : f32 to vector<2x32xf32>
    %848 = arith.addf %847, %846 : vector<2x32xf32>
    %849 = arith.divf %847, %848 : vector<2x32xf32>
    %850 = vector.extract_strided_slice %828 {offsets = [0, 64], sizes = [2, 32], strides = [1, 1]} : vector<2x96xf32> to vector<2x32xf32>
    %851 = vector.extract_strided_slice %833 {offsets = [0, 64], sizes = [2, 32], strides = [1, 1]} : vector<2x96xf32> to vector<2x32xf32>
    %852 = arith.mulf %841, %851 : vector<2x32xf32>
    %853 = arith.addf %850, %852 : vector<2x32xf32>
    %854 = math.tanh %853 : vector<2x32xf32>
    %cst_239 = arith.constant 1.000000e+00 : f32
    %855 = vector.broadcast %cst_239 : f32 to vector<2x32xf32>
    %856 = arith.subf %855, %849 : vector<2x32xf32>
    %857 = arith.mulf %856, %854 : vector<2x32xf32>
    %858 = arith.mulf %849, %789 : vector<2x32xf32>
    %859 = arith.addf %857, %858 : vector<2x32xf32>
    %c0_240 = arith.constant 0 : index
    %c0_241 = arith.constant 0 : index
    %860 = vector.load %arg19[%c0_240, %c0_241] : memref<32x16xf32, #tpu.memory_space<vmem>>, vector<32x16xf32>
    %cst_242 = arith.constant dense<0.000000e+00> : vector<2x16xf32>
    %861 = tpu.matmul %859, %860, %cst_242 {dimension_numbers = #tpu.dot_dimension_numbers<[1], [0], [0], [1], [0, 0, 1, 1], [], []>} : vector<2x32xf32>, vector<32x16xf32>, vector<2x16xf32> -> vector<2x16xf32>
    %c0_243 = arith.constant 0 : index
    %c0_244 = arith.constant 0 : index
    %862 = vector.load %arg20[%c0_243, %c0_244] : memref<1x16xf32, #tpu.memory_space<vmem>>, vector<1x16xf32>
    %863 = vector.broadcast %862 : vector<1x16xf32> to vector<2x16xf32>
    %864 = arith.addf %861, %863 : vector<2x16xf32>
    %865 = vector.extract_strided_slice %0 {offsets = [14, 0], sizes = [2, 1], strides = [1, 1]} : vector<16x1xi32> to vector<2x1xi32>
    %866 = vector.extract_strided_slice %6 {offsets = [14, 0], sizes = [2, 16], strides = [1, 1]} : vector<16x16xf32> to vector<2x16xf32>
    %cst_245 = arith.constant dense<0xFF800000> : vector<2xf32>
    %867 = vector.multi_reduction <maximumf>, %864, %cst_245 [1] : vector<2x16xf32> to vector<2xf32>
    %868 = vector.shape_cast %867 : vector<2xf32> to vector<2x1xf32>
    %869 = vector.broadcast %868 : vector<2x1xf32> to vector<2x16xf32>
    %870 = arith.subf %864, %869 : vector<2x16xf32>
    %871 = math.exp %870 : vector<2x16xf32>
    %cst_246 = arith.constant dense<0.000000e+00> : vector<2xf32>
    %872 = vector.multi_reduction <add>, %871, %cst_246 [1] : vector<2x16xf32> to vector<2xf32>
    %873 = vector.shape_cast %872 : vector<2xf32> to vector<2x1xf32>
    %874 = math.log %873 : vector<2x1xf32>
    %875 = arith.addf %868, %874 : vector<2x1xf32>
    %876 = arith.mulf %864, %866 : vector<2x16xf32>
    %cst_247 = arith.constant dense<0.000000e+00> : vector<2xf32>
    %877 = vector.multi_reduction <add>, %876, %cst_247 [1] : vector<2x16xf32> to vector<2xf32>
    %878 = vector.shape_cast %877 : vector<2xf32> to vector<2x1xf32>
    %c0_i32_248 = arith.constant 0 : i32
    %879 = vector.broadcast %c0_i32_248 : i32 to vector<2x1xi32>
    %880 = arith.cmpi ne, %865, %879 : vector<2x1xi32>
    %881 = arith.extui %880 : vector<2x1xi1> to vector<2x1xi32>
    %882 = arith.sitofp %881 : vector<2x1xi32> to vector<2x1xf32>
    %883 = arith.subf %875, %878 : vector<2x1xf32>
    %884 = arith.mulf %883, %882 : vector<2x1xf32>
    %885 = vector.shape_cast %884 : vector<2x1xf32> to vector<1x2x1xf32>
    %cst_249 = arith.constant dense<0.000000e+00> : vector<1xf32>
    %886 = vector.multi_reduction <add>, %885, %cst_249 [1, 2] : vector<1x2x1xf32> to vector<1xf32>
    %887 = vector.shape_cast %886 : vector<1xf32> to vector<1x1x1xf32>
    %888 = vector.extract %887[0, 0, 0] : f32 from vector<1x1x1xf32>
    %889 = vector.broadcast %888 : f32 to vector<1x1xf32>
    %890 = arith.addf %820, %889 : vector<1x1xf32>
    %891 = vector.shape_cast %882 : vector<2x1xf32> to vector<1x2x1xf32>
    %cst_250 = arith.constant dense<0.000000e+00> : vector<1xf32>
    %892 = vector.multi_reduction <add>, %891, %cst_250 [1, 2] : vector<1x2x1xf32> to vector<1xf32>
    %893 = vector.shape_cast %892 : vector<1xf32> to vector<1x1x1xf32>
    %894 = vector.extract %893[0, 0, 0] : f32 from vector<1x1x1xf32>
    %895 = vector.broadcast %894 : f32 to vector<1x1xf32>
    %896 = arith.addf %826, %895 : vector<1x1xf32>
    %cst_251 = arith.constant 1.000000e+00 : f32
    %897 = vector.broadcast %cst_251 : f32 to vector<1x1xf32>
    %898 = arith.maximumf %896, %897 : vector<1x1xf32>
    %899 = arith.divf %890, %898 : vector<1x1xf32>
    %c0_252 = arith.constant 0 : index
    %c0_253 = arith.constant 0 : index
    %900 = vector.load %arg22[%c0_252, %c0_253] : memref<1x1xf32, #tpu.memory_space<vmem>>, vector<1x1xf32>
    tpu.vector_store %arg22[%c0_252, %c0_253], %899 {strides = array<i32>} : memref<1x1xf32, #tpu.memory_space<vmem>>, vector<1x1xf32>,
    return
  }
}

</mosaic_0001>

<llo_original>
// kernel: mose_vae_forward.1
$region0: #{mose_vae_forward.1}
  #allocation0 [shape = 'u32[]', space=smem, size = 0x4, offset = 0x4, fixed_abs, tag = 'smem constant byte address 0x4 - core index']
  #allocation1 [shape = 'u32[144,128]{1,0:T(1,128)}', space=vmem, size = 0x12000, scoped, tag = 'internal scratch']
  %s0 = inlined_call_operand.vmem [shape: s32[16,1], index: 0, kind: input, shape index: {}]
  %s1 = inlined_call_operand.vmem [shape: s32[2,1], index: 1, kind: input, shape index: {}]
  %s2 = inlined_call_operand.vmem [shape: f32[2,16], index: 2, kind: input, shape index: {}]
  %s3 = inlined_call_operand.vmem [shape: f32[16,8], index: 3, kind: input, shape index: {}]
  %s4 = inlined_call_operand.vmem [shape: f32[8,96], index: 4, kind: input, shape index: {}]
  %s5 = inlined_call_operand.vmem [shape: f32[32,96], index: 5, kind: input, shape index: {}]
  %s6 = inlined_call_operand.vmem [shape: f32[1,96], index: 6, kind: input, shape index: {}]
  %s7 = inlined_call_operand.vmem [shape: f32[1,96], index: 7, kind: input, shape index: {}]
  %s8 = inlined_call_operand.vmem [shape: f32[32,16], index: 8, kind: input, shape index: {}]
  %s9 = inlined_call_operand.vmem [shape: f32[1,16], index: 9, kind: input, shape index: {}]
  %s10 = inlined_call_operand.vmem [shape: f32[32,16], index: 10, kind: input, shape index: {}]
  %s11 = inlined_call_operand.vmem [shape: f32[1,16], index: 11, kind: input, shape index: {}]
  %s12 = inlined_call_operand.vmem [shape: f32[16,32], index: 12, kind: input, shape index: {}]
  %s13 = inlined_call_operand.vmem [shape: f32[1,32], index: 13, kind: input, shape index: {}]
  %s14 = inlined_call_operand.vmem [shape: f32[8,96], index: 14, kind: input, shape index: {}]
  %s15 = inlined_call_operand.vmem [shape: f32[16,96], index: 15, kind: input, shape index: {}]
  %s16 = inlined_call_operand.vmem [shape: f32[32,96], index: 16, kind: input, shape index: {}]
  %s17 = inlined_call_operand.vmem [shape: f32[1,96], index: 17, kind: input, shape index: {}]
  %s18 = inlined_call_operand.vmem [shape: f32[1,96], index: 18, kind: input, shape index: {}]
  %s19 = inlined_call_operand.vmem [shape: f32[32,16], index: 19, kind: input, shape index: {}]
  %s20 = inlined_call_operand.vmem [shape: f32[1,16], index: 20, kind: input, shape index: {}]
  %s21 = inlined_call_operand.hbm [shape: f32[1,1], index: 21, kind: output, shape index: {0}]
  %s22 = inlined_call_operand.hbm [shape: f32[1,1], index: 22, kind: output, shape index: {1}]
  %23 = xla_tuple %s21, %s22
  %s24 = sld [smem:[#allocation0]]
  $region102: #{mose_vae_forward.1} parent=0
    _
  %s26 = ssub.s32 1, %s24
  %s27 = scalar_select 0, %s26, %s24
  $region1: #{mose_vae_forward.1} parent=0
    #allocation2 [shape = 'u8[512]{0}', space=vmem, size = 0x400, scoped, tag = 'output window, operand 0, single buffered']
    #allocation3 [shape = 's32[1]{0}', space=sflag, size = 0x4, scoped, tag = 'scoped memory for mose_vae_forward.1']
    #allocation4 [shape = 'u8[512]{0}', space=vmem, size = 0x400, scoped, tag = 'output window, operand 1, single buffered']
    #allocation5 [shape = 's32[1]{0}', space=sflag, size = 0x4, scoped, tag = 'scoped memory for mose_vae_forward.1']
    %28 = vsyncpa [#allocation3], 0
    %29 = vsyncpa [#allocation5], 0
    // Predicated region
    $region2: #{mose_vae_forward.1} parent=1 // pred_check
      _
    $region3: #{mose_vae_forward.1} parent=1 // pred_check_branch
      %31 = sbr.rel (0) target = $region5
    $region4: #{mose_vae_forward.1} parent=1 // pred_region
      _
    $region5: #{mose_vae_forward.1} parent=1 // pred_fallthru
      _
    // Predicated region
    $region6: #{mose_vae_forward.1} parent=1 // pred_check
      _
    $region7: #{mose_vae_forward.1} parent=1 // pred_check_branch
      %33 = sbr.rel (0) target = $region9
    $region8: #{mose_vae_forward.1} parent=1 // pred_region
      _
    $region9: #{mose_vae_forward.1} parent=1 // pred_fallthru
      _
    // Predicated region
    $region10: #{mose_vae_forward.1} parent=1 // pred_check
      _
    $region11: #{mose_vae_forward.1} parent=1 // pred_check_branch
      %35 = sbr.rel (0) target = $region13
    $region12: #{mose_vae_forward.1} parent=1 // pred_region
      _
    $region13: #{mose_vae_forward.1} parent=1 // pred_fallthru
      _
    // Predicated region
    $region14: #{mose_vae_forward.1} parent=1 // pred_check
      _
    $region15: #{mose_vae_forward.1} parent=1 // pred_check_branch
      %37 = sbr.rel (0) target = $region17
    $region16: #{mose_vae_forward.1} parent=1 // pred_region
      _
    $region17: #{mose_vae_forward.1} parent=1 // pred_fallthru
      _
    // Predicated region
    $region18: #{mose_vae_forward.1} parent=1 // pred_check
      _
    $region19: #{mose_vae_forward.1} parent=1 // pred_check_branch
      %39 = sbr.rel (0) target = $region21
    $region20: #{mose_vae_forward.1} parent=1 // pred_region
      _
    $region21: #{mose_vae_forward.1} parent=1 // pred_fallthru
      _
    // Predicated region
    $region22: #{mose_vae_forward.1} parent=1 // pred_check
      _
    $region23: #{mose_vae_forward.1} parent=1 // pred_check_branch
      %41 = sbr.rel (0) target = $region25
    $region24: #{mose_vae_forward.1} parent=1 // pred_region
      _
    $region25: #{mose_vae_forward.1} parent=1 // pred_fallthru
      _
    // Predicated region
    $region26: #{mose_vae_forward.1} parent=1 // pred_check
      _
    $region27: #{mose_vae_forward.1} parent=1 // pred_check_branch
      %43 = sbr.rel (0) target = $region29
    $region28: #{mose_vae_forward.1} parent=1 // pred_region
      _
    $region29: #{mose_vae_forward.1} parent=1 // pred_fallthru
      _
    // Predicated region
    $region30: #{mose_vae_forward.1} parent=1 // pred_check
      _
    $region31: #{mose_vae_forward.1} parent=1 // pred_check_branch
      %45 = sbr.rel (0) target = $region33
    $region32: #{mose_vae_forward.1} parent=1 // pred_region
      _
    $region33: #{mose_vae_forward.1} parent=1 // pred_fallthru
      _
    // Predicated region
    $region34: #{mose_vae_forward.1} parent=1 // pred_check
      _
    $region35: #{mose_vae_forward.1} parent=1 // pred_check_branch
      %47 = sbr.rel (0) target = $region37
    $region36: #{mose_vae_forward.1} parent=1 // pred_region
      _
    $region37: #{mose_vae_forward.1} parent=1 // pred_fallthru
      _
    // Predicated region
    $region38: #{mose_vae_forward.1} parent=1 // pred_check
      _
    $region39: #{mose_vae_forward.1} parent=1 // pred_check_branch
      %49 = sbr.rel (0) target = $region41
    $region40: #{mose_vae_forward.1} parent=1 // pred_region
      _
    $region41: #{mose_vae_forward.1} parent=1 // pred_fallthru
      _
    // Predicated region
    $region42: #{mose_vae_forward.1} parent=1 // pred_check
      _
    $region43: #{mose_vae_forward.1} parent=1 // pred_check_branch
      %51 = sbr.rel (0) target = $region45
    $region44: #{mose_vae_forward.1} parent=1 // pred_region
      _
    $region45: #{mose_vae_forward.1} parent=1 // pred_fallthru
      _
    // Predicated region
    $region46: #{mose_vae_forward.1} parent=1 // pred_check
      _
    $region47: #{mose_vae_forward.1} parent=1 // pred_check_branch
      %53 = sbr.rel (0) target = $region49
    $region48: #{mose_vae_forward.1} parent=1 // pred_region
      _
    $region49: #{mose_vae_forward.1} parent=1 // pred_fallthru
      _
    // Predicated region
    $region50: #{mose_vae_forward.1} parent=1 // pred_check
      _
    $region51: #{mose_vae_forward.1} parent=1 // pred_check_branch
      %55 = sbr.rel (0) target = $region53
    $region52: #{mose_vae_forward.1} parent=1 // pred_region
      _
    $region53: #{mose_vae_forward.1} parent=1 // pred_fallthru
      _
    // Predicated region
    $region54: #{mose_vae_forward.1} parent=1 // pred_check
      _
    $region55: #{mose_vae_forward.1} parent=1 // pred_check_branch
      %57 = sbr.rel (0) target = $region57
    $region56: #{mose_vae_forward.1} parent=1 // pred_region
      _
    $region57: #{mose_vae_forward.1} parent=1 // pred_fallthru
      _
    // Predicated region
    $region58: #{mose_vae_forward.1} parent=1 // pred_check
      _
    $region59: #{mose_vae_forward.1} parent=1 // pred_check_branch
      %59 = sbr.rel (0) target = $region61
    $region60: #{mose_vae_forward.1} parent=1 // pred_region
      _
    $region61: #{mose_vae_forward.1} parent=1 // pred_fallthru
      _
    // Predicated region
    $region62: #{mose_vae_forward.1} parent=1 // pred_check
      _
    $region63: #{mose_vae_forward.1} parent=1 // pred_check_branch
      %61 = sbr.rel (0) target = $region65
    $region64: #{mose_vae_forward.1} parent=1 // pred_region
      _
    $region65: #{mose_vae_forward.1} parent=1 // pred_fallthru
      _
    // Predicated region
    $region66: #{mose_vae_forward.1} parent=1 // pred_check
      _
    $region67: #{mose_vae_forward.1} parent=1 // pred_check_branch
      %63 = sbr.rel (0) target = $region69
    $region68: #{mose_vae_forward.1} parent=1 // pred_region
      _
    $region69: #{mose_vae_forward.1} parent=1 // pred_fallthru
      _
    // Predicated region
    $region70: #{mose_vae_forward.1} parent=1 // pred_check
      _
    $region71: #{mose_vae_forward.1} parent=1 // pred_check_branch
      %65 = sbr.rel (0) target = $region73
    $region72: #{mose_vae_forward.1} parent=1 // pred_region
      _
    $region73: #{mose_vae_forward.1} parent=1 // pred_fallthru
      _
    // Predicated region
    $region74: #{mose_vae_forward.1} parent=1 // pred_check
      _
    $region75: #{mose_vae_forward.1} parent=1 // pred_check_branch
      %67 = sbr.rel (0) target = $region77
    $region76: #{mose_vae_forward.1} parent=1 // pred_region
      _
    $region77: #{mose_vae_forward.1} parent=1 // pred_fallthru
      _
    // Predicated region
    $region78: #{mose_vae_forward.1} parent=1 // pred_check
      _
    $region79: #{mose_vae_forward.1} parent=1 // pred_check_branch
      %69 = sbr.rel (0) target = $region81
    $region80: #{mose_vae_forward.1} parent=1 // pred_region
      _
    $region81: #{mose_vae_forward.1} parent=1 // pred_fallthru
      _
    // Predicated region
    $region82: #{mose_vae_forward.1} parent=1 // pred_check
      _
    $region83: #{mose_vae_forward.1} parent=1 // pred_check_branch
      %71 = sbr.rel (0) target = $region85
    $region84: #{mose_vae_forward.1} parent=1 // pred_region
      _
    $region85: #{mose_vae_forward.1} parent=1 // pred_fallthru
      _
    %v72 = vld [vmem:[%s0] sm:$0xff]
    %v73 = vld [vmem:[%s0 + $0x8] sm:$0xff]
    %v74 = vld [vmem:[%s1] sm:$0x3]
    %v75 = vlaneseq
    %v76 = vand.u32 %v75, 127
    %77 = vset.pattern.permute.xlu0 0
    %78 = vperm.xlu0 %77, %v72
    %v79 = vpop.permute.xlu0 %78
    %80 = vset.pattern.permute.xlu0 0
    %81 = vperm.xlu0 %80, %v73
    %v82 = vpop.permute.xlu0 %81
    %vm83 = vcmp.eq.s32.totalorder %v76, %v79
    %vm84 = vcmp.eq.s32.totalorder %v76, %v82
    %v85 = vsel %vm83, 1, 0
    %v86 = vsel %vm84, 1, 0
    %v87 = vcvt.s32.f32 %v85
    %v88 = vcvt.s32.f32 %v86
    %v89 = vld [vmem:[%s3] sm:$0xff]
    %v90 = vld [vmem:[%s3 + $0x8] sm:$0xff]
    %vm91 = vcmask 130048
    %v93 = vsel %vm91, %v87, 0
    %v96 = vsel %vm91, %v88, 0
    %98 = vmatprep.subr.mxu0 0.0
    %99 = vmatpush1.msra.mxu0 %v89
    %100 = vmatprep.subr.mxu0 0.0
    %101 = vmatpush1.msra.mxu0 %v90
    %102 = vmatprep.subr.mxu0 0.0
    %103 = vmatpush1.msra.mxu0 0.0
    %104 = vmatprep.subr.mxu0 0.0
    %105 = vmatpush1.msra.mxu0 0.0
    %106 = vmatprep.subr.mxu0 0.0
    %107 = vmatpush1.msra.mxu0 0.0
    %108 = vmatprep.subr.mxu0 0.0
    %109 = vmatpush1.msra.mxu0 0.0
    %110 = vmatprep.subr.mxu0 0.0
    %111 = vmatpush1.msra.mxu0 0.0
    %112 = vmatprep.subr.mxu0 0.0
    %113 = vmatpush1.msra.mxu0 0.0
    %114 = vmatprep.subr.mxu0 0.0
    %115 = vmatpush1.msra.mxu0 0.0
    %116 = vmatprep.subr.mxu0 0.0
    %117 = vmatpush1.msra.mxu0 0.0
    %118 = vmatprep.subr.mxu0 0.0
    %119 = vmatpush1.msra.mxu0 0.0
    %120 = vmatprep.subr.mxu0 0.0
    %121 = vmatpush1.msra.mxu0 0.0
    %122 = vmatprep.subr.mxu0 0.0
    %123 = vmatpush1.msra.mxu0 0.0
    %124 = vmatprep.subr.mxu0 0.0
    %125 = vmatpush1.msra.mxu0 0.0
    %126 = vmatprep.subr.mxu0 0.0
    %127 = vmatpush1.msra.mxu0 0.0
    %128 = vmatprep.subr.mxu0 0.0
    %129 = vmatpush1.msra.mxu0 0.0
    %130 = vmatprep.subr.mxu0 0.0
    %131 = vmatpush1.msra.mxu0 0.0
    %132 = vmatprep.subr.mxu0 0.0
    %133 = vmatpush1.msra.mxu0 0.0
    %134 = vmatprep.subr.mxu0 0.0
    %135 = vmatpush1.msra.mxu0 0.0
    %136 = vmatprep.subr.mxu0 0.0
    %137 = vmatpush1.msra.mxu0 0.0
    %138 = vmatprep.subr.mxu0 0.0
    %139 = vmatpush1.msra.mxu0 0.0
    %140 = vmatprep.subr.mxu0 0.0
    %141 = vmatpush1.msra.mxu0 0.0
    %142 = vmatprep.subr.mxu0 0.0
    %143 = vmatpush1.msra.mxu0 0.0
    %144 = vmatprep.subr.mxu0 0.0
    %145 = vmatpush1.msra.mxu0 0.0
    %146 = vmatprep.subr.mxu0 0.0
    %147 = vmatpush1.msra.mxu0 0.0
    %148 = vmatprep.subr.mxu0 0.0
    %149 = vmatpush1.msra.mxu0 0.0
    %150 = vmatprep.subr.mxu0 0.0
    %151 = vmatpush1.msra.mxu0 0.0
    %152 = vmatprep.subr.mxu0 0.0
    %153 = vmatpush1.msra.mxu0 0.0
    %154 = vmatprep.subr.mxu0 0.0
    %155 = vmatpush1.msra.mxu0 0.0
    %156 = vmatprep.subr.mxu0 0.0
    %157 = vmatpush1.msra.mxu0 0.0
    %158 = vmatprep.subr.mxu0 0.0
    %159 = vmatpush1.msra.mxu0 0.0
    %160 = vmatprep.subr.mxu0 0.0
    %161 = vmatpush1.msra.mxu0 0.0
    %162 = vmatprep.mubr.f32.mxu0 0.0
    %163 = vmatmul.mubr.f32.gmra.mrb[0].mxu0 %v93
    %v164 = vpop.f32.mrb[0].mxu0
    %v165 = vadd.f32 0.0, %v164
    %v166 = vpop.f32.mrb[0].mxu0
    %167 = vmatprep.mubr.f32.mxu0 0.0
    %168 = vmatmul.mubr.f32.gmra.mrb[0].mxu0 %v96
    %v169 = vpop.f32.mrb[0].mxu0
    %v170 = vadd.f32 0.0, %v169
    %v171 = vpop.f32.mrb[0].mxu0
    %172 = vdwg.mxu0
    %v173 = vld [vmem:[%s4] sm:$0xff]
    %v174 = vld [vmem:[%s6] sm:$0x1]
    %v176 = vlaneseq
    %v177 = vshrl.u32 %v176, 7
    %v178 = vsub.s32 0, %v177
    %v179 = vrot.slane %v174, %v178
    %vm181 = vcmask 64512
    %v183 = vsel %vm181, %v165, 0
    %v186 = vsel %vm181, %v170, 0
    %188 = vmatprep.subr.mxu0 0.0
    %189 = vmatpush1.msra.mxu0 %v173
    %190 = vmatprep.subr.mxu0 0.0
    %191 = vmatpush1.msra.mxu0 0.0
    %192 = vmatprep.subr.mxu0 0.0
    %193 = vmatpush1.msra.mxu0 0.0
    %194 = vmatprep.subr.mxu0 0.0
    %195 = vmatpush1.msra.mxu0 0.0
    %196 = vmatprep.subr.mxu0 0.0
    %197 = vmatpush1.msra.mxu0 0.0
    %198 = vmatprep.subr.mxu0 0.0
    %199 = vmatpush1.msra.mxu0 0.0
    %200 = vmatprep.subr.mxu0 0.0
    %201 = vmatpush1.msra.mxu0 0.0
    %202 = vmatprep.subr.mxu0 0.0
    %203 = vmatpush1.msra.mxu0 0.0
    %204 = vmatprep.subr.mxu0 0.0
    %205 = vmatpush1.msra.mxu0 0.0
    %206 = vmatprep.subr.mxu0 0.0
    %207 = vmatpush1.msra.mxu0 0.0
    %208 = vmatprep.subr.mxu0 0.0
    %209 = vmatpush1.msra.mxu0 0.0
    %210 = vmatprep.subr.mxu0 0.0
    %211 = vmatpush1.msra.mxu0 0.0
    %212 = vmatprep.subr.mxu0 0.0
    %213 = vmatpush1.msra.mxu0 0.0
    %214 = vmatprep.subr.mxu0 0.0
    %215 = vmatpush1.msra.mxu0 0.0
    %216 = vmatprep.subr.mxu0 0.0
    %217 = vmatpush1.msra.mxu0 0.0
    %218 = vmatprep.subr.mxu0 0.0
    %219 = vmatpush1.msra.mxu0 0.0
    %220 = vmatprep.subr.mxu0 0.0
    %221 = vmatpush1.msra.mxu0 0.0
    %222 = vmatprep.subr.mxu0 0.0
    %223 = vmatpush1.msra.mxu0 0.0
    %224 = vmatprep.subr.mxu0 0.0
    %225 = vmatpush1.msra.mxu0 0.0
    %226 = vmatprep.subr.mxu0 0.0
    %227 = vmatpush1.msra.mxu0 0.0
    %228 = vmatprep.subr.mxu0 0.0
    %229 = vmatpush1.msra.mxu0 0.0
    %230 = vmatprep.subr.mxu0 0.0
    %231 = vmatpush1.msra.mxu0 0.0
    %232 = vmatprep.subr.mxu0 0.0
    %233 = vmatpush1.msra.mxu0 0.0
    %234 = vmatprep.subr.mxu0 0.0
    %235 = vmatpush1.msra.mxu0 0.0
    %236 = vmatprep.subr.mxu0 0.0
    %237 = vmatpush1.msra.mxu0 0.0
    %238 = vmatprep.subr.mxu0 0.0
    %239 = vmatpush1.msra.mxu0 0.0
    %240 = vmatprep.subr.mxu0 0.0
    %241 = vmatpush1.msra.mxu0 0.0
    %242 = vmatprep.subr.mxu0 0.0
    %243 = vmatpush1.msra.mxu0 0.0
    %244 = vmatprep.subr.mxu0 0.0
    %245 = vmatpush1.msra.mxu0 0.0
    %246 = vmatprep.subr.mxu0 0.0
    %247 = vmatpush1.msra.mxu0 0.0
    %248 = vmatprep.subr.mxu0 0.0
    %249 = vmatpush1.msra.mxu0 0.0
    %250 = vmatprep.subr.mxu0 0.0
    %251 = vmatpush1.msra.mxu0 0.0
    %252 = vmatprep.mubr.f32.mxu0 0.0
    %253 = vmatmul.mubr.f32.gmra.mrb[0].mxu0 %v183
    %v254 = vpop.f32.mrb[0].mxu0
    %v255 = vadd.f32 %v179, %v254
    %v256 = vpop.f32.mrb[0].mxu0
    %257 = vmatprep.mubr.f32.mxu0 0.0
    %258 = vmatmul.mubr.f32.gmra.mrb[0].mxu0 %v186
    %v259 = vpop.f32.mrb[0].mxu0
    %v260 = vadd.f32 %v179, %v259
    %v261 = vpop.f32.mrb[0].mxu0
    %262 = vdwg.mxu0
    %v263 = vld [vmem:[%s5] sm:$0xff]
    %v264 = vld [vmem:[%s5 + $0x8] sm:$0xff]
    %v265 = vld [vmem:[%s5 + $0x10] sm:$0xff]
    %v266 = vld [vmem:[%s5 + $0x18] sm:$0xff]
    %v267 = vld [vmem:[%s7] sm:$0x1]
    %v269 = vlaneseq
    %v270 = vshrl.u32 %v269, 7
    %v271 = vsub.s32 0, %v270
    %v272 = vrot.slane %v267, %v271
    %vm274 = vcmask 261120
    %v276 = vsel %vm274, 0.0, 0
    %278 = vmatprep.subr.mxu0 0.0
    %279 = vmatpush1.msra.mxu0 %v263
    %280 = vmatprep.subr.mxu0 0.0
    %281 = vmatpush1.msra.mxu0 %v264
    %282 = vmatprep.subr.mxu0 0.0
    %283 = vmatpush1.msra.mxu0 %v265
    %284 = vmatprep.subr.mxu0 0.0
    %285 = vmatpush1.msra.mxu0 %v266
    %286 = vmatprep.subr.mxu0 0.0
    %287 = vmatpush1.msra.mxu0 0.0
    %288 = vmatprep.subr.mxu0 0.0
    %289 = vmatpush1.msra.mxu0 0.0
    %290 = vmatprep.subr.mxu0 0.0
    %291 = vmatpush1.msra.mxu0 0.0
    %292 = vmatprep.subr.mxu0 0.0
    %293 = vmatpush1.msra.mxu0 0.0
    %294 = vmatprep.subr.mxu0 0.0
    %295 = vmatpush1.msra.mxu0 0.0
    %296 = vmatprep.subr.mxu0 0.0
    %297 = vmatpush1.msra.mxu0 0.0
    %298 = vmatprep.subr.mxu0 0.0
    %299 = vmatpush1.msra.mxu0 0.0
    %300 = vmatprep.subr.mxu0 0.0
    %301 = vmatpush1.msra.mxu0 0.0
    %302 = vmatprep.subr.mxu0 0.0
    %303 = vmatpush1.msra.mxu0 0.0
    %304 = vmatprep.subr.mxu0 0.0
    %305 = vmatpush1.msra.mxu0 0.0
    %306 = vmatprep.subr.mxu0 0.0
    %307 = vmatpush1.msra.mxu0 0.0
    %308 = vmatprep.subr.mxu0 0.0
    %309 = vmatpush1.msra.mxu0 0.0
    %310 = vmatprep.subr.mxu0 0.0
    %311 = vmatpush1.msra.mxu0 0.0
    %312 = vmatprep.subr.mxu0 0.0
    %313 = vmatpush1.msra.mxu0 0.0
    %314 = vmatprep.subr.mxu0 0.0
    %315 = vmatpush1.msra.mxu0 0.0
    %316 = vmatprep.subr.mxu0 0.0
    %317 = vmatpush1.msra.mxu0 0.0
    %318 = vmatprep.subr.mxu0 0.0
    %319 = vmatpush1.msra.mxu0 0.0
    %320 = vmatprep.subr.mxu0 0.0
    %321 = vmatpush1.msra.mxu0 0.0
    %322 = vmatprep.subr.mxu0 0.0
    %323 = vmatpush1.msra.mxu0 0.0
    %324 = vmatprep.subr.mxu0 0.0
    %325 = vmatpush1.msra.mxu0 0.0
    %326 = vmatprep.subr.mxu0 0.0
    %327 = vmatpush1.msra.mxu0 0.0
    %328 = vmatprep.subr.mxu0 0.0
    %329 = vmatpush1.msra.mxu0 0.0
    %330 = vmatprep.subr.mxu0 0.0
    %331 = vmatpush1.msra.mxu0 0.0
    %332 = vmatprep.subr.mxu0 0.0
    %333 = vmatpush1.msra.mxu0 0.0
    %334 = vmatprep.subr.mxu0 0.0
    %335 = vmatpush1.msra.mxu0 0.0
    %336 = vmatprep.subr.mxu0 0.0
    %337 = vmatpush1.msra.mxu0 0.0
    %338 = vmatprep.subr.mxu0 0.0
    %339 = vmatpush1.msra.mxu0 0.0
    %340 = vmatprep.subr.mxu0 0.0
    %341 = vmatpush1.msra.mxu0 0.0
    %342 = vmatprep.mubr.f32.mxu0 0.0
    %343 = vmatmul.mubr.f32.gmra.mrb[0].mxu0 %v276
    %v344 = vpop.f32.mrb[0].mxu0
    %v345 = vadd.f32 %v272, %v344
    %v346 = vpop.f32.mrb[0].mxu0
    %347 = vdwg.mxu0
    %v348 = vadd.f32 %v255, %v345
    %v349 = vxor.u32 %v348, 2147483648
    %v350 = vmul.f32 %v349, 1.442695
    %v351 = vpow.pop %v350
    %v352 = vadd.f32 %v351, 1.0
    %v353 = vrcp.pop %v352
    %v354 = vmul.f32 1.0, %v353
    %356 = vrot.lane.b32.xlu0 %v345, 64
    %v357 = vpop.permute.xlu0 %356
    %v359 = vmul.f32 %v354, %v357
    %361 = vrot.lane.b32.xlu0 %v359, 64
    %v362 = vpop.permute.xlu0 %361
    %v364 = vadd.f32 %v255, %v362
    %v365 = vtanh.pop %v364
    %v366 = vsub.f32 1.0, %v354
    %368 = vrot.lane.b32.xlu0 %v365, 96
    %v369 = vpop.permute.xlu0 %368
    %v371 = vmul.f32 %v366, %v369
    %v372 = vmul.f32 %v354, 0.0
    %v373 = vadd.f32 %v371, %v372
    %vm374 = vcmp.gt.s32.totalorder %v74, 0
    %v375 = vsel %vm374, 1, 0
    %v376 = vcvt.s32.f32 %v375
    %378 = vset.pattern.permute.xlu0 0
    %379 = vperm.xlu0 %378, %v376
    %v380 = vpop.permute.xlu0 %379
    %v382 = vmul.f32 %v380, %v373
    %v383 = vsub.f32 1.0, %v376
    %385 = vset.pattern.permute.xlu0 0
    %386 = vperm.xlu0 %385, %v383
    %v387 = vpop.permute.xlu0 %386
    %v389 = vmul.f32 %v387, 0.0
    %v390 = vadd.f32 %v382, %v389
    %392 = vrot.lane.b32.xlu0 %v390, 96
    %v393 = vpop.permute.xlu0 %392
    %v394 = vsel %vm274, %v393, 0
    %396 = vmatprep.subr.mxu0 0.0
    %397 = vmatpush1.msra.mxu0 %v263
    %398 = vmatprep.subr.mxu0 0.0
    %399 = vmatpush1.msra.mxu0 %v264
    %400 = vmatprep.subr.mxu0 0.0
    %401 = vmatpush1.msra.mxu0 %v265
    %402 = vmatprep.subr.mxu0 0.0
    %403 = vmatpush1.msra.mxu0 %v266
    %404 = vmatprep.subr.mxu0 0.0
    %405 = vmatpush1.msra.mxu0 0.0
    %406 = vmatprep.subr.mxu0 0.0
    %407 = vmatpush1.msra.mxu0 0.0
    %408 = vmatprep.subr.mxu0 0.0
    %409 = vmatpush1.msra.mxu0 0.0
    %410 = vmatprep.subr.mxu0 0.0
    %411 = vmatpush1.msra.mxu0 0.0
    %412 = vmatprep.subr.mxu0 0.0
    %413 = vmatpush1.msra.mxu0 0.0
    %414 = vmatprep.subr.mxu0 0.0
    %415 = vmatpush1.msra.mxu0 0.0
    %416 = vmatprep.subr.mxu0 0.0
    %417 = vmatpush1.msra.mxu0 0.0
    %418 = vmatprep.subr.mxu0 0.0
    %419 = vmatpush1.msra.mxu0 0.0
    %420 = vmatprep.subr.mxu0 0.0
    %421 = vmatpush1.msra.mxu0 0.0
    %422 = vmatprep.subr.mxu0 0.0
    %423 = vmatpush1.msra.mxu0 0.0
    %424 = vmatprep.subr.mxu0 0.0
    %425 = vmatpush1.msra.mxu0 0.0
    %426 = vmatprep.subr.mxu0 0.0
    %427 = vmatpush1.msra.mxu0 0.0
    %428 = vmatprep.subr.mxu0 0.0
    %429 = vmatpush1.msra.mxu0 0.0
    %430 = vmatprep.subr.mxu0 0.0
    %431 = vmatpush1.msra.mxu0 0.0
    %432 = vmatprep.subr.mxu0 0.0
    %433 = vmatpush1.msra.mxu0 0.0
    %434 = vmatprep.subr.mxu0 0.0
    %435 = vmatpush1.msra.mxu0 0.0
    %436 = vmatprep.subr.mxu0 0.0
    %437 = vmatpush1.msra.mxu0 0.0
    %438 = vmatprep.subr.mxu0 0.0
    %439 = vmatpush1.msra.mxu0 0.0
    %440 = vmatprep.subr.mxu0 0.0
    %441 = vmatpush1.msra.mxu0 0.0
    %442 = vmatprep.subr.mxu0 0.0
    %443 = vmatpush1.msra.mxu0 0.0
    %444 = vmatprep.subr.mxu0 0.0
    %445 = vmatpush1.msra.mxu0 0.0
    %446 = vmatprep.subr.mxu0 0.0
    %447 = vmatpush1.msra.mxu0 0.0
    %448 = vmatprep.subr.mxu0 0.0
    %449 = vmatpush1.msra.mxu0 0.0
    %450 = vmatprep.subr.mxu0 0.0
    %451 = vmatpush1.msra.mxu0 0.0
    %452 = vmatprep.subr.mxu0 0.0
    %453 = vmatpush1.msra.mxu0 0.0
    %454 = vmatprep.subr.mxu0 0.0
    %455 = vmatpush1.msra.mxu0 0.0
    %456 = vmatprep.subr.mxu0 0.0
    %457 = vmatpush1.msra.mxu0 0.0
    %458 = vmatprep.subr.mxu0 0.0
    %459 = vmatpush1.msra.mxu0 0.0
    %460 = vmatprep.mubr.f32.mxu0 0.0
    %461 = vmatmul.mubr.f32.gmra.mrb[0].mxu0 %v394
    %v462 = vpop.f32.mrb[0].mxu0
    %v463 = vadd.f32 %v272, %v462
    %v464 = vpop.f32.mrb[0].mxu0
    %465 = vdwg.mxu0
    %v467 = vrot.slane %v463, 6
    %v469 = vadd.f32 %v255, %v467
    %v470 = vxor.u32 %v469, 2147483648
    %v471 = vmul.f32 %v470, 1.442695
    %v472 = vpow.pop %v471
    %v473 = vadd.f32 %v472, 1.0
    %v474 = vrcp.pop %v473
    %v475 = vmul.f32 1.0, %v474
    %476 = vrot.lane.b32.xlu0 %v467, 64
    %v477 = vpop.permute.xlu0 %476
    %v479 = vmul.f32 %v475, %v477
    %481 = vrot.lane.b32.xlu0 %v479, 64
    %v482 = vpop.permute.xlu0 %481
    %v484 = vadd.f32 %v255, %v482
    %v485 = vtanh.pop %v484
    %v486 = vsub.f32 1.0, %v475
    %488 = vrot.lane.b32.xlu0 %v485, 96
    %v489 = vpop.permute.xlu0 %488
    %v491 = vmul.f32 %v486, %v489
    %v492 = vrot.slane %v390, 6
    %v494 = vmul.f32 %v475, %v492
    %v495 = vadd.f32 %v491, %v494
    %vm496 = vcmp.gt.s32.totalorder %v74, 1
    %v497 = vsel %vm496, 1, 0
    %v498 = vcvt.s32.f32 %v497
    %500 = vset.pattern.permute.xlu0 0
    %501 = vperm.xlu0 %500, %v498
    %v502 = vpop.permute.xlu0 %501
    %v505 = vrot.slane %v495, 2
    %506 = vrot.lane.b32.xlu0 %v505, 96
    %v507 = vpop.permute.xlu0 %506
    %v509 = vmul.f32 %v502, %v507
    %v510 = vsub.f32 1.0, %v498
    %512 = vset.pattern.permute.xlu0 0
    %513 = vperm.xlu0 %512, %v510
    %v514 = vpop.permute.xlu0 %513
    %v516 = vmul.f32 %v514, %v390
    %518 = vrot.lane.b32.xlu0 %v516, 96
    %v519 = vpop.permute.xlu0 %518
    %v521 = vadd.f32 %v509, %v519
    %v523 = vsel %vm274, %v521, 0
    %525 = vmatprep.subr.mxu0 0.0
    %526 = vmatpush1.msra.mxu0 %v263
    %527 = vmatprep.subr.mxu0 0.0
    %528 = vmatpush1.msra.mxu0 %v264
    %529 = vmatprep.subr.mxu0 0.0
    %530 = vmatpush1.msra.mxu0 %v265
    %531 = vmatprep.subr.mxu0 0.0
    %532 = vmatpush1.msra.mxu0 %v266
    %533 = vmatprep.subr.mxu0 0.0
    %534 = vmatpush1.msra.mxu0 0.0
    %535 = vmatprep.subr.mxu0 0.0
    %536 = vmatpush1.msra.mxu0 0.0
    %537 = vmatprep.subr.mxu0 0.0
    %538 = vmatpush1.msra.mxu0 0.0
    %539 = vmatprep.subr.mxu0 0.0
    %540 = vmatpush1.msra.mxu0 0.0
    %541 = vmatprep.subr.mxu0 0.0
    %542 = vmatpush1.msra.mxu0 0.0
    %543 = vmatprep.subr.mxu0 0.0
    %544 = vmatpush1.msra.mxu0 0.0
    %545 = vmatprep.subr.mxu0 0.0
    %546 = vmatpush1.msra.mxu0 0.0
    %547 = vmatprep.subr.mxu0 0.0
    %548 = vmatpush1.msra.mxu0 0.0
    %549 = vmatprep.subr.mxu0 0.0
    %550 = vmatpush1.msra.mxu0 0.0
    %551 = vmatprep.subr.mxu0 0.0
    %552 = vmatpush1.msra.mxu0 0.0
    %553 = vmatprep.subr.mxu0 0.0
    %554 = vmatpush1.msra.mxu0 0.0
    %555 = vmatprep.subr.mxu0 0.0
    %556 = vmatpush1.msra.mxu0 0.0
    %557 = vmatprep.subr.mxu0 0.0
    %558 = vmatpush1.msra.mxu0 0.0
    %559 = vmatprep.subr.mxu0 0.0
    %560 = vmatpush1.msra.mxu0 0.0
    %561 = vmatprep.subr.mxu0 0.0
    %562 = vmatpush1.msra.mxu0 0.0
    %563 = vmatprep.subr.mxu0 0.0
    %564 = vmatpush1.msra.mxu0 0.0
    %565 = vmatprep.subr.mxu0 0.0
    %566 = vmatpush1.msra.mxu0 0.0
    %567 = vmatprep.subr.mxu0 0.0
    %568 = vmatpush1.msra.mxu0 0.0
    %569 = vmatprep.subr.mxu0 0.0
    %570 = vmatpush1.msra.mxu0 0.0
    %571 = vmatprep.subr.mxu0 0.0
    %572 = vmatpush1.msra.mxu0 0.0
    %573 = vmatprep.subr.mxu0 0.0
    %574 = vmatpush1.msra.mxu0 0.0
    %575 = vmatprep.subr.mxu0 0.0
    %576 = vmatpush1.msra.mxu0 0.0
    %577 = vmatprep.subr.mxu0 0.0
    %578 = vmatpush1.msra.mxu0 0.0
    %579 = vmatprep.subr.mxu0 0.0
    %580 = vmatpush1.msra.mxu0 0.0
    %581 = vmatprep.subr.mxu0 0.0
    %582 = vmatpush1.msra.mxu0 0.0
    %583 = vmatprep.subr.mxu0 0.0
    %584 = vmatpush1.msra.mxu0 0.0
    %585 = vmatprep.subr.mxu0 0.0
    %586 = vmatpush1.msra.mxu0 0.0
    %587 = vmatprep.subr.mxu0 0.0
    %588 = vmatpush1.msra.mxu0 0.0
    %589 = vmatprep.mubr.f32.mxu0 0.0
    %590 = vmatmul.mubr.f32.gmra.mrb[0].mxu0 %v523
    %v591 = vpop.f32.mrb[0].mxu0
    %v592 = vadd.f32 %v272, %v591
    %v593 = vpop.f32.mrb[0].mxu0
    %594 = vdwg.mxu0
    %v596 = vrot.slane %v592, 4
    %v598 = vadd.f32 %v255, %v596
    %v599 = vxor.u32 %v598, 2147483648
    %v600 = vmul.f32 %v599, 1.442695
    %v601 = vpow.pop %v600
    %v602 = vadd.f32 %v601, 1.0
    %v603 = vrcp.pop %v602
    %v604 = vmul.f32 1.0, %v603
    %605 = vrot.lane.b32.xlu0 %v596, 64
    %v606 = vpop.permute.xlu0 %605
    %v608 = vmul.f32 %v604, %v606
    %610 = vrot.lane.b32.xlu0 %v608, 64
    %v611 = vpop.permute.xlu0 %610
    %v613 = vadd.f32 %v255, %v611
    %v614 = vtanh.pop %v613
    %v615 = vsub.f32 1.0, %v604
    %617 = vrot.lane.b32.xlu0 %v614, 96
    %v618 = vpop.permute.xlu0 %617
    %v620 = vmul.f32 %v615, %v618
    %v621 = vrot.slane %v521, 4
    %622 = vrot.lane.b32.xlu0 %v621, 32
    %v623 = vpop.permute.xlu0 %622
    %v625 = vmul.f32 %v604, %v623
    %v626 = vadd.f32 %v620, %v625
    %vm627 = vcmp.gt.s32.totalorder %v74, 2
    %v628 = vsel %vm627, 1, 0
    %v629 = vcvt.s32.f32 %v628
    %631 = vset.pattern.permute.xlu0 0
    %632 = vperm.xlu0 %631, %v629
    %v633 = vpop.permute.xlu0 %632
    %v636 = vrot.slane %v626, 4
    %637 = vrot.lane.b32.xlu0 %v636, 96
    %v638 = vpop.permute.xlu0 %637
    %v640 = vmul.f32 %v633, %v638
    %v641 = vsub.f32 1.0, %v629
    %643 = vset.pattern.permute.xlu0 0
    %644 = vperm.xlu0 %643, %v641
    %v645 = vpop.permute.xlu0 %644
    %v647 = vmul.f32 %v645, %v521
    %v648 = vadd.f32 %v640, %v647
    %v650 = vsel %vm274, %v648, 0
    %652 = vmatprep.subr.mxu0 0.0
    %653 = vmatpush1.msra.mxu0 %v263
    %654 = vmatprep.subr.mxu0 0.0
    %655 = vmatpush1.msra.mxu0 %v264
    %656 = vmatprep.subr.mxu0 0.0
    %657 = vmatpush1.msra.mxu0 %v265
    %658 = vmatprep.subr.mxu0 0.0
    %659 = vmatpush1.msra.mxu0 %v266
    %660 = vmatprep.subr.mxu0 0.0
    %661 = vmatpush1.msra.mxu0 0.0
    %662 = vmatprep.subr.mxu0 0.0
    %663 = vmatpush1.msra.mxu0 0.0
    %664 = vmatprep.subr.mxu0 0.0
    %665 = vmatpush1.msra.mxu0 0.0
    %666 = vmatprep.subr.mxu0 0.0
    %667 = vmatpush1.msra.mxu0 0.0
    %668 = vmatprep.subr.mxu0 0.0
    %669 = vmatpush1.msra.mxu0 0.0
    %670 = vmatprep.subr.mxu0 0.0
    %671 = vmatpush1.msra.mxu0 0.0
    %672 = vmatprep.subr.mxu0 0.0
    %673 = vmatpush1.msra.mxu0 0.0
    %674 = vmatprep.subr.mxu0 0.0
    %675 = vmatpush1.msra.mxu0 0.0
    %676 = vmatprep.subr.mxu0 0.0
    %677 = vmatpush1.msra.mxu0 0.0
    %678 = vmatprep.subr.mxu0 0.0
    %679 = vmatpush1.msra.mxu0 0.0
    %680 = vmatprep.subr.mxu0 0.0
    %681 = vmatpush1.msra.mxu0 0.0
    %682 = vmatprep.subr.mxu0 0.0
    %683 = vmatpush1.msra.mxu0 0.0
    %684 = vmatprep.subr.mxu0 0.0
    %685 = vmatpush1.msra.mxu0 0.0
    %686 = vmatprep.subr.mxu0 0.0
    %687 = vmatpush1.msra.mxu0 0.0
    %688 = vmatprep.subr.mxu0 0.0
    %689 = vmatpush1.msra.mxu0 0.0
    %690 = vmatprep.subr.mxu0 0.0
    %691 = vmatpush1.msra.mxu0 0.0
    %692 = vmatprep.subr.mxu0 0.0
    %693 = vmatpush1.msra.mxu0 0.0
    %694 = vmatprep.subr.mxu0 0.0
    %695 = vmatpush1.msra.mxu0 0.0
    %696 = vmatprep.subr.mxu0 0.0
    %697 = vmatpush1.msra.mxu0 0.0
    %698 = vmatprep.subr.mxu0 0.0
    %699 = vmatpush1.msra.mxu0 0.0
    %700 = vmatprep.subr.mxu0 0.0
    %701 = vmatpush1.msra.mxu0 0.0
    %702 = vmatprep.subr.mxu0 0.0
    %703 = vmatpush1.msra.mxu0 0.0
    %704 = vmatprep.subr.mxu0 0.0
    %705 = vmatpush1.msra.mxu0 0.0
    %706 = vmatprep.subr.mxu0 0.0
    %707 = vmatpush1.msra.mxu0 0.0
    %708 = vmatprep.subr.mxu0 0.0
    %709 = vmatpush1.msra.mxu0 0.0
    %710 = vmatprep.subr.mxu0 0.0
    %711 = vmatpush1.msra.mxu0 0.0
    %712 = vmatprep.subr.mxu0 0.0
    %713 = vmatpush1.msra.mxu0 0.0
    %714 = vmatprep.subr.mxu0 0.0
    %715 = vmatpush1.msra.mxu0 0.0
    %716 = vmatprep.mubr.f32.mxu0 0.0
    %717 = vmatmul.mubr.f32.gmra.mrb[0].mxu0 %v650
    %v718 = vpop.f32.mrb[0].mxu0
    %v719 = vadd.f32 %v272, %v718
    %v720 = vpop.f32.mrb[0].mxu0
    %721 = vdwg.mxu0
    %v723 = vrot.slane %v719, 2
    %v725 = vadd.f32 %v255, %v723
    %v726 = vxor.u32 %v725, 2147483648
    %v727 = vmul.f32 %v726, 1.442695
    %v728 = vpow.pop %v727
    %v729 = vadd.f32 %v728, 1.0
    %v730 = vrcp.pop %v729
    %v731 = vmul.f32 1.0, %v730
    %732 = vrot.lane.b32.xlu0 %v723, 64
    %v733 = vpop.permute.xlu0 %732
    %v735 = vmul.f32 %v731, %v733
    %737 = vrot.lane.b32.xlu0 %v735, 64
    %v738 = vpop.permute.xlu0 %737
    %v740 = vadd.f32 %v255, %v738
    %v741 = vtanh.pop %v740
    %v742 = vsub.f32 1.0, %v731
    %744 = vrot.lane.b32.xlu0 %v741, 96
    %v745 = vpop.permute.xlu0 %744
    %v747 = vmul.f32 %v742, %v745
    %v748 = vrot.slane %v648, 2
    %749 = vrot.lane.b32.xlu0 %v748, 32
    %v750 = vpop.permute.xlu0 %749
    %v752 = vmul.f32 %v731, %v750
    %v753 = vadd.f32 %v747, %v752
    %vm754 = vcmp.gt.s32.totalorder %v74, 3
    %v755 = vsel %vm754, 1, 0
    %v756 = vcvt.s32.f32 %v755
    %758 = vset.pattern.permute.xlu0 0
    %759 = vperm.xlu0 %758, %v756
    %v760 = vpop.permute.xlu0 %759
    %v763 = vrot.slane %v753, 6
    %764 = vrot.lane.b32.xlu0 %v763, 96
    %v765 = vpop.permute.xlu0 %764
    %v767 = vmul.f32 %v760, %v765
    %v768 = vsub.f32 1.0, %v756
    %770 = vset.pattern.permute.xlu0 0
    %771 = vperm.xlu0 %770, %v768
    %v772 = vpop.permute.xlu0 %771
    %v774 = vmul.f32 %v772, %v648
    %v775 = vadd.f32 %v767, %v774
    %v777 = vsel %vm274, %v775, 0
    %779 = vmatprep.subr.mxu0 0.0
    %780 = vmatpush1.msra.mxu0 %v263
    %781 = vmatprep.subr.mxu0 0.0
    %782 = vmatpush1.msra.mxu0 %v264
    %783 = vmatprep.subr.mxu0 0.0
    %784 = vmatpush1.msra.mxu0 %v265
    %785 = vmatprep.subr.mxu0 0.0
    %786 = vmatpush1.msra.mxu0 %v266
    %787 = vmatprep.subr.mxu0 0.0
    %788 = vmatpush1.msra.mxu0 0.0
    %789 = vmatprep.subr.mxu0 0.0
    %790 = vmatpush1.msra.mxu0 0.0
    %791 = vmatprep.subr.mxu0 0.0
    %792 = vmatpush1.msra.mxu0 0.0
    %793 = vmatprep.subr.mxu0 0.0
    %794 = vmatpush1.msra.mxu0 0.0
    %795 = vmatprep.subr.mxu0 0.0
    %796 = vmatpush1.msra.mxu0 0.0
    %797 = vmatprep.subr.mxu0 0.0
    %798 = vmatpush1.msra.mxu0 0.0
    %799 = vmatprep.subr.mxu0 0.0
    %800 = vmatpush1.msra.mxu0 0.0
    %801 = vmatprep.subr.mxu0 0.0
    %802 = vmatpush1.msra.mxu0 0.0
    %803 = vmatprep.subr.mxu0 0.0
    %804 = vmatpush1.msra.mxu0 0.0
    %805 = vmatprep.subr.mxu0 0.0
    %806 = vmatpush1.msra.mxu0 0.0
    %807 = vmatprep.subr.mxu0 0.0
    %808 = vmatpush1.msra.mxu0 0.0
    %809 = vmatprep.subr.mxu0 0.0
    %810 = vmatpush1.msra.mxu0 0.0
    %811 = vmatprep.subr.mxu0 0.0
    %812 = vmatpush1.msra.mxu0 0.0
    %813 = vmatprep.subr.mxu0 0.0
    %814 = vmatpush1.msra.mxu0 0.0
    %815 = vmatprep.subr.mxu0 0.0
    %816 = vmatpush1.msra.mxu0 0.0
    %817 = vmatprep.subr.mxu0 0.0
    %818 = vmatpush1.msra.mxu0 0.0
    %819 = vmatprep.subr.mxu0 0.0
    %820 = vmatpush1.msra.mxu0 0.0
    %821 = vmatprep.subr.mxu0 0.0
    %822 = vmatpush1.msra.mxu0 0.0
    %823 = vmatprep.subr.mxu0 0.0
    %824 = vmatpush1.msra.mxu0 0.0
    %825 = vmatprep.subr.mxu0 0.0
    %826 = vmatpush1.msra.mxu0 0.0
    %827 = vmatprep.subr.mxu0 0.0
    %828 = vmatpush1.msra.mxu0 0.0
    %829 = vmatprep.subr.mxu0 0.0
    %830 = vmatpush1.msra.mxu0 0.0
    %831 = vmatprep.subr.mxu0 0.0
    %832 = vmatpush1.msra.mxu0 0.0
    %833 = vmatprep.subr.mxu0 0.0
    %834 = vmatpush1.msra.mxu0 0.0
    %835 = vmatprep.subr.mxu0 0.0
    %836 = vmatpush1.msra.mxu0 0.0
    %837 = vmatprep.subr.mxu0 0.0
    %838 = vmatpush1.msra.mxu0 0.0
    %839 = vmatprep.subr.mxu0 0.0
    %840 = vmatpush1.msra.mxu0 0.0
    %841 = vmatprep.subr.mxu0 0.0
    %842 = vmatpush1.msra.mxu0 0.0
    %843 = vmatprep.mubr.f32.mxu0 0.0
    %844 = vmatmul.mubr.f32.gmra.mrb[0].mxu0 %v777
    %v845 = vpop.f32.mrb[0].mxu0
    %v846 = vadd.f32 %v272, %v845
    %v847 = vpop.f32.mrb[0].mxu0
    %848 = vdwg.mxu0
    %v849 = vadd.f32 %v260, %v846
    %v850 = vxor.u32 %v849, 2147483648
    %v851 = vmul.f32 %v850, 1.442695
    %v852 = vpow.pop %v851
    %v853 = vadd.f32 %v852, 1.0
    %v854 = vrcp.pop %v853
    %v855 = vmul.f32 1.0, %v854
    %857 = vrot.lane.b32.xlu0 %v846, 64
    %v858 = vpop.permute.xlu0 %857
    %v860 = vmul.f32 %v855, %v858
    %862 = vrot.lane.b32.xlu0 %v860, 64
    %v863 = vpop.permute.xlu0 %862
    %v865 = vadd.f32 %v260, %v863
    %v866 = vtanh.pop %v865
    %v867 = vsub.f32 1.0, %v855
    %869 = vrot.lane.b32.xlu0 %v866, 96
    %v870 = vpop.permute.xlu0 %869
    %v872 = vmul.f32 %v867, %v870
    %873 = vrot.lane.b32.xlu0 %v775, 32
    %v874 = vpop.permute.xlu0 %873
    %v876 = vmul.f32 %v855, %v874
    %v877 = vadd.f32 %v872, %v876
    %vm878 = vcmp.gt.s32.totalorder %v74, 4
    %v879 = vsel %vm878, 1, 0
    %v880 = vcvt.s32.f32 %v879
    %882 = vset.pattern.permute.xlu0 0
    %883 = vperm.xlu0 %882, %v880
    %v884 = vpop.permute.xlu0 %883
    %v886 = vmul.f32 %v884, %v877
    %v887 = vsub.f32 1.0, %v880
    %889 = vset.pattern.permute.xlu0 0
    %890 = vperm.xlu0 %889, %v887
    %v891 = vpop.permute.xlu0 %890
    %v893 = vmul.f32 %v891, %v775
    %895 = vrot.lane.b32.xlu0 %v893, 32
    %v896 = vpop.permute.xlu0 %895
    %v898 = vadd.f32 %v886, %v896
    %900 = vrot.lane.b32.xlu0 %v898, 96
    %v901 = vpop.permute.xlu0 %900
    %v902 = vsel %vm274, %v901, 0
    %904 = vmatprep.subr.mxu0 0.0
    %905 = vmatpush1.msra.mxu0 %v263
    %906 = vmatprep.subr.mxu0 0.0
    %907 = vmatpush1.msra.mxu0 %v264
    %908 = vmatprep.subr.mxu0 0.0
    %909 = vmatpush1.msra.mxu0 %v265
    %910 = vmatprep.subr.mxu0 0.0
    %911 = vmatpush1.msra.mxu0 %v266
    %912 = vmatprep.subr.mxu0 0.0
    %913 = vmatpush1.msra.mxu0 0.0
    %914 = vmatprep.subr.mxu0 0.0
    %915 = vmatpush1.msra.mxu0 0.0
    %916 = vmatprep.subr.mxu0 0.0
    %917 = vmatpush1.msra.mxu0 0.0
    %918 = vmatprep.subr.mxu0 0.0
    %919 = vmatpush1.msra.mxu0 0.0
    %920 = vmatprep.subr.mxu0 0.0
    %921 = vmatpush1.msra.mxu0 0.0
    %922 = vmatprep.subr.mxu0 0.0
    %923 = vmatpush1.msra.mxu0 0.0
    %924 = vmatprep.subr.mxu0 0.0
    %925 = vmatpush1.msra.mxu0 0.0
    %926 = vmatprep.subr.mxu0 0.0
    %927 = vmatpush1.msra.mxu0 0.0
    %928 = vmatprep.subr.mxu0 0.0
    %929 = vmatpush1.msra.mxu0 0.0
    %930 = vmatprep.subr.mxu0 0.0
    %931 = vmatpush1.msra.mxu0 0.0
    %932 = vmatprep.subr.mxu0 0.0
    %933 = vmatpush1.msra.mxu0 0.0
    %934 = vmatprep.subr.mxu0 0.0
    %935 = vmatpush1.msra.mxu0 0.0
    %936 = vmatprep.subr.mxu0 0.0
    %937 = vmatpush1.msra.mxu0 0.0
    %938 = vmatprep.subr.mxu0 0.0
    %939 = vmatpush1.msra.mxu0 0.0
    %940 = vmatprep.subr.mxu0 0.0
    %941 = vmatpush1.msra.mxu0 0.0
    %942 = vmatprep.subr.mxu0 0.0
    %943 = vmatpush1.msra.mxu0 0.0
    %944 = vmatprep.subr.mxu0 0.0
    %945 = vmatpush1.msra.mxu0 0.0
    %946 = vmatprep.subr.mxu0 0.0
    %947 = vmatpush1.msra.mxu0 0.0
    %948 = vmatprep.subr.mxu0 0.0
    %949 = vmatpush1.msra.mxu0 0.0
    %950 = vmatprep.subr.mxu0 0.0
    %951 = vmatpush1.msra.mxu0 0.0
    %952 = vmatprep.subr.mxu0 0.0
    %953 = vmatpush1.msra.mxu0 0.0
    %954 = vmatprep.subr.mxu0 0.0
    %955 = vmatpush1.msra.mxu0 0.0
    %956 = vmatprep.subr.mxu0 0.0
    %957 = vmatpush1.msra.mxu0 0.0
    %958 = vmatprep.subr.mxu0 0.0
    %959 = vmatpush1.msra.mxu0 0.0
    %960 = vmatprep.subr.mxu0 0.0
    %961 = vmatpush1.msra.mxu0 0.0
    %962 = vmatprep.subr.mxu0 0.0
    %963 = vmatpush1.msra.mxu0 0.0
    %964 = vmatprep.subr.mxu0 0.0
    %965 = vmatpush1.msra.mxu0 0.0
    %966 = vmatprep.subr.mxu0 0.0
    %967 = vmatpush1.msra.mxu0 0.0
    %968 = vmatprep.mubr.f32.mxu0 0.0
    %969 = vmatmul.mubr.f32.gmra.mrb[0].mxu0 %v902
    %v970 = vpop.f32.mrb[0].mxu0
    %v971 = vadd.f32 %v272, %v970
    %v972 = vpop.f32.mrb[0].mxu0
    %973 = vdwg.mxu0
    %v975 = vrot.slane %v971, 6
    %v977 = vadd.f32 %v260, %v975
    %v978 = vxor.u32 %v977, 2147483648
    %v979 = vmul.f32 %v978, 1.442695
    %v980 = vpow.pop %v979
    %v981 = vadd.f32 %v980, 1.0
    %v982 = vrcp.pop %v981
    %v983 = vmul.f32 1.0, %v982
    %984 = vrot.lane.b32.xlu0 %v975, 64
    %v985 = vpop.permute.xlu0 %984
    %v987 = vmul.f32 %v983, %v985
    %989 = vrot.lane.b32.xlu0 %v987, 64
    %v990 = vpop.permute.xlu0 %989
    %v992 = vadd.f32 %v260, %v990
    %v993 = vtanh.pop %v992
    %v994 = vsub.f32 1.0, %v983
    %996 = vrot.lane.b32.xlu0 %v993, 96
    %v997 = vpop.permute.xlu0 %996
    %v999 = vmul.f32 %v994, %v997
    %v1000 = vrot.slane %v898, 6
    %v1002 = vmul.f32 %v983, %v1000
    %v1003 = vadd.f32 %v999, %v1002
    %vm1004 = vcmp.gt.s32.totalorder %v74, 5
    %v1005 = vsel %vm1004, 1, 0
    %v1006 = vcvt.s32.f32 %v1005
    %1008 = vset.pattern.permute.xlu0 0
    %1009 = vperm.xlu0 %1008, %v1006
    %v1010 = vpop.permute.xlu0 %1009
    %v1013 = vrot.slane %v1003, 2
    %1014 = vrot.lane.b32.xlu0 %v1013, 96
    %v1015 = vpop.permute.xlu0 %1014
    %v1017 = vmul.f32 %v1010, %v1015
    %v1018 = vsub.f32 1.0, %v1006
    %1020 = vset.pattern.permute.xlu0 0
    %1021 = vperm.xlu0 %1020, %v1018
    %v1022 = vpop.permute.xlu0 %1021
    %v1024 = vmul.f32 %v1022, %v898
    %1026 = vrot.lane.b32.xlu0 %v1024, 96
    %v1027 = vpop.permute.xlu0 %1026
    %v1029 = vadd.f32 %v1017, %v1027
    %v1031 = vsel %vm274, %v1029, 0
    %1033 = vmatprep.subr.mxu0 0.0
    %1034 = vmatpush1.msra.mxu0 %v263
    %1035 = vmatprep.subr.mxu0 0.0
    %1036 = vmatpush1.msra.mxu0 %v264
    %1037 = vmatprep.subr.mxu0 0.0
    %1038 = vmatpush1.msra.mxu0 %v265
    %1039 = vmatprep.subr.mxu0 0.0
    %1040 = vmatpush1.msra.mxu0 %v266
    %1041 = vmatprep.subr.mxu0 0.0
    %1042 = vmatpush1.msra.mxu0 0.0
    %1043 = vmatprep.subr.mxu0 0.0
    %1044 = vmatpush1.msra.mxu0 0.0
    %1045 = vmatprep.subr.mxu0 0.0
    %1046 = vmatpush1.msra.mxu0 0.0
    %1047 = vmatprep.subr.mxu0 0.0
    %1048 = vmatpush1.msra.mxu0 0.0
    %1049 = vmatprep.subr.mxu0 0.0
    %1050 = vmatpush1.msra.mxu0 0.0
    %1051 = vmatprep.subr.mxu0 0.0
    %1052 = vmatpush1.msra.mxu0 0.0
    %1053 = vmatprep.subr.mxu0 0.0
    %1054 = vmatpush1.msra.mxu0 0.0
    %1055 = vmatprep.subr.mxu0 0.0
    %1056 = vmatpush1.msra.mxu0 0.0
    %1057 = vmatprep.subr.mxu0 0.0
    %1058 = vmatpush1.msra.mxu0 0.0
    %1059 = vmatprep.subr.mxu0 0.0
    %1060 = vmatpush1.msra.mxu0 0.0
    %1061 = vmatprep.subr.mxu0 0.0
    %1062 = vmatpush1.msra.mxu0 0.0
    %1063 = vmatprep.subr.mxu0 0.0
    %1064 = vmatpush1.msra.mxu0 0.0
    %1065 = vmatprep.subr.mxu0 0.0
    %1066 = vmatpush1.msra.mxu0 0.0
    %1067 = vmatprep.subr.mxu0 0.0
    %1068 = vmatpush1.msra.mxu0 0.0
    %1069 = vmatprep.subr.mxu0 0.0
    %1070 = vmatpush1.msra.mxu0 0.0
    %1071 = vmatprep.subr.mxu0 0.0
    %1072 = vmatpush1.msra.mxu0 0.0
    %1073 = vmatprep.subr.mxu0 0.0
    %1074 = vmatpush1.msra.mxu0 0.0
    %1075 = vmatprep.subr.mxu0 0.0
    %1076 = vmatpush1.msra.mxu0 0.0
    %1077 = vmatprep.subr.mxu0 0.0
    %1078 = vmatpush1.msra.mxu0 0.0
    %1079 = vmatprep.subr.mxu0 0.0
    %1080 = vmatpush1.msra.mxu0 0.0
    %1081 = vmatprep.subr.mxu0 0.0
    %1082 = vmatpush1.msra.mxu0 0.0
    %1083 = vmatprep.subr.mxu0 0.0
    %1084 = vmatpush1.msra.mxu0 0.0
    %1085 = vmatprep.subr.mxu0 0.0
    %1086 = vmatpush1.msra.mxu0 0.0
    %1087 = vmatprep.subr.mxu0 0.0
    %1088 = vmatpush1.msra.mxu0 0.0
    %1089 = vmatprep.subr.mxu0 0.0
    %1090 = vmatpush1.msra.mxu0 0.0
    %1091 = vmatprep.subr.mxu0 0.0
    %1092 = vmatpush1.msra.mxu0 0.0
    %1093 = vmatprep.subr.mxu0 0.0
    %1094 = vmatpush1.msra.mxu0 0.0
    %1095 = vmatprep.subr.mxu0 0.0
    %1096 = vmatpush1.msra.mxu0 0.0
    %1097 = vmatprep.mubr.f32.mxu0 0.0
    %1098 = vmatmul.mubr.f32.gmra.mrb[0].mxu0 %v1031
    %v1099 = vpop.f32.mrb[0].mxu0
    %v1100 = vadd.f32 %v272, %v1099
    %v1101 = vpop.f32.mrb[0].mxu0
    %1102 = vdwg.mxu0
    %v1104 = vrot.slane %v1100, 4
    %v1106 = vadd.f32 %v260, %v1104
    %v1107 = vxor.u32 %v1106, 2147483648
    %v1108 = vmul.f32 %v1107, 1.442695
    %v1109 = vpow.pop %v1108
    %v1110 = vadd.f32 %v1109, 1.0
    %v1111 = vrcp.pop %v1110
    %v1112 = vmul.f32 1.0, %v1111
    %1113 = vrot.lane.b32.xlu0 %v1104, 64
    %v1114 = vpop.permute.xlu0 %1113
    %v1116 = vmul.f32 %v1112, %v1114
    %1118 = vrot.lane.b32.xlu0 %v1116, 64
    %v1119 = vpop.permute.xlu0 %1118
    %v1121 = vadd.f32 %v260, %v1119
    %v1122 = vtanh.pop %v1121
    %v1123 = vsub.f32 1.0, %v1112
    %1125 = vrot.lane.b32.xlu0 %v1122, 96
    %v1126 = vpop.permute.xlu0 %1125
    %v1128 = vmul.f32 %v1123, %v1126
    %v1129 = vrot.slane %v1029, 4
    %1130 = vrot.lane.b32.xlu0 %v1129, 32
    %v1131 = vpop.permute.xlu0 %1130
    %v1133 = vmul.f32 %v1112, %v1131
    %v1134 = vadd.f32 %v1128, %v1133
    %vm1135 = vcmp.gt.s32.totalorder %v74, 6
    %v1136 = vsel %vm1135, 1, 0
    %v1137 = vcvt.s32.f32 %v1136
    %1139 = vset.pattern.permute.xlu0 0
    %1140 = vperm.xlu0 %1139, %v1137
    %v1141 = vpop.permute.xlu0 %1140
    %v1144 = vrot.slane %v1134, 4
    %1145 = vrot.lane.b32.xlu0 %v1144, 96
    %v1146 = vpop.permute.xlu0 %1145
    %v1148 = vmul.f32 %v1141, %v1146
    %v1149 = vsub.f32 1.0, %v1137
    %1151 = vset.pattern.permute.xlu0 0
    %1152 = vperm.xlu0 %1151, %v1149
    %v1153 = vpop.permute.xlu0 %1152
    %v1155 = vmul.f32 %v1153, %v1029
    %v1156 = vadd.f32 %v1148, %v1155
    %v1158 = vsel %vm274, %v1156, 0
    %1160 = vmatprep.subr.mxu0 0.0
    %1161 = vmatpush1.msra.mxu0 %v263
    %1162 = vmatprep.subr.mxu0 0.0
    %1163 = vmatpush1.msra.mxu0 %v264
    %1164 = vmatprep.subr.mxu0 0.0
    %1165 = vmatpush1.msra.mxu0 %v265
    %1166 = vmatprep.subr.mxu0 0.0
    %1167 = vmatpush1.msra.mxu0 %v266
    %1168 = vmatprep.subr.mxu0 0.0
    %1169 = vmatpush1.msra.mxu0 0.0
    %1170 = vmatprep.subr.mxu0 0.0
    %1171 = vmatpush1.msra.mxu0 0.0
    %1172 = vmatprep.subr.mxu0 0.0
    %1173 = vmatpush1.msra.mxu0 0.0
    %1174 = vmatprep.subr.mxu0 0.0
    %1175 = vmatpush1.msra.mxu0 0.0
    %1176 = vmatprep.subr.mxu0 0.0
    %1177 = vmatpush1.msra.mxu0 0.0
    %1178 = vmatprep.subr.mxu0 0.0
    %1179 = vmatpush1.msra.mxu0 0.0
    %1180 = vmatprep.subr.mxu0 0.0
    %1181 = vmatpush1.msra.mxu0 0.0
    %1182 = vmatprep.subr.mxu0 0.0
    %1183 = vmatpush1.msra.mxu0 0.0
    %1184 = vmatprep.subr.mxu0 0.0
    %1185 = vmatpush1.msra.mxu0 0.0
    %1186 = vmatprep.subr.mxu0 0.0
    %1187 = vmatpush1.msra.mxu0 0.0
    %1188 = vmatprep.subr.mxu0 0.0
    %1189 = vmatpush1.msra.mxu0 0.0
    %1190 = vmatprep.subr.mxu0 0.0
    %1191 = vmatpush1.msra.mxu0 0.0
    %1192 = vmatprep.subr.mxu0 0.0
    %1193 = vmatpush1.msra.mxu0 0.0
    %1194 = vmatprep.subr.mxu0 0.0
    %1195 = vmatpush1.msra.mxu0 0.0
    %1196 = vmatprep.subr.mxu0 0.0
    %1197 = vmatpush1.msra.mxu0 0.0
    %1198 = vmatprep.subr.mxu0 0.0
    %1199 = vmatpush1.msra.mxu0 0.0
    %1200 = vmatprep.subr.mxu0 0.0
    %1201 = vmatpush1.msra.mxu0 0.0
    %1202 = vmatprep.subr.mxu0 0.0
    %1203 = vmatpush1.msra.mxu0 0.0
    %1204 = vmatprep.subr.mxu0 0.0
    %1205 = vmatpush1.msra.mxu0 0.0
    %1206 = vmatprep.subr.mxu0 0.0
    %1207 = vmatpush1.msra.mxu0 0.0
    %1208 = vmatprep.subr.mxu0 0.0
    %1209 = vmatpush1.msra.mxu0 0.0
    %1210 = vmatprep.subr.mxu0 0.0
    %1211 = vmatpush1.msra.mxu0 0.0
    %1212 = vmatprep.subr.mxu0 0.0
    %1213 = vmatpush1.msra.mxu0 0.0
    %1214 = vmatprep.subr.mxu0 0.0
    %1215 = vmatpush1.msra.mxu0 0.0
    %1216 = vmatprep.subr.mxu0 0.0
    %1217 = vmatpush1.msra.mxu0 0.0
    %1218 = vmatprep.subr.mxu0 0.0
    %1219 = vmatpush1.msra.mxu0 0.0
    %1220 = vmatprep.subr.mxu0 0.0
    %1221 = vmatpush1.msra.mxu0 0.0
    %1222 = vmatprep.subr.mxu0 0.0
    %1223 = vmatpush1.msra.mxu0 0.0
    %1224 = vmatprep.mubr.f32.mxu0 0.0
    %1225 = vmatmul.mubr.f32.gmra.mrb[0].mxu0 %v1158
    %v1226 = vpop.f32.mrb[0].mxu0
    %v1227 = vadd.f32 %v272, %v1226
    %v1228 = vpop.f32.mrb[0].mxu0
    %1229 = vdwg.mxu0
    %v1231 = vrot.slane %v1227, 2
    %v1233 = vadd.f32 %v260, %v1231
    %v1234 = vxor.u32 %v1233, 2147483648
    %v1235 = vmul.f32 %v1234, 1.442695
    %v1236 = vpow.pop %v1235
    %v1237 = vadd.f32 %v1236, 1.0
    %v1238 = vrcp.pop %v1237
    %v1239 = vmul.f32 1.0, %v1238
    %1240 = vrot.lane.b32.xlu0 %v1231, 64
    %v1241 = vpop.permute.xlu0 %1240
    %v1243 = vmul.f32 %v1239, %v1241
    %1245 = vrot.lane.b32.xlu0 %v1243, 64
    %v1246 = vpop.permute.xlu0 %1245
    %v1248 = vadd.f32 %v260, %v1246
    %v1249 = vtanh.pop %v1248
    %v1250 = vsub.f32 1.0, %v1239
    %1252 = vrot.lane.b32.xlu0 %v1249, 96
    %v1253 = vpop.permute.xlu0 %1252
    %v1255 = vmul.f32 %v1250, %v1253
    %v1256 = vrot.slane %v1156, 2
    %1257 = vrot.lane.b32.xlu0 %v1256, 32
    %v1258 = vpop.permute.xlu0 %1257
    %v1260 = vmul.f32 %v1239, %v1258
    %v1261 = vadd.f32 %v1255, %v1260
    %vm1262 = vcmp.gt.s32.totalorder %v74, 7
    %v1263 = vsel %vm1262, 1, 0
    %v1264 = vcvt.s32.f32 %v1263
    %1266 = vset.pattern.permute.xlu0 0
    %1267 = vperm.xlu0 %1266, %v1264
    %v1268 = vpop.permute.xlu0 %1267
    %v1271 = vrot.slane %v1261, 6
    %1272 = vrot.lane.b32.xlu0 %v1271, 96
    %v1273 = vpop.permute.xlu0 %1272
    %v1275 = vmul.f32 %v1268, %v1273
    %v1276 = vsub.f32 1.0, %v1264
    %1278 = vset.pattern.permute.xlu0 0
    %1279 = vperm.xlu0 %1278, %v1276
    %v1280 = vpop.permute.xlu0 %1279
    %v1282 = vmul.f32 %v1280, %v1156
    %v1283 = vadd.f32 %v1275, %v1282
    %v1284 = vld [vmem:[%s8] sm:$0xff]
    %v1285 = vld [vmem:[%s8 + $0x8] sm:$0xff]
    %v1286 = vld [vmem:[%s8 + $0x10] sm:$0xff]
    %v1287 = vld [vmem:[%s8 + $0x18] sm:$0xff]
    %v1288 = vld [vmem:[%s9] sm:$0x1]
    %v1290 = vlaneseq
    %v1291 = vshrl.u32 %v1290, 7
    %v1292 = vsub.s32 0, %v1291
    %v1293 = vrot.slane %v1288, %v1292
    %v1296 = vsel %vm274, %v1283, 0
    %1298 = vmatprep.subr.mxu0 0.0
    %1299 = vmatpush1.msra.mxu0 %v1284
    %1300 = vmatprep.subr.mxu0 0.0
    %1301 = vmatpush1.msra.mxu0 %v1285
    %1302 = vmatprep.subr.mxu0 0.0
    %1303 = vmatpush1.msra.mxu0 %v1286
    %1304 = vmatprep.subr.mxu0 0.0
    %1305 = vmatpush1.msra.mxu0 %v1287
    %1306 = vmatprep.subr.mxu0 0.0
    %1307 = vmatpush1.msra.mxu0 0.0
    %1308 = vmatprep.subr.mxu0 0.0
    %1309 = vmatpush1.msra.mxu0 0.0
    %1310 = vmatprep.subr.mxu0 0.0
    %1311 = vmatpush1.msra.mxu0 0.0
    %1312 = vmatprep.subr.mxu0 0.0
    %1313 = vmatpush1.msra.mxu0 0.0
    %1314 = vmatprep.subr.mxu0 0.0
    %1315 = vmatpush1.msra.mxu0 0.0
    %1316 = vmatprep.subr.mxu0 0.0
    %1317 = vmatpush1.msra.mxu0 0.0
    %1318 = vmatprep.subr.mxu0 0.0
    %1319 = vmatpush1.msra.mxu0 0.0
    %1320 = vmatprep.subr.mxu0 0.0
    %1321 = vmatpush1.msra.mxu0 0.0
    %1322 = vmatprep.subr.mxu0 0.0
    %1323 = vmatpush1.msra.mxu0 0.0
    %1324 = vmatprep.subr.mxu0 0.0
    %1325 = vmatpush1.msra.mxu0 0.0
    %1326 = vmatprep.subr.mxu0 0.0
    %1327 = vmatpush1.msra.mxu0 0.0
    %1328 = vmatprep.subr.mxu0 0.0
    %1329 = vmatpush1.msra.mxu0 0.0
    %1330 = vmatprep.subr.mxu0 0.0
    %1331 = vmatpush1.msra.mxu0 0.0
    %1332 = vmatprep.subr.mxu0 0.0
    %1333 = vmatpush1.msra.mxu0 0.0
    %1334 = vmatprep.subr.mxu0 0.0
    %1335 = vmatpush1.msra.mxu0 0.0
    %1336 = vmatprep.subr.mxu0 0.0
    %1337 = vmatpush1.msra.mxu0 0.0
    %1338 = vmatprep.subr.mxu0 0.0
    %1339 = vmatpush1.msra.mxu0 0.0
    %1340 = vmatprep.subr.mxu0 0.0
    %1341 = vmatpush1.msra.mxu0 0.0
    %1342 = vmatprep.subr.mxu0 0.0
    %1343 = vmatpush1.msra.mxu0 0.0
    %1344 = vmatprep.subr.mxu0 0.0
    %1345 = vmatpush1.msra.mxu0 0.0
    %1346 = vmatprep.subr.mxu0 0.0
    %1347 = vmatpush1.msra.mxu0 0.0
    %1348 = vmatprep.subr.mxu0 0.0
    %1349 = vmatpush1.msra.mxu0 0.0
    %1350 = vmatprep.subr.mxu0 0.0
    %1351 = vmatpush1.msra.mxu0 0.0
    %1352 = vmatprep.subr.mxu0 0.0
    %1353 = vmatpush1.msra.mxu0 0.0
    %1354 = vmatprep.subr.mxu0 0.0
    %1355 = vmatpush1.msra.mxu0 0.0
    %1356 = vmatprep.subr.mxu0 0.0
    %1357 = vmatpush1.msra.mxu0 0.0
    %1358 = vmatprep.subr.mxu0 0.0
    %1359 = vmatpush1.msra.mxu0 0.0
    %1360 = vmatprep.subr.mxu0 0.0
    %1361 = vmatpush1.msra.mxu0 0.0
    %1362 = vmatprep.mubr.f32.mxu0 0.0
    %1363 = vmatmul.mubr.f32.gmra.mrb[0].mxu0 %v1296
    %v1364 = vpop.f32.mrb[0].mxu0
    %v1365 = vadd.f32 %v1293, %v1364
    %v1366 = vpop.f32.mrb[0].mxu0
    %1367 = vdwg.mxu0
    %v1368 = vld [vmem:[%s10] sm:$0xff]
    %v1369 = vld [vmem:[%s10 + $0x8] sm:$0xff]
    %v1370 = vld [vmem:[%s10 + $0x10] sm:$0xff]
    %v1371 = vld [vmem:[%s10 + $0x18] sm:$0xff]
    %v1372 = vld [vmem:[%s11] sm:$0x1]
    %v1374 = vlaneseq
    %v1375 = vshrl.u32 %v1374, 7
    %v1376 = vsub.s32 0, %v1375
    %v1377 = vrot.slane %v1372, %v1376
    %1379 = vmatprep.subr.mxu0 0.0
    %1380 = vmatpush1.msra.mxu0 %v1368
    %1381 = vmatprep.subr.mxu0 0.0
    %1382 = vmatpush1.msra.mxu0 %v1369
    %1383 = vmatprep.subr.mxu0 0.0
    %1384 = vmatpush1.msra.mxu0 %v1370
    %1385 = vmatprep.subr.mxu0 0.0
    %1386 = vmatpush1.msra.mxu0 %v1371
    %1387 = vmatprep.subr.mxu0 0.0
    %1388 = vmatpush1.msra.mxu0 0.0
    %1389 = vmatprep.subr.mxu0 0.0
    %1390 = vmatpush1.msra.mxu0 0.0
    %1391 = vmatprep.subr.mxu0 0.0
    %1392 = vmatpush1.msra.mxu0 0.0
    %1393 = vmatprep.subr.mxu0 0.0
    %1394 = vmatpush1.msra.mxu0 0.0
    %1395 = vmatprep.subr.mxu0 0.0
    %1396 = vmatpush1.msra.mxu0 0.0
    %1397 = vmatprep.subr.mxu0 0.0
    %1398 = vmatpush1.msra.mxu0 0.0
    %1399 = vmatprep.subr.mxu0 0.0
    %1400 = vmatpush1.msra.mxu0 0.0
    %1401 = vmatprep.subr.mxu0 0.0
    %1402 = vmatpush1.msra.mxu0 0.0
    %1403 = vmatprep.subr.mxu0 0.0
    %1404 = vmatpush1.msra.mxu0 0.0
    %1405 = vmatprep.subr.mxu0 0.0
    %1406 = vmatpush1.msra.mxu0 0.0
    %1407 = vmatprep.subr.mxu0 0.0
    %1408 = vmatpush1.msra.mxu0 0.0
    %1409 = vmatprep.subr.mxu0 0.0
    %1410 = vmatpush1.msra.mxu0 0.0
    %1411 = vmatprep.subr.mxu0 0.0
    %1412 = vmatpush1.msra.mxu0 0.0
    %1413 = vmatprep.subr.mxu0 0.0
    %1414 = vmatpush1.msra.mxu0 0.0
    %1415 = vmatprep.subr.mxu0 0.0
    %1416 = vmatpush1.msra.mxu0 0.0
    %1417 = vmatprep.subr.mxu0 0.0
    %1418 = vmatpush1.msra.mxu0 0.0
    %1419 = vmatprep.subr.mxu0 0.0
    %1420 = vmatpush1.msra.mxu0 0.0
    %1421 = vmatprep.subr.mxu0 0.0
    %1422 = vmatpush1.msra.mxu0 0.0
    %1423 = vmatprep.subr.mxu0 0.0
    %1424 = vmatpush1.msra.mxu0 0.0
    %1425 = vmatprep.subr.mxu0 0.0
    %1426 = vmatpush1.msra.mxu0 0.0
    %1427 = vmatprep.subr.mxu0 0.0
    %1428 = vmatpush1.msra.mxu0 0.0
    %1429 = vmatprep.subr.mxu0 0.0
    %1430 = vmatpush1.msra.mxu0 0.0
    %1431 = vmatprep.subr.mxu0 0.0
    %1432 = vmatpush1.msra.mxu0 0.0
    %1433 = vmatprep.subr.mxu0 0.0
    %1434 = vmatpush1.msra.mxu0 0.0
    %1435 = vmatprep.subr.mxu0 0.0
    %1436 = vmatpush1.msra.mxu0 0.0
    %1437 = vmatprep.subr.mxu0 0.0
    %1438 = vmatpush1.msra.mxu0 0.0
    %1439 = vmatprep.subr.mxu0 0.0
    %1440 = vmatpush1.msra.mxu0 0.0
    %1441 = vmatprep.subr.mxu0 0.0
    %1442 = vmatpush1.msra.mxu0 0.0
    %1443 = vmatprep.mubr.f32.mxu0 0.0
    %1444 = vmatmul.mubr.f32.gmra.mrb[0].mxu0 %v1296
    %v1445 = vpop.f32.mrb[0].mxu0
    %v1446 = vadd.f32 %v1377, %v1445
    %v1447 = vpop.f32.mrb[0].mxu0
    %1448 = vdwg.mxu0
    %v1449 = vmul.f32 %v1446, 0.5
    %v1450 = vmul.f32 %v1449, 1.442695
    %v1451 = vpow.pop %v1450
    %v1452 = vld [vmem:[%s2] sm:$0x3]
    %v1453 = vmul.f32 %v1451, %v1452
    %v1454 = vadd.f32 %v1365, %v1453
    %v1455 = vmul.f32 %v1446, 1.442695
    %v1456 = vpow.pop %v1455
    %v1457 = vmul.f32 %v1365, %v1365
    %v1458 = vadd.f32 %v1456, %v1457
    %v1459 = vsub.f32 %v1458, 1.0
    %v1460 = vsub.f32 %v1459, %v1446
    %vm1461 = vcmask 123904
    %v1462 = vsel %vm1461, %v1460, 0.0
    %1463 = vadd.xlane.f32.xlu0 %v1462
    %v1464 = vpop.xlane.xlu0 %1463
    %v1465 = vmul.f32 %v1464, 0.5
    %vm1466 = vcmask 1024
    %v1467 = vsel %vm1466, %v1465, 0.0
    %1468 = vadd.xlane.f32.xlu0 %v1467
    %v1469 = vpop.xlane.xlu0 %1468
    %v1470 = vrot.slane %v1469, 4
    %v1471 = vadd.f32 %v1469, %v1470
    %v1472 = vrot.slane %v1471, 2
    %v1473 = vadd.f32 %v1471, %v1472
    %v1474 = vrot.slane %v1473, 1
    %v1475 = vadd.f32 %v1473, %v1474
    %s1476 = vtos %v1475
    %v1477 = vstv %s1476
    %v1478 = vrcp.pop 2.0
    %v1479 = vmul.f32 %v1477, %v1478
    %vm1480 = vcmask 0
    %1481 = vst.msk [vmem:[#allocation2] sm:$0x1] %vm1480, %v1479
    %v1482 = vld [vmem:[%s12] sm:$0xff]
    %v1483 = vld [vmem:[%s12 + $0x8] sm:$0xff]
    %v1484 = vld [vmem:[%s13] sm:$0x1]
    %v1486 = vlaneseq
    %v1487 = vshrl.u32 %v1486, 7
    %v1488 = vsub.s32 0, %v1487
    %v1489 = vrot.slane %v1484, %v1488
    %v1492 = vsel %vm91, %v1454, 0
    %1494 = vmatprep.subr.mxu0 0.0
    %1495 = vmatpush1.msra.mxu0 %v1482
    %1496 = vmatprep.subr.mxu0 0.0
    %1497 = vmatpush1.msra.mxu0 %v1483
    %1498 = vmatprep.subr.mxu0 0.0
    %1499 = vmatpush1.msra.mxu0 0.0
    %1500 = vmatprep.subr.mxu0 0.0
    %1501 = vmatpush1.msra.mxu0 0.0
    %1502 = vmatprep.subr.mxu0 0.0
    %1503 = vmatpush1.msra.mxu0 0.0
    %1504 = vmatprep.subr.mxu0 0.0
    %1505 = vmatpush1.msra.mxu0 0.0
    %1506 = vmatprep.subr.mxu0 0.0
    %1507 = vmatpush1.msra.mxu0 0.0
    %1508 = vmatprep.subr.mxu0 0.0
    %1509 = vmatpush1.msra.mxu0 0.0
    %1510 = vmatprep.subr.mxu0 0.0
    %1511 = vmatpush1.msra.mxu0 0.0
    %1512 = vmatprep.subr.mxu0 0.0
    %1513 = vmatpush1.msra.mxu0 0.0
    %1514 = vmatprep.subr.mxu0 0.0
    %1515 = vmatpush1.msra.mxu0 0.0
    %1516 = vmatprep.subr.mxu0 0.0
    %1517 = vmatpush1.msra.mxu0 0.0
    %1518 = vmatprep.subr.mxu0 0.0
    %1519 = vmatpush1.msra.mxu0 0.0
    %1520 = vmatprep.subr.mxu0 0.0
    %1521 = vmatpush1.msra.mxu0 0.0
    %1522 = vmatprep.subr.mxu0 0.0
    %1523 = vmatpush1.msra.mxu0 0.0
    %1524 = vmatprep.subr.mxu0 0.0
    %1525 = vmatpush1.msra.mxu0 0.0
    %1526 = vmatprep.subr.mxu0 0.0
    %1527 = vmatpush1.msra.mxu0 0.0
    %1528 = vmatprep.subr.mxu0 0.0
    %1529 = vmatpush1.msra.mxu0 0.0
    %1530 = vmatprep.subr.mxu0 0.0
    %1531 = vmatpush1.msra.mxu0 0.0
    %1532 = vmatprep.subr.mxu0 0.0
    %1533 = vmatpush1.msra.mxu0 0.0
    %1534 = vmatprep.subr.mxu0 0.0
    %1535 = vmatpush1.msra.mxu0 0.0
    %1536 = vmatprep.subr.mxu0 0.0
    %1537 = vmatpush1.msra.mxu0 0.0
    %1538 = vmatprep.subr.mxu0 0.0
    %1539 = vmatpush1.msra.mxu0 0.0
    %1540 = vmatprep.subr.mxu0 0.0
    %1541 = vmatpush1.msra.mxu0 0.0
    %1542 = vmatprep.subr.mxu0 0.0
    %1543 = vmatpush1.msra.mxu0 0.0
    %1544 = vmatprep.subr.mxu0 0.0
    %1545 = vmatpush1.msra.mxu0 0.0
    %1546 = vmatprep.subr.mxu0 0.0
    %1547 = vmatpush1.msra.mxu0 0.0
    %1548 = vmatprep.subr.mxu0 0.0
    %1549 = vmatpush1.msra.mxu0 0.0
    %1550 = vmatprep.subr.mxu0 0.0
    %1551 = vmatpush1.msra.mxu0 0.0
    %1552 = vmatprep.subr.mxu0 0.0
    %1553 = vmatpush1.msra.mxu0 0.0
    %1554 = vmatprep.subr.mxu0 0.0
    %1555 = vmatpush1.msra.mxu0 0.0
    %1556 = vmatprep.subr.mxu0 0.0
    %1557 = vmatpush1.msra.mxu0 0.0
    %1558 = vmatprep.mubr.f32.mxu0 0.0
    %1559 = vmatmul.mubr.f32.gmra.mrb[0].mxu0 %v1492
    %v1560 = vpop.f32.mrb[0].mxu0
    %v1561 = vadd.f32 %v1489, %v1560
    %v1562 = vpop.f32.mrb[0].mxu0
    %1563 = vdwg.mxu0
    %v1564 = vld [vmem:[%s14] sm:$0xff]
    %1565 = vmatprep.subr.mxu0 0.0
    %1566 = vmatpush1.msra.mxu0 %v1564
    %1567 = vmatprep.subr.mxu0 0.0
    %1568 = vmatpush1.msra.mxu0 0.0
    %1569 = vmatprep.subr.mxu0 0.0
    %1570 = vmatpush1.msra.mxu0 0.0
    %1571 = vmatprep.subr.mxu0 0.0
    %1572 = vmatpush1.msra.mxu0 0.0
    %1573 = vmatprep.subr.mxu0 0.0
    %1574 = vmatpush1.msra.mxu0 0.0
    %1575 = vmatprep.subr.mxu0 0.0
    %1576 = vmatpush1.msra.mxu0 0.0
    %1577 = vmatprep.subr.mxu0 0.0
    %1578 = vmatpush1.msra.mxu0 0.0
    %1579 = vmatprep.subr.mxu0 0.0
    %1580 = vmatpush1.msra.mxu0 0.0
    %1581 = vmatprep.subr.mxu0 0.0
    %1582 = vmatpush1.msra.mxu0 0.0
    %1583 = vmatprep.subr.mxu0 0.0
    %1584 = vmatpush1.msra.mxu0 0.0
    %1585 = vmatprep.subr.mxu0 0.0
    %1586 = vmatpush1.msra.mxu0 0.0
    %1587 = vmatprep.subr.mxu0 0.0
    %1588 = vmatpush1.msra.mxu0 0.0
    %1589 = vmatprep.subr.mxu0 0.0
    %1590 = vmatpush1.msra.mxu0 0.0
    %1591 = vmatprep.subr.mxu0 0.0
    %1592 = vmatpush1.msra.mxu0 0.0
    %1593 = vmatprep.subr.mxu0 0.0
    %1594 = vmatpush1.msra.mxu0 0.0
    %1595 = vmatprep.subr.mxu0 0.0
    %1596 = vmatpush1.msra.mxu0 0.0
    %1597 = vmatprep.subr.mxu0 0.0
    %1598 = vmatpush1.msra.mxu0 0.0
    %1599 = vmatprep.subr.mxu0 0.0
    %1600 = vmatpush1.msra.mxu0 0.0
    %1601 = vmatprep.subr.mxu0 0.0
    %1602 = vmatpush1.msra.mxu0 0.0
    %1603 = vmatprep.subr.mxu0 0.0
    %1604 = vmatpush1.msra.mxu0 0.0
    %1605 = vmatprep.subr.mxu0 0.0
    %1606 = vmatpush1.msra.mxu0 0.0
    %1607 = vmatprep.subr.mxu0 0.0
    %1608 = vmatpush1.msra.mxu0 0.0
    %1609 = vmatprep.subr.mxu0 0.0
    %1610 = vmatpush1.msra.mxu0 0.0
    %1611 = vmatprep.subr.mxu0 0.0
    %1612 = vmatpush1.msra.mxu0 0.0
    %1613 = vmatprep.subr.mxu0 0.0
    %1614 = vmatpush1.msra.mxu0 0.0
    %1615 = vmatprep.subr.mxu0 0.0
    %1616 = vmatpush1.msra.mxu0 0.0
    %1617 = vmatprep.subr.mxu0 0.0
    %1618 = vmatpush1.msra.mxu0 0.0
    %1619 = vmatprep.subr.mxu0 0.0
    %1620 = vmatpush1.msra.mxu0 0.0
    %1621 = vmatprep.subr.mxu0 0.0
    %1622 = vmatpush1.msra.mxu0 0.0
    %1623 = vmatprep.subr.mxu0 0.0
    %1624 = vmatpush1.msra.mxu0 0.0
    %1625 = vmatprep.subr.mxu0 0.0
    %1626 = vmatpush1.msra.mxu0 0.0
    %1627 = vmatprep.subr.mxu0 0.0
    %1628 = vmatpush1.msra.mxu0 0.0
    %1629 = vmatprep.mubr.f32.mxu0 0.0
    %1630 = vmatmul.mubr.f32.gmra.mrb[0].mxu0 %v183
    %v1631 = vpop.f32.mrb[0].mxu0
    %v1632 = vadd.f32 0.0, %v1631
    %v1633 = vpop.f32.mrb[0].mxu0
    %1634 = vmatprep.mubr.f32.mxu0 0.0
    %1635 = vmatmul.mubr.f32.gmra.mrb[0].mxu0 %v186
    %v1636 = vpop.f32.mrb[0].mxu0
    %v1637 = vadd.f32 0.0, %v1636
    %v1638 = vpop.f32.mrb[0].mxu0
    %1639 = vdwg.mxu0
    %v1640 = vld [vmem:[%s15] sm:$0xff]
    %v1641 = vld [vmem:[%s15 + $0x8] sm:$0xff]
    %v1642 = vld [vmem:[%s17] sm:$0x1]
    %v1644 = vlaneseq
    %v1645 = vshrl.u32 %v1644, 7
    %v1646 = vsub.s32 0, %v1645
    %v1647 = vrot.slane %v1642, %v1646
    %1649 = vmatprep.subr.mxu0 0.0
    %1650 = vmatpush1.msra.mxu0 %v1640
    %1651 = vmatprep.subr.mxu0 0.0
    %1652 = vmatpush1.msra.mxu0 %v1641
    %1653 = vmatprep.subr.mxu0 0.0
    %1654 = vmatpush1.msra.mxu0 0.0
    %1655 = vmatprep.subr.mxu0 0.0
    %1656 = vmatpush1.msra.mxu0 0.0
    %1657 = vmatprep.subr.mxu0 0.0
    %1658 = vmatpush1.msra.mxu0 0.0
    %1659 = vmatprep.subr.mxu0 0.0
    %1660 = vmatpush1.msra.mxu0 0.0
    %1661 = vmatprep.subr.mxu0 0.0
    %1662 = vmatpush1.msra.mxu0 0.0
    %1663 = vmatprep.subr.mxu0 0.0
    %1664 = vmatpush1.msra.mxu0 0.0
    %1665 = vmatprep.subr.mxu0 0.0
    %1666 = vmatpush1.msra.mxu0 0.0
    %1667 = vmatprep.subr.mxu0 0.0
    %1668 = vmatpush1.msra.mxu0 0.0
    %1669 = vmatprep.subr.mxu0 0.0
    %1670 = vmatpush1.msra.mxu0 0.0
    %1671 = vmatprep.subr.mxu0 0.0
    %1672 = vmatpush1.msra.mxu0 0.0
    %1673 = vmatprep.subr.mxu0 0.0
    %1674 = vmatpush1.msra.mxu0 0.0
    %1675 = vmatprep.subr.mxu0 0.0
    %1676 = vmatpush1.msra.mxu0 0.0
    %1677 = vmatprep.subr.mxu0 0.0
    %1678 = vmatpush1.msra.mxu0 0.0
    %1679 = vmatprep.subr.mxu0 0.0
    %1680 = vmatpush1.msra.mxu0 0.0
    %1681 = vmatprep.subr.mxu0 0.0
    %1682 = vmatpush1.msra.mxu0 0.0
    %1683 = vmatprep.subr.mxu0 0.0
    %1684 = vmatpush1.msra.mxu0 0.0
    %1685 = vmatprep.subr.mxu0 0.0
    %1686 = vmatpush1.msra.mxu0 0.0
    %1687 = vmatprep.subr.mxu0 0.0
    %1688 = vmatpush1.msra.mxu0 0.0
    %1689 = vmatprep.subr.mxu0 0.0
    %1690 = vmatpush1.msra.mxu0 0.0
    %1691 = vmatprep.subr.mxu0 0.0
    %1692 = vmatpush1.msra.mxu0 0.0
    %1693 = vmatprep.subr.mxu0 0.0
    %1694 = vmatpush1.msra.mxu0 0.0
    %1695 = vmatprep.subr.mxu0 0.0
    %1696 = vmatpush1.msra.mxu0 0.0
    %1697 = vmatprep.subr.mxu0 0.0
    %1698 = vmatpush1.msra.mxu0 0.0
    %1699 = vmatprep.subr.mxu0 0.0
    %1700 = vmatpush1.msra.mxu0 0.0
    %1701 = vmatprep.subr.mxu0 0.0
    %1702 = vmatpush1.msra.mxu0 0.0
    %1703 = vmatprep.subr.mxu0 0.0
    %1704 = vmatpush1.msra.mxu0 0.0
    %1705 = vmatprep.subr.mxu0 0.0
    %1706 = vmatpush1.msra.mxu0 0.0
    %1707 = vmatprep.subr.mxu0 0.0
    %1708 = vmatpush1.msra.mxu0 0.0
    %1709 = vmatprep.subr.mxu0 0.0
    %1710 = vmatpush1.msra.mxu0 0.0
    %1711 = vmatprep.subr.mxu0 0.0
    %1712 = vmatpush1.msra.mxu0 0.0
    %1713 = vmatprep.mubr.f32.mxu0 0.0
    %1714 = vmatmul.mubr.f32.gmra.mrb[0].mxu0 %v1492
    %v1715 = vpop.f32.mrb[0].mxu0
    %v1716 = vadd.f32 %v1647, %v1715
    %v1717 = vpop.f32.mrb[0].mxu0
    %1718 = vdwg.mxu0
    %v1719 = vadd.f32 %v1632, %v1716
    %v1720 = vld [vmem:[%s16] sm:$0xff]
    %v1721 = vld [vmem:[%s16 + $0x8] sm:$0xff]
    %v1722 = vld [vmem:[%s16 + $0x10] sm:$0xff]
    %v1723 = vld [vmem:[%s16 + $0x18] sm:$0xff]
    %v1724 = vld [vmem:[%s18] sm:$0x1]
    %v1726 = vlaneseq
    %v1727 = vshrl.u32 %v1726, 7
    %v1728 = vsub.s32 0, %v1727
    %v1729 = vrot.slane %v1724, %v1728
    %v1732 = vsel %vm274, %v1561, 0
    %1734 = vmatprep.subr.mxu0 0.0
    %1735 = vmatpush1.msra.mxu0 %v1720
    %1736 = vmatprep.subr.mxu0 0.0
    %1737 = vmatpush1.msra.mxu0 %v1721
    %1738 = vmatprep.subr.mxu0 0.0
    %1739 = vmatpush1.msra.mxu0 %v1722
    %1740 = vmatprep.subr.mxu0 0.0
    %1741 = vmatpush1.msra.mxu0 %v1723
    %1742 = vmatprep.subr.mxu0 0.0
    %1743 = vmatpush1.msra.mxu0 0.0
    %1744 = vmatprep.subr.mxu0 0.0
    %1745 = vmatpush1.msra.mxu0 0.0
    %1746 = vmatprep.subr.mxu0 0.0
    %1747 = vmatpush1.msra.mxu0 0.0
    %1748 = vmatprep.subr.mxu0 0.0
    %1749 = vmatpush1.msra.mxu0 0.0
    %1750 = vmatprep.subr.mxu0 0.0
    %1751 = vmatpush1.msra.mxu0 0.0
    %1752 = vmatprep.subr.mxu0 0.0
    %1753 = vmatpush1.msra.mxu0 0.0
    %1754 = vmatprep.subr.mxu0 0.0
    %1755 = vmatpush1.msra.mxu0 0.0
    %1756 = vmatprep.subr.mxu0 0.0
    %1757 = vmatpush1.msra.mxu0 0.0
    %1758 = vmatprep.subr.mxu0 0.0
    %1759 = vmatpush1.msra.mxu0 0.0
    %1760 = vmatprep.subr.mxu0 0.0
    %1761 = vmatpush1.msra.mxu0 0.0
    %1762 = vmatprep.subr.mxu0 0.0
    %1763 = vmatpush1.msra.mxu0 0.0
    %1764 = vmatprep.subr.mxu0 0.0
    %1765 = vmatpush1.msra.mxu0 0.0
    %1766 = vmatprep.subr.mxu0 0.0
    %1767 = vmatpush1.msra.mxu0 0.0
    %1768 = vmatprep.subr.mxu0 0.0
    %1769 = vmatpush1.msra.mxu0 0.0
    %1770 = vmatprep.subr.mxu0 0.0
    %1771 = vmatpush1.msra.mxu0 0.0
    %1772 = vmatprep.subr.mxu0 0.0
    %1773 = vmatpush1.msra.mxu0 0.0
    %1774 = vmatprep.subr.mxu0 0.0
    %1775 = vmatpush1.msra.mxu0 0.0
    %1776 = vmatprep.subr.mxu0 0.0
    %1777 = vmatpush1.msra.mxu0 0.0
    %1778 = vmatprep.subr.mxu0 0.0
    %1779 = vmatpush1.msra.mxu0 0.0
    %1780 = vmatprep.subr.mxu0 0.0
    %1781 = vmatpush1.msra.mxu0 0.0
    %1782 = vmatprep.subr.mxu0 0.0
    %1783 = vmatpush1.msra.mxu0 0.0
    %1784 = vmatprep.subr.mxu0 0.0
    %1785 = vmatpush1.msra.mxu0 0.0
    %1786 = vmatprep.subr.mxu0 0.0
    %1787 = vmatpush1.msra.mxu0 0.0
    %1788 = vmatprep.subr.mxu0 0.0
    %1789 = vmatpush1.msra.mxu0 0.0
    %1790 = vmatprep.subr.mxu0 0.0
    %1791 = vmatpush1.msra.mxu0 0.0
    %1792 = vmatprep.subr.mxu0 0.0
    %1793 = vmatpush1.msra.mxu0 0.0
    %1794 = vmatprep.subr.mxu0 0.0
    %1795 = vmatpush1.msra.mxu0 0.0
    %1796 = vmatprep.subr.mxu0 0.0
    %1797 = vmatpush1.msra.mxu0 0.0
    %1798 = vmatprep.mubr.f32.mxu0 0.0
    %1799 = vmatmul.mubr.f32.gmra.mrb[0].mxu0 %v1732
    %v1800 = vpop.f32.mrb[0].mxu0
    %v1801 = vadd.f32 %v1729, %v1800
    %v1802 = vpop.f32.mrb[0].mxu0
    %1803 = vdwg.mxu0
    %v1804 = vadd.f32 %v1719, %v1801
    %v1805 = vxor.u32 %v1804, 2147483648
    %v1806 = vmul.f32 %v1805, 1.442695
    %v1807 = vpow.pop %v1806
    %v1808 = vadd.f32 %v1807, 1.0
    %v1809 = vrcp.pop %v1808
    %v1810 = vmul.f32 1.0, %v1809
    %1812 = vrot.lane.b32.xlu0 %v1801, 64
    %v1813 = vpop.permute.xlu0 %1812
    %v1815 = vmul.f32 %v1810, %v1813
    %1817 = vrot.lane.b32.xlu0 %v1815, 64
    %v1818 = vpop.permute.xlu0 %1817
    %v1820 = vadd.f32 %v1719, %v1818
    %v1821 = vtanh.pop %v1820
    %v1822 = vsub.f32 1.0, %v1810
    %1824 = vrot.lane.b32.xlu0 %v1821, 96
    %v1825 = vpop.permute.xlu0 %1824
    %v1827 = vmul.f32 %v1822, %v1825
    %1828 = vrot.lane.b32.xlu0 %v1561, 32
    %v1829 = vpop.permute.xlu0 %1828
    %v1831 = vmul.f32 %v1810, %v1829
    %v1832 = vadd.f32 %v1827, %v1831
    %v1833 = vld [vmem:[%s19] sm:$0xff]
    %v1834 = vld [vmem:[%s19 + $0x8] sm:$0xff]
    %v1835 = vld [vmem:[%s19 + $0x10] sm:$0xff]
    %v1836 = vld [vmem:[%s19 + $0x18] sm:$0xff]
    %v1837 = vld [vmem:[%s20] sm:$0x1]
    %v1839 = vlaneseq
    %v1840 = vshrl.u32 %v1839, 7
    %v1841 = vsub.s32 0, %v1840
    %v1842 = vrot.slane %v1837, %v1841
    %1845 = vrot.lane.b32.xlu0 %v1832, 96
    %v1846 = vpop.permute.xlu0 %1845
    %v1847 = vsel %vm274, %v1846, 0
    %1849 = vmatprep.subr.mxu0 0.0
    %1850 = vmatpush1.msra.mxu0 %v1833
    %1851 = vmatprep.subr.mxu0 0.0
    %1852 = vmatpush1.msra.mxu0 %v1834
    %1853 = vmatprep.subr.mxu0 0.0
    %1854 = vmatpush1.msra.mxu0 %v1835
    %1855 = vmatprep.subr.mxu0 0.0
    %1856 = vmatpush1.msra.mxu0 %v1836
    %1857 = vmatprep.subr.mxu0 0.0
    %1858 = vmatpush1.msra.mxu0 0.0
    %1859 = vmatprep.subr.mxu0 0.0
    %1860 = vmatpush1.msra.mxu0 0.0
    %1861 = vmatprep.subr.mxu0 0.0
    %1862 = vmatpush1.msra.mxu0 0.0
    %1863 = vmatprep.subr.mxu0 0.0
    %1864 = vmatpush1.msra.mxu0 0.0
    %1865 = vmatprep.subr.mxu0 0.0
    %1866 = vmatpush1.msra.mxu0 0.0
    %1867 = vmatprep.subr.mxu0 0.0
    %1868 = vmatpush1.msra.mxu0 0.0
    %1869 = vmatprep.subr.mxu0 0.0
    %1870 = vmatpush1.msra.mxu0 0.0
    %1871 = vmatprep.subr.mxu0 0.0
    %1872 = vmatpush1.msra.mxu0 0.0
    %1873 = vmatprep.subr.mxu0 0.0
    %1874 = vmatpush1.msra.mxu0 0.0
    %1875 = vmatprep.subr.mxu0 0.0
    %1876 = vmatpush1.msra.mxu0 0.0
    %1877 = vmatprep.subr.mxu0 0.0
    %1878 = vmatpush1.msra.mxu0 0.0
    %1879 = vmatprep.subr.mxu0 0.0
    %1880 = vmatpush1.msra.mxu0 0.0
    %1881 = vmatprep.subr.mxu0 0.0
    %1882 = vmatpush1.msra.mxu0 0.0
    %1883 = vmatprep.subr.mxu0 0.0
    %1884 = vmatpush1.msra.mxu0 0.0
    %1885 = vmatprep.subr.mxu0 0.0
    %1886 = vmatpush1.msra.mxu0 0.0
    %1887 = vmatprep.subr.mxu0 0.0
    %1888 = vmatpush1.msra.mxu0 0.0
    %1889 = vmatprep.subr.mxu0 0.0
    %1890 = vmatpush1.msra.mxu0 0.0
    %1891 = vmatprep.subr.mxu0 0.0
    %1892 = vmatpush1.msra.mxu0 0.0
    %1893 = vmatprep.subr.mxu0 0.0
    %1894 = vmatpush1.msra.mxu0 0.0
    %1895 = vmatprep.subr.mxu0 0.0
    %1896 = vmatpush1.msra.mxu0 0.0
    %1897 = vmatprep.subr.mxu0 0.0
    %1898 = vmatpush1.msra.mxu0 0.0
    %1899 = vmatprep.subr.mxu0 0.0
    %1900 = vmatpush1.msra.mxu0 0.0
    %1901 = vmatprep.subr.mxu0 0.0
    %1902 = vmatpush1.msra.mxu0 0.0
    %1903 = vmatprep.subr.mxu0 0.0
    %1904 = vmatpush1.msra.mxu0 0.0
    %1905 = vmatprep.subr.mxu0 0.0
    %1906 = vmatpush1.msra.mxu0 0.0
    %1907 = vmatprep.subr.mxu0 0.0
    %1908 = vmatpush1.msra.mxu0 0.0
    %1909 = vmatprep.subr.mxu0 0.0
    %1910 = vmatpush1.msra.mxu0 0.0
    %1911 = vmatprep.subr.mxu0 0.0
    %1912 = vmatpush1.msra.mxu0 0.0
    %1913 = vmatprep.mubr.f32.mxu0 0.0
    %1914 = vmatmul.mubr.f32.gmra.mrb[0].mxu0 %v1847
    %v1915 = vpop.f32.mrb[0].mxu0
    %v1916 = vadd.f32 %v1842, %v1915
    %v1917 = vpop.f32.mrb[0].mxu0
    %1918 = vdwg.mxu0
    %v1919 = vsel %vm1461, %v1916, -inf
    %1920 = vmax.xlane.f32.xlu0 %v1919
    %v1921 = vpop.xlane.xlu0 %1920
    %v1922 = vsub.f32 %v1916, %v1921
    %v1923 = vmul.f32 %v1922, 1.442695
    %v1924 = vpow.pop %v1923
    %v1925 = vsel %vm1461, %v1924, 0.0
    %1926 = vadd.xlane.f32.xlu0 %v1925
    %v1927 = vpop.xlane.xlu0 %1926
    %v1928 = vlog2.pop %v1927
    %v1929 = vmul.f32 %v1928, 0.6931472
    %v1930 = vadd.f32 %v1921, %v1929
    %v1931 = vrot.slane %v87, 2
    %v1933 = vmul.f32 %v1916, %v1931
    %v1934 = vsel %vm1461, %v1933, 0.0
    %1935 = vadd.xlane.f32.xlu0 %v1934
    %v1936 = vpop.xlane.xlu0 %1935
    %vm1937 = vcmp.ne.s32.totalorder %v72, 0
    %v1938 = vsel %vm1937, 1, 0
    %v1939 = vcvt.s32.f32 %v1938
    %v1940 = vsub.f32 %v1930, %v1936
    %v1942 = vrot.slane %v1939, 2
    %v1944 = vmul.f32 %v1940, %v1942
    %v1945 = vsel %vm1466, %v1944, 0.0
    %1946 = vadd.xlane.f32.xlu0 %v1945
    %v1947 = vpop.xlane.xlu0 %1946
    %v1948 = vrot.slane %v1947, 4
    %v1949 = vadd.f32 %v1947, %v1948
    %v1950 = vrot.slane %v1949, 2
    %v1951 = vadd.f32 %v1949, %v1950
    %v1952 = vrot.slane %v1951, 1
    %v1953 = vadd.f32 %v1951, %v1952
    %s1954 = vtos %v1953
    %v1955 = vstv %s1954
    %v1956 = vadd.f32 %v1955, 0.0
    %v1957 = vsel %vm1466, %v1942, 0.0
    %1958 = vadd.xlane.f32.xlu0 %v1957
    %v1959 = vpop.xlane.xlu0 %1958
    %v1960 = vrot.slane %v1959, 4
    %v1961 = vadd.f32 %v1959, %v1960
    %v1962 = vrot.slane %v1961, 2
    %v1963 = vadd.f32 %v1961, %v1962
    %v1964 = vrot.slane %v1963, 1
    %v1965 = vadd.f32 %v1963, %v1964
    %s1966 = vtos %v1965
    %v1967 = vstv %s1966
    %v1968 = vadd.f32 %v1967, 0.0
    %v1970 = vrot.slane %v1716, 6
    %v1972 = vadd.f32 %v1632, %v1970
    %1973 = vmatprep.subr.mxu0 0.0
    %1974 = vmatpush1.msra.mxu0 %v1720
    %1975 = vmatprep.subr.mxu0 0.0
    %1976 = vmatpush1.msra.mxu0 %v1721
    %1977 = vmatprep.subr.mxu0 0.0
    %1978 = vmatpush1.msra.mxu0 %v1722
    %1979 = vmatprep.subr.mxu0 0.0
    %1980 = vmatpush1.msra.mxu0 %v1723
    %1981 = vmatprep.subr.mxu0 0.0
    %1982 = vmatpush1.msra.mxu0 0.0
    %1983 = vmatprep.subr.mxu0 0.0
    %1984 = vmatpush1.msra.mxu0 0.0
    %1985 = vmatprep.subr.mxu0 0.0
    %1986 = vmatpush1.msra.mxu0 0.0
    %1987 = vmatprep.subr.mxu0 0.0
    %1988 = vmatpush1.msra.mxu0 0.0
    %1989 = vmatprep.subr.mxu0 0.0
    %1990 = vmatpush1.msra.mxu0 0.0
    %1991 = vmatprep.subr.mxu0 0.0
    %1992 = vmatpush1.msra.mxu0 0.0
    %1993 = vmatprep.subr.mxu0 0.0
    %1994 = vmatpush1.msra.mxu0 0.0
    %1995 = vmatprep.subr.mxu0 0.0
    %1996 = vmatpush1.msra.mxu0 0.0
    %1997 = vmatprep.subr.mxu0 0.0
    %1998 = vmatpush1.msra.mxu0 0.0
    %1999 = vmatprep.subr.mxu0 0.0
    %2000 = vmatpush1.msra.mxu0 0.0
    %2001 = vmatprep.subr.mxu0 0.0
    %2002 = vmatpush1.msra.mxu0 0.0
    %2003 = vmatprep.subr.mxu0 0.0
    %2004 = vmatpush1.msra.mxu0 0.0
    %2005 = vmatprep.subr.mxu0 0.0
    %2006 = vmatpush1.msra.mxu0 0.0
    %2007 = vmatprep.subr.mxu0 0.0
    %2008 = vmatpush1.msra.mxu0 0.0
    %2009 = vmatprep.subr.mxu0 0.0
    %2010 = vmatpush1.msra.mxu0 0.0
    %2011 = vmatprep.subr.mxu0 0.0
    %2012 = vmatpush1.msra.mxu0 0.0
    %2013 = vmatprep.subr.mxu0 0.0
    %2014 = vmatpush1.msra.mxu0 0.0
    %2015 = vmatprep.subr.mxu0 0.0
    %2016 = vmatpush1.msra.mxu0 0.0
    %2017 = vmatprep.subr.mxu0 0.0
    %2018 = vmatpush1.msra.mxu0 0.0
    %2019 = vmatprep.subr.mxu0 0.0
    %2020 = vmatpush1.msra.mxu0 0.0
    %2021 = vmatprep.subr.mxu0 0.0
    %2022 = vmatpush1.msra.mxu0 0.0
    %2023 = vmatprep.subr.mxu0 0.0
    %2024 = vmatpush1.msra.mxu0 0.0
    %2025 = vmatprep.subr.mxu0 0.0
    %2026 = vmatpush1.msra.mxu0 0.0
    %2027 = vmatprep.subr.mxu0 0.0
    %2028 = vmatpush1.msra.mxu0 0.0
    %2029 = vmatprep.subr.mxu0 0.0
    %2030 = vmatpush1.msra.mxu0 0.0
    %2031 = vmatprep.subr.mxu0 0.0
    %2032 = vmatpush1.msra.mxu0 0.0
    %2033 = vmatprep.subr.mxu0 0.0
    %2034 = vmatpush1.msra.mxu0 0.0
    %2035 = vmatprep.subr.mxu0 0.0
    %2036 = vmatpush1.msra.mxu0 0.0
    %2037 = vmatprep.mubr.f32.mxu0 0.0
    %2038 = vmatmul.mubr.f32.gmra.mrb[0].mxu0 %v1847
    %v2039 = vpop.f32.mrb[0].mxu0
    %v2040 = vadd.f32 %v1729, %v2039
    %v2041 = vpop.f32.mrb[0].mxu0
    %2042 = vdwg.mxu0
    %v2044 = vrot.slane %v2040, 6
    %v2046 = vadd.f32 %v1972, %v2044
    %v2047 = vxor.u32 %v2046, 2147483648
    %v2048 = vmul.f32 %v2047, 1.442695
    %v2049 = vpow.pop %v2048
    %v2050 = vadd.f32 %v2049, 1.0
    %v2051 = vrcp.pop %v2050
    %v2052 = vmul.f32 1.0, %v2051
    %2053 = vrot.lane.b32.xlu0 %v2044, 64
    %v2054 = vpop.permute.xlu0 %2053
    %v2056 = vmul.f32 %v2052, %v2054
    %2058 = vrot.lane.b32.xlu0 %v2056, 64
    %v2059 = vpop.permute.xlu0 %2058
    %v2061 = vadd.f32 %v1972, %v2059
    %v2062 = vtanh.pop %v2061
    %v2063 = vsub.f32 1.0, %v2052
    %2065 = vrot.lane.b32.xlu0 %v2062, 96
    %v2066 = vpop.permute.xlu0 %2065
    %v2068 = vmul.f32 %v2063, %v2066
    %v2069 = vrot.slane %v1832, 6
    %v2071 = vmul.f32 %v2052, %v2069
    %v2072 = vadd.f32 %v2068, %v2071
    %v2074 = vrot.slane %v2072, 2
    %2075 = vrot.lane.b32.xlu0 %v2074, 96
    %v2076 = vpop.permute.xlu0 %2075
    %v2077 = vsel %vm274, %v2076, 0
    %2079 = vmatprep.subr.mxu0 0.0
    %2080 = vmatpush1.msra.mxu0 %v1833
    %2081 = vmatprep.subr.mxu0 0.0
    %2082 = vmatpush1.msra.mxu0 %v1834
    %2083 = vmatprep.subr.mxu0 0.0
    %2084 = vmatpush1.msra.mxu0 %v1835
    %2085 = vmatprep.subr.mxu0 0.0
    %2086 = vmatpush1.msra.mxu0 %v1836
    %2087 = vmatprep.subr.mxu0 0.0
    %2088 = vmatpush1.msra.mxu0 0.0
    %2089 = vmatprep.subr.mxu0 0.0
    %2090 = vmatpush1.msra.mxu0 0.0
    %2091 = vmatprep.subr.mxu0 0.0
    %2092 = vmatpush1.msra.mxu0 0.0
    %2093 = vmatprep.subr.mxu0 0.0
    %2094 = vmatpush1.msra.mxu0 0.0
    %2095 = vmatprep.subr.mxu0 0.0
    %2096 = vmatpush1.msra.mxu0 0.0
    %2097 = vmatprep.subr.mxu0 0.0
    %2098 = vmatpush1.msra.mxu0 0.0
    %2099 = vmatprep.subr.mxu0 0.0
    %2100 = vmatpush1.msra.mxu0 0.0
    %2101 = vmatprep.subr.mxu0 0.0
    %2102 = vmatpush1.msra.mxu0 0.0
    %2103 = vmatprep.subr.mxu0 0.0
    %2104 = vmatpush1.msra.mxu0 0.0
    %2105 = vmatprep.subr.mxu0 0.0
    %2106 = vmatpush1.msra.mxu0 0.0
    %2107 = vmatprep.subr.mxu0 0.0
    %2108 = vmatpush1.msra.mxu0 0.0
    %2109 = vmatprep.subr.mxu0 0.0
    %2110 = vmatpush1.msra.mxu0 0.0
    %2111 = vmatprep.subr.mxu0 0.0
    %2112 = vmatpush1.msra.mxu0 0.0
    %2113 = vmatprep.subr.mxu0 0.0
    %2114 = vmatpush1.msra.mxu0 0.0
    %2115 = vmatprep.subr.mxu0 0.0
    %2116 = vmatpush1.msra.mxu0 0.0
    %2117 = vmatprep.subr.mxu0 0.0
    %2118 = vmatpush1.msra.mxu0 0.0
    %2119 = vmatprep.subr.mxu0 0.0
    %2120 = vmatpush1.msra.mxu0 0.0
    %2121 = vmatprep.subr.mxu0 0.0
    %2122 = vmatpush1.msra.mxu0 0.0
    %2123 = vmatprep.subr.mxu0 0.0
    %2124 = vmatpush1.msra.mxu0 0.0
    %2125 = vmatprep.subr.mxu0 0.0
    %2126 = vmatpush1.msra.mxu0 0.0
    %2127 = vmatprep.subr.mxu0 0.0
    %2128 = vmatpush1.msra.mxu0 0.0
    %2129 = vmatprep.subr.mxu0 0.0
    %2130 = vmatpush1.msra.mxu0 0.0
    %2131 = vmatprep.subr.mxu0 0.0
    %2132 = vmatpush1.msra.mxu0 0.0
    %2133 = vmatprep.subr.mxu0 0.0
    %2134 = vmatpush1.msra.mxu0 0.0
    %2135 = vmatprep.subr.mxu0 0.0
    %2136 = vmatpush1.msra.mxu0 0.0
    %2137 = vmatprep.subr.mxu0 0.0
    %2138 = vmatpush1.msra.mxu0 0.0
    %2139 = vmatprep.subr.mxu0 0.0
    %2140 = vmatpush1.msra.mxu0 0.0
    %2141 = vmatprep.subr.mxu0 0.0
    %2142 = vmatpush1.msra.mxu0 0.0
    %2143 = vmatprep.mubr.f32.mxu0 0.0
    %2144 = vmatmul.mubr.f32.gmra.mrb[0].mxu0 %v2077
    %v2145 = vpop.f32.mrb[0].mxu0
    %v2146 = vadd.f32 %v1842, %v2145
    %v2147 = vpop.f32.mrb[0].mxu0
    %2148 = vdwg.mxu0
    %v2149 = vsel %vm1461, %v2146, -inf
    %2150 = vmax.xlane.f32.xlu0 %v2149
    %v2151 = vpop.xlane.xlu0 %2150
    %v2152 = vsub.f32 %v2146, %v2151
    %v2153 = vmul.f32 %v2152, 1.442695
    %v2154 = vpow.pop %v2153
    %v2155 = vsel %vm1461, %v2154, 0.0
    %2156 = vadd.xlane.f32.xlu0 %v2155
    %v2157 = vpop.xlane.xlu0 %2156
    %v2158 = vlog2.pop %v2157
    %v2159 = vmul.f32 %v2158, 0.6931472
    %v2160 = vadd.f32 %v2151, %v2159
    %v2161 = vrot.slane %v87, 4
    %v2163 = vmul.f32 %v2146, %v2161
    %v2164 = vsel %vm1461, %v2163, 0.0
    %2165 = vadd.xlane.f32.xlu0 %v2164
    %v2166 = vpop.xlane.xlu0 %2165
    %v2167 = vsub.f32 %v2160, %v2166
    %v2168 = vrot.slane %v1939, 4
    %v2170 = vmul.f32 %v2167, %v2168
    %v2171 = vsel %vm1466, %v2170, 0.0
    %2172 = vadd.xlane.f32.xlu0 %v2171
    %v2173 = vpop.xlane.xlu0 %2172
    %v2174 = vrot.slane %v2173, 4
    %v2175 = vadd.f32 %v2173, %v2174
    %v2176 = vrot.slane %v2175, 2
    %v2177 = vadd.f32 %v2175, %v2176
    %v2178 = vrot.slane %v2177, 1
    %v2179 = vadd.f32 %v2177, %v2178
    %s2180 = vtos %v2179
    %v2181 = vstv %s2180
    %v2182 = vadd.f32 %v1956, %v2181
    %v2183 = vsel %vm1466, %v2168, 0.0
    %2184 = vadd.xlane.f32.xlu0 %v2183
    %v2185 = vpop.xlane.xlu0 %2184
    %v2186 = vrot.slane %v2185, 4
    %v2187 = vadd.f32 %v2185, %v2186
    %v2188 = vrot.slane %v2187, 2
    %v2189 = vadd.f32 %v2187, %v2188
    %v2190 = vrot.slane %v2189, 1
    %v2191 = vadd.f32 %v2189, %v2190
    %s2192 = vtos %v2191
    %v2193 = vstv %s2192
    %v2194 = vadd.f32 %v1968, %v2193
    %v2195 = vrot.slane %v1716, 4
    %v2197 = vadd.f32 %v1632, %v2195
    %2198 = vmatprep.subr.mxu0 0.0
    %2199 = vmatpush1.msra.mxu0 %v1720
    %2200 = vmatprep.subr.mxu0 0.0
    %2201 = vmatpush1.msra.mxu0 %v1721
    %2202 = vmatprep.subr.mxu0 0.0
    %2203 = vmatpush1.msra.mxu0 %v1722
    %2204 = vmatprep.subr.mxu0 0.0
    %2205 = vmatpush1.msra.mxu0 %v1723
    %2206 = vmatprep.subr.mxu0 0.0
    %2207 = vmatpush1.msra.mxu0 0.0
    %2208 = vmatprep.subr.mxu0 0.0
    %2209 = vmatpush1.msra.mxu0 0.0
    %2210 = vmatprep.subr.mxu0 0.0
    %2211 = vmatpush1.msra.mxu0 0.0
    %2212 = vmatprep.subr.mxu0 0.0
    %2213 = vmatpush1.msra.mxu0 0.0
    %2214 = vmatprep.subr.mxu0 0.0
    %2215 = vmatpush1.msra.mxu0 0.0
    %2216 = vmatprep.subr.mxu0 0.0
    %2217 = vmatpush1.msra.mxu0 0.0
    %2218 = vmatprep.subr.mxu0 0.0
    %2219 = vmatpush1.msra.mxu0 0.0
    %2220 = vmatprep.subr.mxu0 0.0
    %2221 = vmatpush1.msra.mxu0 0.0
    %2222 = vmatprep.subr.mxu0 0.0
    %2223 = vmatpush1.msra.mxu0 0.0
    %2224 = vmatprep.subr.mxu0 0.0
    %2225 = vmatpush1.msra.mxu0 0.0
    %2226 = vmatprep.subr.mxu0 0.0
    %2227 = vmatpush1.msra.mxu0 0.0
    %2228 = vmatprep.subr.mxu0 0.0
    %2229 = vmatpush1.msra.mxu0 0.0
    %2230 = vmatprep.subr.mxu0 0.0
    %2231 = vmatpush1.msra.mxu0 0.0
    %2232 = vmatprep.subr.mxu0 0.0
    %2233 = vmatpush1.msra.mxu0 0.0
    %2234 = vmatprep.subr.mxu0 0.0
    %2235 = vmatpush1.msra.mxu0 0.0
    %2236 = vmatprep.subr.mxu0 0.0
    %2237 = vmatpush1.msra.mxu0 0.0
    %2238 = vmatprep.subr.mxu0 0.0
    %2239 = vmatpush1.msra.mxu0 0.0
    %2240 = vmatprep.subr.mxu0 0.0
    %2241 = vmatpush1.msra.mxu0 0.0
    %2242 = vmatprep.subr.mxu0 0.0
    %2243 = vmatpush1.msra.mxu0 0.0
    %2244 = vmatprep.subr.mxu0 0.0
    %2245 = vmatpush1.msra.mxu0 0.0
    %2246 = vmatprep.subr.mxu0 0.0
    %2247 = vmatpush1.msra.mxu0 0.0
    %2248 = vmatprep.subr.mxu0 0.0
    %2249 = vmatpush1.msra.mxu0 0.0
    %2250 = vmatprep.subr.mxu0 0.0
    %2251 = vmatpush1.msra.mxu0 0.0
    %2252 = vmatprep.subr.mxu0 0.0
    %2253 = vmatpush1.msra.mxu0 0.0
    %2254 = vmatprep.subr.mxu0 0.0
    %2255 = vmatpush1.msra.mxu0 0.0
    %2256 = vmatprep.subr.mxu0 0.0
    %2257 = vmatpush1.msra.mxu0 0.0
    %2258 = vmatprep.subr.mxu0 0.0
    %2259 = vmatpush1.msra.mxu0 0.0
    %2260 = vmatprep.subr.mxu0 0.0
    %2261 = vmatpush1.msra.mxu0 0.0
    %2262 = vmatprep.mubr.f32.mxu0 0.0
    %2263 = vmatmul.mubr.f32.gmra.mrb[0].mxu0 %v2077
    %v2264 = vpop.f32.mrb[0].mxu0
    %v2265 = vadd.f32 %v1729, %v2264
    %v2266 = vpop.f32.mrb[0].mxu0
    %2267 = vdwg.mxu0
    %v2269 = vrot.slane %v2265, 4
    %v2271 = vadd.f32 %v2197, %v2269
    %v2272 = vxor.u32 %v2271, 2147483648
    %v2273 = vmul.f32 %v2272, 1.442695
    %v2274 = vpow.pop %v2273
    %v2275 = vadd.f32 %v2274, 1.0
    %v2276 = vrcp.pop %v2275
    %v2277 = vmul.f32 1.0, %v2276
    %2278 = vrot.lane.b32.xlu0 %v2269, 64
    %v2279 = vpop.permute.xlu0 %2278
    %v2281 = vmul.f32 %v2277, %v2279
    %2283 = vrot.lane.b32.xlu0 %v2281, 64
    %v2284 = vpop.permute.xlu0 %2283
    %v2286 = vadd.f32 %v2197, %v2284
    %v2287 = vtanh.pop %v2286
    %v2288 = vsub.f32 1.0, %v2277
    %2290 = vrot.lane.b32.xlu0 %v2287, 96
    %v2291 = vpop.permute.xlu0 %2290
    %v2293 = vmul.f32 %v2288, %v2291
    %v2294 = vrot.slane %v2072, 6
    %v2296 = vmul.f32 %v2277, %v2294
    %v2297 = vadd.f32 %v2293, %v2296
    %v2299 = vrot.slane %v2297, 4
    %2300 = vrot.lane.b32.xlu0 %v2299, 96
    %v2301 = vpop.permute.xlu0 %2300
    %v2302 = vsel %vm274, %v2301, 0
    %2304 = vmatprep.subr.mxu0 0.0
    %2305 = vmatpush1.msra.mxu0 %v1833
    %2306 = vmatprep.subr.mxu0 0.0
    %2307 = vmatpush1.msra.mxu0 %v1834
    %2308 = vmatprep.subr.mxu0 0.0
    %2309 = vmatpush1.msra.mxu0 %v1835
    %2310 = vmatprep.subr.mxu0 0.0
    %2311 = vmatpush1.msra.mxu0 %v1836
    %2312 = vmatprep.subr.mxu0 0.0
    %2313 = vmatpush1.msra.mxu0 0.0
    %2314 = vmatprep.subr.mxu0 0.0
    %2315 = vmatpush1.msra.mxu0 0.0
    %2316 = vmatprep.subr.mxu0 0.0
    %2317 = vmatpush1.msra.mxu0 0.0
    %2318 = vmatprep.subr.mxu0 0.0
    %2319 = vmatpush1.msra.mxu0 0.0
    %2320 = vmatprep.subr.mxu0 0.0
    %2321 = vmatpush1.msra.mxu0 0.0
    %2322 = vmatprep.subr.mxu0 0.0
    %2323 = vmatpush1.msra.mxu0 0.0
    %2324 = vmatprep.subr.mxu0 0.0
    %2325 = vmatpush1.msra.mxu0 0.0
    %2326 = vmatprep.subr.mxu0 0.0
    %2327 = vmatpush1.msra.mxu0 0.0
    %2328 = vmatprep.subr.mxu0 0.0
    %2329 = vmatpush1.msra.mxu0 0.0
    %2330 = vmatprep.subr.mxu0 0.0
    %2331 = vmatpush1.msra.mxu0 0.0
    %2332 = vmatprep.subr.mxu0 0.0
    %2333 = vmatpush1.msra.mxu0 0.0
    %2334 = vmatprep.subr.mxu0 0.0
    %2335 = vmatpush1.msra.mxu0 0.0
    %2336 = vmatprep.subr.mxu0 0.0
    %2337 = vmatpush1.msra.mxu0 0.0
    %2338 = vmatprep.subr.mxu0 0.0
    %2339 = vmatpush1.msra.mxu0 0.0
    %2340 = vmatprep.subr.mxu0 0.0
    %2341 = vmatpush1.msra.mxu0 0.0
    %2342 = vmatprep.subr.mxu0 0.0
    %2343 = vmatpush1.msra.mxu0 0.0
    %2344 = vmatprep.subr.mxu0 0.0
    %2345 = vmatpush1.msra.mxu0 0.0
    %2346 = vmatprep.subr.mxu0 0.0
    %2347 = vmatpush1.msra.mxu0 0.0
    %2348 = vmatprep.subr.mxu0 0.0
    %2349 = vmatpush1.msra.mxu0 0.0
    %2350 = vmatprep.subr.mxu0 0.0
    %2351 = vmatpush1.msra.mxu0 0.0
    %2352 = vmatprep.subr.mxu0 0.0
    %2353 = vmatpush1.msra.mxu0 0.0
    %2354 = vmatprep.subr.mxu0 0.0
    %2355 = vmatpush1.msra.mxu0 0.0
    %2356 = vmatprep.subr.mxu0 0.0
    %2357 = vmatpush1.msra.mxu0 0.0
    %2358 = vmatprep.subr.mxu0 0.0
    %2359 = vmatpush1.msra.mxu0 0.0
    %2360 = vmatprep.subr.mxu0 0.0
    %2361 = vmatpush1.msra.mxu0 0.0
    %2362 = vmatprep.subr.mxu0 0.0
    %2363 = vmatpush1.msra.mxu0 0.0
    %2364 = vmatprep.subr.mxu0 0.0
    %2365 = vmatpush1.msra.mxu0 0.0
    %2366 = vmatprep.subr.mxu0 0.0
    %2367 = vmatpush1.msra.mxu0 0.0
    %2368 = vmatprep.mubr.f32.mxu0 0.0
    %2369 = vmatmul.mubr.f32.gmra.mrb[0].mxu0 %v2302
    %v2370 = vpop.f32.mrb[0].mxu0
    %v2371 = vadd.f32 %v1842, %v2370
    %v2372 = vpop.f32.mrb[0].mxu0
    %2373 = vdwg.mxu0
    %v2374 = vsel %vm1461, %v2371, -inf
    %2375 = vmax.xlane.f32.xlu0 %v2374
    %v2376 = vpop.xlane.xlu0 %2375
    %v2377 = vsub.f32 %v2371, %v2376
    %v2378 = vmul.f32 %v2377, 1.442695
    %v2379 = vpow.pop %v2378
    %v2380 = vsel %vm1461, %v2379, 0.0
    %2381 = vadd.xlane.f32.xlu0 %v2380
    %v2382 = vpop.xlane.xlu0 %2381
    %v2383 = vlog2.pop %v2382
    %v2384 = vmul.f32 %v2383, 0.6931472
    %v2385 = vadd.f32 %v2376, %v2384
    %v2386 = vrot.slane %v87, 6
    %v2388 = vmul.f32 %v2371, %v2386
    %v2389 = vsel %vm1461, %v2388, 0.0
    %2390 = vadd.xlane.f32.xlu0 %v2389
    %v2391 = vpop.xlane.xlu0 %2390
    %v2392 = vsub.f32 %v2385, %v2391
    %v2393 = vrot.slane %v1939, 6
    %v2395 = vmul.f32 %v2392, %v2393
    %v2396 = vsel %vm1466, %v2395, 0.0
    %2397 = vadd.xlane.f32.xlu0 %v2396
    %v2398 = vpop.xlane.xlu0 %2397
    %v2399 = vrot.slane %v2398, 4
    %v2400 = vadd.f32 %v2398, %v2399
    %v2401 = vrot.slane %v2400, 2
    %v2402 = vadd.f32 %v2400, %v2401
    %v2403 = vrot.slane %v2402, 1
    %v2404 = vadd.f32 %v2402, %v2403
    %s2405 = vtos %v2404
    %v2406 = vstv %s2405
    %v2407 = vadd.f32 %v2182, %v2406
    %v2408 = vsel %vm1466, %v2393, 0.0
    %2409 = vadd.xlane.f32.xlu0 %v2408
    %v2410 = vpop.xlane.xlu0 %2409
    %v2411 = vrot.slane %v2410, 4
    %v2412 = vadd.f32 %v2410, %v2411
    %v2413 = vrot.slane %v2412, 2
    %v2414 = vadd.f32 %v2412, %v2413
    %v2415 = vrot.slane %v2414, 1
    %v2416 = vadd.f32 %v2414, %v2415
    %s2417 = vtos %v2416
    %v2418 = vstv %s2417
    %v2419 = vadd.f32 %v2194, %v2418
    %v2420 = vrot.slane %v1716, 2
    %v2422 = vadd.f32 %v1632, %v2420
    %2423 = vmatprep.subr.mxu0 0.0
    %2424 = vmatpush1.msra.mxu0 %v1720
    %2425 = vmatprep.subr.mxu0 0.0
    %2426 = vmatpush1.msra.mxu0 %v1721
    %2427 = vmatprep.subr.mxu0 0.0
    %2428 = vmatpush1.msra.mxu0 %v1722
    %2429 = vmatprep.subr.mxu0 0.0
    %2430 = vmatpush1.msra.mxu0 %v1723
    %2431 = vmatprep.subr.mxu0 0.0
    %2432 = vmatpush1.msra.mxu0 0.0
    %2433 = vmatprep.subr.mxu0 0.0
    %2434 = vmatpush1.msra.mxu0 0.0
    %2435 = vmatprep.subr.mxu0 0.0
    %2436 = vmatpush1.msra.mxu0 0.0
    %2437 = vmatprep.subr.mxu0 0.0
    %2438 = vmatpush1.msra.mxu0 0.0
    %2439 = vmatprep.subr.mxu0 0.0
    %2440 = vmatpush1.msra.mxu0 0.0
    %2441 = vmatprep.subr.mxu0 0.0
    %2442 = vmatpush1.msra.mxu0 0.0
    %2443 = vmatprep.subr.mxu0 0.0
    %2444 = vmatpush1.msra.mxu0 0.0
    %2445 = vmatprep.subr.mxu0 0.0
    %2446 = vmatpush1.msra.mxu0 0.0
    %2447 = vmatprep.subr.mxu0 0.0
    %2448 = vmatpush1.msra.mxu0 0.0
    %2449 = vmatprep.subr.mxu0 0.0
    %2450 = vmatpush1.msra.mxu0 0.0
    %2451 = vmatprep.subr.mxu0 0.0
    %2452 = vmatpush1.msra.mxu0 0.0
    %2453 = vmatprep.subr.mxu0 0.0
    %2454 = vmatpush1.msra.mxu0 0.0
    %2455 = vmatprep.subr.mxu0 0.0
    %2456 = vmatpush1.msra.mxu0 0.0
    %2457 = vmatprep.subr.mxu0 0.0
    %2458 = vmatpush1.msra.mxu0 0.0
    %2459 = vmatprep.subr.mxu0 0.0
    %2460 = vmatpush1.msra.mxu0 0.0
    %2461 = vmatprep.subr.mxu0 0.0
    %2462 = vmatpush1.msra.mxu0 0.0
    %2463 = vmatprep.subr.mxu0 0.0
    %2464 = vmatpush1.msra.mxu0 0.0
    %2465 = vmatprep.subr.mxu0 0.0
    %2466 = vmatpush1.msra.mxu0 0.0
    %2467 = vmatprep.subr.mxu0 0.0
    %2468 = vmatpush1.msra.mxu0 0.0
    %2469 = vmatprep.subr.mxu0 0.0
    %2470 = vmatpush1.msra.mxu0 0.0
    %2471 = vmatprep.subr.mxu0 0.0
    %2472 = vmatpush1.msra.mxu0 0.0
    %2473 = vmatprep.subr.mxu0 0.0
    %2474 = vmatpush1.msra.mxu0 0.0
    %2475 = vmatprep.subr.mxu0 0.0
    %2476 = vmatpush1.msra.mxu0 0.0
    %2477 = vmatprep.subr.mxu0 0.0
    %2478 = vmatpush1.msra.mxu0 0.0
    %2479 = vmatprep.subr.mxu0 0.0
    %2480 = vmatpush1.msra.mxu0 0.0
    %2481 = vmatprep.subr.mxu0 0.0
    %2482 = vmatpush1.msra.mxu0 0.0
    %2483 = vmatprep.subr.mxu0 0.0
    %2484 = vmatpush1.msra.mxu0 0.0
    %2485 = vmatprep.subr.mxu0 0.0
    %2486 = vmatpush1.msra.mxu0 0.0
    %2487 = vmatprep.mubr.f32.mxu0 0.0
    %2488 = vmatmul.mubr.f32.gmra.mrb[0].mxu0 %v2302
    %v2489 = vpop.f32.mrb[0].mxu0
    %v2490 = vadd.f32 %v1729, %v2489
    %v2491 = vpop.f32.mrb[0].mxu0
    %2492 = vdwg.mxu0
    %v2494 = vrot.slane %v2490, 2
    %v2496 = vadd.f32 %v2422, %v2494
    %v2497 = vxor.u32 %v2496, 2147483648
    %v2498 = vmul.f32 %v2497, 1.442695
    %v2499 = vpow.pop %v2498
    %v2500 = vadd.f32 %v2499, 1.0
    %v2501 = vrcp.pop %v2500
    %v2502 = vmul.f32 1.0, %v2501
    %2503 = vrot.lane.b32.xlu0 %v2494, 64
    %v2504 = vpop.permute.xlu0 %2503
    %v2506 = vmul.f32 %v2502, %v2504
    %2508 = vrot.lane.b32.xlu0 %v2506, 64
    %v2509 = vpop.permute.xlu0 %2508
    %v2511 = vadd.f32 %v2422, %v2509
    %v2512 = vtanh.pop %v2511
    %v2513 = vsub.f32 1.0, %v2502
    %2515 = vrot.lane.b32.xlu0 %v2512, 96
    %v2516 = vpop.permute.xlu0 %2515
    %v2518 = vmul.f32 %v2513, %v2516
    %v2519 = vrot.slane %v2297, 6
    %v2521 = vmul.f32 %v2502, %v2519
    %v2522 = vadd.f32 %v2518, %v2521
    %v2524 = vrot.slane %v2522, 6
    %2525 = vrot.lane.b32.xlu0 %v2524, 96
    %v2526 = vpop.permute.xlu0 %2525
    %v2527 = vsel %vm274, %v2526, 0
    %2529 = vmatprep.subr.mxu0 0.0
    %2530 = vmatpush1.msra.mxu0 %v1833
    %2531 = vmatprep.subr.mxu0 0.0
    %2532 = vmatpush1.msra.mxu0 %v1834
    %2533 = vmatprep.subr.mxu0 0.0
    %2534 = vmatpush1.msra.mxu0 %v1835
    %2535 = vmatprep.subr.mxu0 0.0
    %2536 = vmatpush1.msra.mxu0 %v1836
    %2537 = vmatprep.subr.mxu0 0.0
    %2538 = vmatpush1.msra.mxu0 0.0
    %2539 = vmatprep.subr.mxu0 0.0
    %2540 = vmatpush1.msra.mxu0 0.0
    %2541 = vmatprep.subr.mxu0 0.0
    %2542 = vmatpush1.msra.mxu0 0.0
    %2543 = vmatprep.subr.mxu0 0.0
    %2544 = vmatpush1.msra.mxu0 0.0
    %2545 = vmatprep.subr.mxu0 0.0
    %2546 = vmatpush1.msra.mxu0 0.0
    %2547 = vmatprep.subr.mxu0 0.0
    %2548 = vmatpush1.msra.mxu0 0.0
    %2549 = vmatprep.subr.mxu0 0.0
    %2550 = vmatpush1.msra.mxu0 0.0
    %2551 = vmatprep.subr.mxu0 0.0
    %2552 = vmatpush1.msra.mxu0 0.0
    %2553 = vmatprep.subr.mxu0 0.0
    %2554 = vmatpush1.msra.mxu0 0.0
    %2555 = vmatprep.subr.mxu0 0.0
    %2556 = vmatpush1.msra.mxu0 0.0
    %2557 = vmatprep.subr.mxu0 0.0
    %2558 = vmatpush1.msra.mxu0 0.0
    %2559 = vmatprep.subr.mxu0 0.0
    %2560 = vmatpush1.msra.mxu0 0.0
    %2561 = vmatprep.subr.mxu0 0.0
    %2562 = vmatpush1.msra.mxu0 0.0
    %2563 = vmatprep.subr.mxu0 0.0
    %2564 = vmatpush1.msra.mxu0 0.0
    %2565 = vmatprep.subr.mxu0 0.0
    %2566 = vmatpush1.msra.mxu0 0.0
    %2567 = vmatprep.subr.mxu0 0.0
    %2568 = vmatpush1.msra.mxu0 0.0
    %2569 = vmatprep.subr.mxu0 0.0
    %2570 = vmatpush1.msra.mxu0 0.0
    %2571 = vmatprep.subr.mxu0 0.0
    %2572 = vmatpush1.msra.mxu0 0.0
    %2573 = vmatprep.subr.mxu0 0.0
    %2574 = vmatpush1.msra.mxu0 0.0
    %2575 = vmatprep.subr.mxu0 0.0
    %2576 = vmatpush1.msra.mxu0 0.0
    %2577 = vmatprep.subr.mxu0 0.0
    %2578 = vmatpush1.msra.mxu0 0.0
    %2579 = vmatprep.subr.mxu0 0.0
    %2580 = vmatpush1.msra.mxu0 0.0
    %2581 = vmatprep.subr.mxu0 0.0
    %2582 = vmatpush1.msra.mxu0 0.0
    %2583 = vmatprep.subr.mxu0 0.0
    %2584 = vmatpush1.msra.mxu0 0.0
    %2585 = vmatprep.subr.mxu0 0.0
    %2586 = vmatpush1.msra.mxu0 0.0
    %2587 = vmatprep.subr.mxu0 0.0
    %2588 = vmatpush1.msra.mxu0 0.0
    %2589 = vmatprep.subr.mxu0 0.0
    %2590 = vmatpush1.msra.mxu0 0.0
    %2591 = vmatprep.subr.mxu0 0.0
    %2592 = vmatpush1.msra.mxu0 0.0
    %2593 = vmatprep.mubr.f32.mxu0 0.0
    %2594 = vmatmul.mubr.f32.gmra.mrb[0].mxu0 %v2527
    %v2595 = vpop.f32.mrb[0].mxu0
    %v2596 = vadd.f32 %v1842, %v2595
    %v2597 = vpop.f32.mrb[0].mxu0
    %2598 = vdwg.mxu0
    %v2599 = vsel %vm1461, %v2596, -inf
    %2600 = vmax.xlane.f32.xlu0 %v2599
    %v2601 = vpop.xlane.xlu0 %2600
    %v2602 = vsub.f32 %v2596, %v2601
    %v2603 = vmul.f32 %v2602, 1.442695
    %v2604 = vpow.pop %v2603
    %v2605 = vsel %vm1461, %v2604, 0.0
    %2606 = vadd.xlane.f32.xlu0 %v2605
    %v2607 = vpop.xlane.xlu0 %2606
    %v2608 = vlog2.pop %v2607
    %v2609 = vmul.f32 %v2608, 0.6931472
    %v2610 = vadd.f32 %v2601, %v2609
    %v2611 = vmul.f32 %v2596, %v88
    %v2612 = vsel %vm1461, %v2611, 0.0
    %2613 = vadd.xlane.f32.xlu0 %v2612
    %v2614 = vpop.xlane.xlu0 %2613
    %vm2615 = vcmp.ne.s32.totalorder %v73, 0
    %v2616 = vsel %vm2615, 1, 0
    %v2617 = vcvt.s32.f32 %v2616
    %v2618 = vsub.f32 %v2610, %v2614
    %v2619 = vmul.f32 %v2618, %v2617
    %v2620 = vsel %vm1466, %v2619, 0.0
    %2621 = vadd.xlane.f32.xlu0 %v2620
    %v2622 = vpop.xlane.xlu0 %2621
    %v2623 = vrot.slane %v2622, 4
    %v2624 = vadd.f32 %v2622, %v2623
    %v2625 = vrot.slane %v2624, 2
    %v2626 = vadd.f32 %v2624, %v2625
    %v2627 = vrot.slane %v2626, 1
    %v2628 = vadd.f32 %v2626, %v2627
    %s2629 = vtos %v2628
    %v2630 = vstv %s2629
    %v2631 = vadd.f32 %v2407, %v2630
    %v2632 = vsel %vm1466, %v2617, 0.0
    %2633 = vadd.xlane.f32.xlu0 %v2632
    %v2634 = vpop.xlane.xlu0 %2633
    %v2635 = vrot.slane %v2634, 4
    %v2636 = vadd.f32 %v2634, %v2635
    %v2637 = vrot.slane %v2636, 2
    %v2638 = vadd.f32 %v2636, %v2637
    %v2639 = vrot.slane %v2638, 1
    %v2640 = vadd.f32 %v2638, %v2639
    %s2641 = vtos %v2640
    %v2642 = vstv %s2641
    %v2643 = vadd.f32 %v2419, %v2642
    %v2644 = vadd.f32 %v1637, %v1716
    %2645 = vmatprep.subr.mxu0 0.0
    %2646 = vmatpush1.msra.mxu0 %v1720
    %2647 = vmatprep.subr.mxu0 0.0
    %2648 = vmatpush1.msra.mxu0 %v1721
    %2649 = vmatprep.subr.mxu0 0.0
    %2650 = vmatpush1.msra.mxu0 %v1722
    %2651 = vmatprep.subr.mxu0 0.0
    %2652 = vmatpush1.msra.mxu0 %v1723
    %2653 = vmatprep.subr.mxu0 0.0
    %2654 = vmatpush1.msra.mxu0 0.0
    %2655 = vmatprep.subr.mxu0 0.0
    %2656 = vmatpush1.msra.mxu0 0.0
    %2657 = vmatprep.subr.mxu0 0.0
    %2658 = vmatpush1.msra.mxu0 0.0
    %2659 = vmatprep.subr.mxu0 0.0
    %2660 = vmatpush1.msra.mxu0 0.0
    %2661 = vmatprep.subr.mxu0 0.0
    %2662 = vmatpush1.msra.mxu0 0.0
    %2663 = vmatprep.subr.mxu0 0.0
    %2664 = vmatpush1.msra.mxu0 0.0
    %2665 = vmatprep.subr.mxu0 0.0
    %2666 = vmatpush1.msra.mxu0 0.0
    %2667 = vmatprep.subr.mxu0 0.0
    %2668 = vmatpush1.msra.mxu0 0.0
    %2669 = vmatprep.subr.mxu0 0.0
    %2670 = vmatpush1.msra.mxu0 0.0
    %2671 = vmatprep.subr.mxu0 0.0
    %2672 = vmatpush1.msra.mxu0 0.0
    %2673 = vmatprep.subr.mxu0 0.0
    %2674 = vmatpush1.msra.mxu0 0.0
    %2675 = vmatprep.subr.mxu0 0.0
    %2676 = vmatpush1.msra.mxu0 0.0
    %2677 = vmatprep.subr.mxu0 0.0
    %2678 = vmatpush1.msra.mxu0 0.0
    %2679 = vmatprep.subr.mxu0 0.0
    %2680 = vmatpush1.msra.mxu0 0.0
    %2681 = vmatprep.subr.mxu0 0.0
    %2682 = vmatpush1.msra.mxu0 0.0
    %2683 = vmatprep.subr.mxu0 0.0
    %2684 = vmatpush1.msra.mxu0 0.0
    %2685 = vmatprep.subr.mxu0 0.0
    %2686 = vmatpush1.msra.mxu0 0.0
    %2687 = vmatprep.subr.mxu0 0.0
    %2688 = vmatpush1.msra.mxu0 0.0
    %2689 = vmatprep.subr.mxu0 0.0
    %2690 = vmatpush1.msra.mxu0 0.0
    %2691 = vmatprep.subr.mxu0 0.0
    %2692 = vmatpush1.msra.mxu0 0.0
    %2693 = vmatprep.subr.mxu0 0.0
    %2694 = vmatpush1.msra.mxu0 0.0
    %2695 = vmatprep.subr.mxu0 0.0
    %2696 = vmatpush1.msra.mxu0 0.0
    %2697 = vmatprep.subr.mxu0 0.0
    %2698 = vmatpush1.msra.mxu0 0.0
    %2699 = vmatprep.subr.mxu0 0.0
    %2700 = vmatpush1.msra.mxu0 0.0
    %2701 = vmatprep.subr.mxu0 0.0
    %2702 = vmatpush1.msra.mxu0 0.0
    %2703 = vmatprep.subr.mxu0 0.0
    %2704 = vmatpush1.msra.mxu0 0.0
    %2705 = vmatprep.subr.mxu0 0.0
    %2706 = vmatpush1.msra.mxu0 0.0
    %2707 = vmatprep.subr.mxu0 0.0
    %2708 = vmatpush1.msra.mxu0 0.0
    %2709 = vmatprep.mubr.f32.mxu0 0.0
    %2710 = vmatmul.mubr.f32.gmra.mrb[0].mxu0 %v2527
    %v2711 = vpop.f32.mrb[0].mxu0
    %v2712 = vadd.f32 %v1729, %v2711
    %v2713 = vpop.f32.mrb[0].mxu0
    %2714 = vdwg.mxu0
    %v2715 = vadd.f32 %v2644, %v2712
    %v2716 = vxor.u32 %v2715, 2147483648
    %v2717 = vmul.f32 %v2716, 1.442695
    %v2718 = vpow.pop %v2717
    %v2719 = vadd.f32 %v2718, 1.0
    %v2720 = vrcp.pop %v2719
    %v2721 = vmul.f32 1.0, %v2720
    %2723 = vrot.lane.b32.xlu0 %v2712, 64
    %v2724 = vpop.permute.xlu0 %2723
    %v2726 = vmul.f32 %v2721, %v2724
    %2728 = vrot.lane.b32.xlu0 %v2726, 64
    %v2729 = vpop.permute.xlu0 %2728
    %v2731 = vadd.f32 %v2644, %v2729
    %v2732 = vtanh.pop %v2731
    %v2733 = vsub.f32 1.0, %v2721
    %2735 = vrot.lane.b32.xlu0 %v2732, 96
    %v2736 = vpop.permute.xlu0 %2735
    %v2738 = vmul.f32 %v2733, %v2736
    %v2740 = vmul.f32 %v2721, %v2524
    %v2741 = vadd.f32 %v2738, %v2740
    %2743 = vrot.lane.b32.xlu0 %v2741, 96
    %v2744 = vpop.permute.xlu0 %2743
    %v2745 = vsel %vm274, %v2744, 0
    %2747 = vmatprep.subr.mxu0 0.0
    %2748 = vmatpush1.msra.mxu0 %v1833
    %2749 = vmatprep.subr.mxu0 0.0
    %2750 = vmatpush1.msra.mxu0 %v1834
    %2751 = vmatprep.subr.mxu0 0.0
    %2752 = vmatpush1.msra.mxu0 %v1835
    %2753 = vmatprep.subr.mxu0 0.0
    %2754 = vmatpush1.msra.mxu0 %v1836
    %2755 = vmatprep.subr.mxu0 0.0
    %2756 = vmatpush1.msra.mxu0 0.0
    %2757 = vmatprep.subr.mxu0 0.0
    %2758 = vmatpush1.msra.mxu0 0.0
    %2759 = vmatprep.subr.mxu0 0.0
    %2760 = vmatpush1.msra.mxu0 0.0
    %2761 = vmatprep.subr.mxu0 0.0
    %2762 = vmatpush1.msra.mxu0 0.0
    %2763 = vmatprep.subr.mxu0 0.0
    %2764 = vmatpush1.msra.mxu0 0.0
    %2765 = vmatprep.subr.mxu0 0.0
    %2766 = vmatpush1.msra.mxu0 0.0
    %2767 = vmatprep.subr.mxu0 0.0
    %2768 = vmatpush1.msra.mxu0 0.0
    %2769 = vmatprep.subr.mxu0 0.0
    %2770 = vmatpush1.msra.mxu0 0.0
    %2771 = vmatprep.subr.mxu0 0.0
    %2772 = vmatpush1.msra.mxu0 0.0
    %2773 = vmatprep.subr.mxu0 0.0
    %2774 = vmatpush1.msra.mxu0 0.0
    %2775 = vmatprep.subr.mxu0 0.0
    %2776 = vmatpush1.msra.mxu0 0.0
    %2777 = vmatprep.subr.mxu0 0.0
    %2778 = vmatpush1.msra.mxu0 0.0
    %2779 = vmatprep.subr.mxu0 0.0
    %2780 = vmatpush1.msra.mxu0 0.0
    %2781 = vmatprep.subr.mxu0 0.0
    %2782 = vmatpush1.msra.mxu0 0.0
    %2783 = vmatprep.subr.mxu0 0.0
    %2784 = vmatpush1.msra.mxu0 0.0
    %2785 = vmatprep.subr.mxu0 0.0
    %2786 = vmatpush1.msra.mxu0 0.0
    %2787 = vmatprep.subr.mxu0 0.0
    %2788 = vmatpush1.msra.mxu0 0.0
    %2789 = vmatprep.subr.mxu0 0.0
    %2790 = vmatpush1.msra.mxu0 0.0
    %2791 = vmatprep.subr.mxu0 0.0
    %2792 = vmatpush1.msra.mxu0 0.0
    %2793 = vmatprep.subr.mxu0 0.0
    %2794 = vmatpush1.msra.mxu0 0.0
    %2795 = vmatprep.subr.mxu0 0.0
    %2796 = vmatpush1.msra.mxu0 0.0
    %2797 = vmatprep.subr.mxu0 0.0
    %2798 = vmatpush1.msra.mxu0 0.0
    %2799 = vmatprep.subr.mxu0 0.0
    %2800 = vmatpush1.msra.mxu0 0.0
    %2801 = vmatprep.subr.mxu0 0.0
    %2802 = vmatpush1.msra.mxu0 0.0
    %2803 = vmatprep.subr.mxu0 0.0
    %2804 = vmatpush1.msra.mxu0 0.0
    %2805 = vmatprep.subr.mxu0 0.0
    %2806 = vmatpush1.msra.mxu0 0.0
    %2807 = vmatprep.subr.mxu0 0.0
    %2808 = vmatpush1.msra.mxu0 0.0
    %2809 = vmatprep.subr.mxu0 0.0
    %2810 = vmatpush1.msra.mxu0 0.0
    %2811 = vmatprep.mubr.f32.mxu0 0.0
    %2812 = vmatmul.mubr.f32.gmra.mrb[0].mxu0 %v2745
    %v2813 = vpop.f32.mrb[0].mxu0
    %v2814 = vadd.f32 %v1842, %v2813
    %v2815 = vpop.f32.mrb[0].mxu0
    %2816 = vdwg.mxu0
    %v2817 = vsel %vm1461, %v2814, -inf
    %2818 = vmax.xlane.f32.xlu0 %v2817
    %v2819 = vpop.xlane.xlu0 %2818
    %v2820 = vsub.f32 %v2814, %v2819
    %v2821 = vmul.f32 %v2820, 1.442695
    %v2822 = vpow.pop %v2821
    %v2823 = vsel %vm1461, %v2822, 0.0
    %2824 = vadd.xlane.f32.xlu0 %v2823
    %v2825 = vpop.xlane.xlu0 %2824
    %v2826 = vlog2.pop %v2825
    %v2827 = vmul.f32 %v2826, 0.6931472
    %v2828 = vadd.f32 %v2819, %v2827
    %v2829 = vrot.slane %v88, 2
    %v2831 = vmul.f32 %v2814, %v2829
    %v2832 = vsel %vm1461, %v2831, 0.0
    %2833 = vadd.xlane.f32.xlu0 %v2832
    %v2834 = vpop.xlane.xlu0 %2833
    %v2835 = vsub.f32 %v2828, %v2834
    %v2837 = vrot.slane %v2617, 2
    %v2839 = vmul.f32 %v2835, %v2837
    %v2840 = vsel %vm1466, %v2839, 0.0
    %2841 = vadd.xlane.f32.xlu0 %v2840
    %v2842 = vpop.xlane.xlu0 %2841
    %v2843 = vrot.slane %v2842, 4
    %v2844 = vadd.f32 %v2842, %v2843
    %v2845 = vrot.slane %v2844, 2
    %v2846 = vadd.f32 %v2844, %v2845
    %v2847 = vrot.slane %v2846, 1
    %v2848 = vadd.f32 %v2846, %v2847
    %s2849 = vtos %v2848
    %v2850 = vstv %s2849
    %v2851 = vadd.f32 %v2631, %v2850
    %v2852 = vsel %vm1466, %v2837, 0.0
    %2853 = vadd.xlane.f32.xlu0 %v2852
    %v2854 = vpop.xlane.xlu0 %2853
    %v2855 = vrot.slane %v2854, 4
    %v2856 = vadd.f32 %v2854, %v2855
    %v2857 = vrot.slane %v2856, 2
    %v2858 = vadd.f32 %v2856, %v2857
    %v2859 = vrot.slane %v2858, 1
    %v2860 = vadd.f32 %v2858, %v2859
    %s2861 = vtos %v2860
    %v2862 = vstv %s2861
    %v2863 = vadd.f32 %v2643, %v2862
    %v2864 = vadd.f32 %v1637, %v1970
    %2865 = vmatprep.subr.mxu0 0.0
    %2866 = vmatpush1.msra.mxu0 %v1720
    %2867 = vmatprep.subr.mxu0 0.0
    %2868 = vmatpush1.msra.mxu0 %v1721
    %2869 = vmatprep.subr.mxu0 0.0
    %2870 = vmatpush1.msra.mxu0 %v1722
    %2871 = vmatprep.subr.mxu0 0.0
    %2872 = vmatpush1.msra.mxu0 %v1723
    %2873 = vmatprep.subr.mxu0 0.0
    %2874 = vmatpush1.msra.mxu0 0.0
    %2875 = vmatprep.subr.mxu0 0.0
    %2876 = vmatpush1.msra.mxu0 0.0
    %2877 = vmatprep.subr.mxu0 0.0
    %2878 = vmatpush1.msra.mxu0 0.0
    %2879 = vmatprep.subr.mxu0 0.0
    %2880 = vmatpush1.msra.mxu0 0.0
    %2881 = vmatprep.subr.mxu0 0.0
    %2882 = vmatpush1.msra.mxu0 0.0
    %2883 = vmatprep.subr.mxu0 0.0
    %2884 = vmatpush1.msra.mxu0 0.0
    %2885 = vmatprep.subr.mxu0 0.0
    %2886 = vmatpush1.msra.mxu0 0.0
    %2887 = vmatprep.subr.mxu0 0.0
    %2888 = vmatpush1.msra.mxu0 0.0
    %2889 = vmatprep.subr.mxu0 0.0
    %2890 = vmatpush1.msra.mxu0 0.0
    %2891 = vmatprep.subr.mxu0 0.0
    %2892 = vmatpush1.msra.mxu0 0.0
    %2893 = vmatprep.subr.mxu0 0.0
    %2894 = vmatpush1.msra.mxu0 0.0
    %2895 = vmatprep.subr.mxu0 0.0
    %2896 = vmatpush1.msra.mxu0 0.0
    %2897 = vmatprep.subr.mxu0 0.0
    %2898 = vmatpush1.msra.mxu0 0.0
    %2899 = vmatprep.subr.mxu0 0.0
    %2900 = vmatpush1.msra.mxu0 0.0
    %2901 = vmatprep.subr.mxu0 0.0
    %2902 = vmatpush1.msra.mxu0 0.0
    %2903 = vmatprep.subr.mxu0 0.0
    %2904 = vmatpush1.msra.mxu0 0.0
    %2905 = vmatprep.subr.mxu0 0.0
    %2906 = vmatpush1.msra.mxu0 0.0
    %2907 = vmatprep.subr.mxu0 0.0
    %2908 = vmatpush1.msra.mxu0 0.0
    %2909 = vmatprep.subr.mxu0 0.0
    %2910 = vmatpush1.msra.mxu0 0.0
    %2911 = vmatprep.subr.mxu0 0.0
    %2912 = vmatpush1.msra.mxu0 0.0
    %2913 = vmatprep.subr.mxu0 0.0
    %2914 = vmatpush1.msra.mxu0 0.0
    %2915 = vmatprep.subr.mxu0 0.0
    %2916 = vmatpush1.msra.mxu0 0.0
    %2917 = vmatprep.subr.mxu0 0.0
    %2918 = vmatpush1.msra.mxu0 0.0
    %2919 = vmatprep.subr.mxu0 0.0
    %2920 = vmatpush1.msra.mxu0 0.0
    %2921 = vmatprep.subr.mxu0 0.0
    %2922 = vmatpush1.msra.mxu0 0.0
    %2923 = vmatprep.subr.mxu0 0.0
    %2924 = vmatpush1.msra.mxu0 0.0
    %2925 = vmatprep.subr.mxu0 0.0
    %2926 = vmatpush1.msra.mxu0 0.0
    %2927 = vmatprep.subr.mxu0 0.0
    %2928 = vmatpush1.msra.mxu0 0.0
    %2929 = vmatprep.mubr.f32.mxu0 0.0
    %2930 = vmatmul.mubr.f32.gmra.mrb[0].mxu0 %v2745
    %v2931 = vpop.f32.mrb[0].mxu0
    %v2932 = vadd.f32 %v1729, %v2931
    %v2933 = vpop.f32.mrb[0].mxu0
    %2934 = vdwg.mxu0
    %v2936 = vrot.slane %v2932, 6
    %v2938 = vadd.f32 %v2864, %v2936
    %v2939 = vxor.u32 %v2938, 2147483648
    %v2940 = vmul.f32 %v2939, 1.442695
    %v2941 = vpow.pop %v2940
    %v2942 = vadd.f32 %v2941, 1.0
    %v2943 = vrcp.pop %v2942
    %v2944 = vmul.f32 1.0, %v2943
    %2945 = vrot.lane.b32.xlu0 %v2936, 64
    %v2946 = vpop.permute.xlu0 %2945
    %v2948 = vmul.f32 %v2944, %v2946
    %2950 = vrot.lane.b32.xlu0 %v2948, 64
    %v2951 = vpop.permute.xlu0 %2950
    %v2953 = vadd.f32 %v2864, %v2951
    %v2954 = vtanh.pop %v2953
    %v2955 = vsub.f32 1.0, %v2944
    %2957 = vrot.lane.b32.xlu0 %v2954, 96
    %v2958 = vpop.permute.xlu0 %2957
    %v2960 = vmul.f32 %v2955, %v2958
    %v2961 = vrot.slane %v2741, 6
    %v2963 = vmul.f32 %v2944, %v2961
    %v2964 = vadd.f32 %v2960, %v2963
    %v2966 = vrot.slane %v2964, 2
    %2967 = vrot.lane.b32.xlu0 %v2966, 96
    %v2968 = vpop.permute.xlu0 %2967
    %v2969 = vsel %vm274, %v2968, 0
    %2971 = vmatprep.subr.mxu0 0.0
    %2972 = vmatpush1.msra.mxu0 %v1833
    %2973 = vmatprep.subr.mxu0 0.0
    %2974 = vmatpush1.msra.mxu0 %v1834
    %2975 = vmatprep.subr.mxu0 0.0
    %2976 = vmatpush1.msra.mxu0 %v1835
    %2977 = vmatprep.subr.mxu0 0.0
    %2978 = vmatpush1.msra.mxu0 %v1836
    %2979 = vmatprep.subr.mxu0 0.0
    %2980 = vmatpush1.msra.mxu0 0.0
    %2981 = vmatprep.subr.mxu0 0.0
    %2982 = vmatpush1.msra.mxu0 0.0
    %2983 = vmatprep.subr.mxu0 0.0
    %2984 = vmatpush1.msra.mxu0 0.0
    %2985 = vmatprep.subr.mxu0 0.0
    %2986 = vmatpush1.msra.mxu0 0.0
    %2987 = vmatprep.subr.mxu0 0.0
    %2988 = vmatpush1.msra.mxu0 0.0
    %2989 = vmatprep.subr.mxu0 0.0
    %2990 = vmatpush1.msra.mxu0 0.0
    %2991 = vmatprep.subr.mxu0 0.0
    %2992 = vmatpush1.msra.mxu0 0.0
    %2993 = vmatprep.subr.mxu0 0.0
    %2994 = vmatpush1.msra.mxu0 0.0
    %2995 = vmatprep.subr.mxu0 0.0
    %2996 = vmatpush1.msra.mxu0 0.0
    %2997 = vmatprep.subr.mxu0 0.0
    %2998 = vmatpush1.msra.mxu0 0.0
    %2999 = vmatprep.subr.mxu0 0.0
    %3000 = vmatpush1.msra.mxu0 0.0
    %3001 = vmatprep.subr.mxu0 0.0
    %3002 = vmatpush1.msra.mxu0 0.0
    %3003 = vmatprep.subr.mxu0 0.0
    %3004 = vmatpush1.msra.mxu0 0.0
    %3005 = vmatprep.subr.mxu0 0.0
    %3006 = vmatpush1.msra.mxu0 0.0
    %3007 = vmatprep.subr.mxu0 0.0
    %3008 = vmatpush1.msra.mxu0 0.0
    %3009 = vmatprep.subr.mxu0 0.0
    %3010 = vmatpush1.msra.mxu0 0.0
    %3011 = vmatprep.subr.mxu0 0.0
    %3012 = vmatpush1.msra.mxu0 0.0
    %3013 = vmatprep.subr.mxu0 0.0
    %3014 = vmatpush1.msra.mxu0 0.0
    %3015 = vmatprep.subr.mxu0 0.0
    %3016 = vmatpush1.msra.mxu0 0.0
    %3017 = vmatprep.subr.mxu0 0.0
    %3018 = vmatpush1.msra.mxu0 0.0
    %3019 = vmatprep.subr.mxu0 0.0
    %3020 = vmatpush1.msra.mxu0 0.0
    %3021 = vmatprep.subr.mxu0 0.0
    %3022 = vmatpush1.msra.mxu0 0.0
    %3023 = vmatprep.subr.mxu0 0.0
    %3024 = vmatpush1.msra.mxu0 0.0
    %3025 = vmatprep.subr.mxu0 0.0
    %3026 = vmatpush1.msra.mxu0 0.0
    %3027 = vmatprep.subr.mxu0 0.0
    %3028 = vmatpush1.msra.mxu0 0.0
    %3029 = vmatprep.subr.mxu0 0.0
    %3030 = vmatpush1.msra.mxu0 0.0
    %3031 = vmatprep.subr.mxu0 0.0
    %3032 = vmatpush1.msra.mxu0 0.0
    %3033 = vmatprep.subr.mxu0 0.0
    %3034 = vmatpush1.msra.mxu0 0.0
    %3035 = vmatprep.mubr.f32.mxu0 0.0
    %3036 = vmatmul.mubr.f32.gmra.mrb[0].mxu0 %v2969
    %v3037 = vpop.f32.mrb[0].mxu0
    %v3038 = vadd.f32 %v1842, %v3037
    %v3039 = vpop.f32.mrb[0].mxu0
    %3040 = vdwg.mxu0
    %v3041 = vsel %vm1461, %v3038, -inf
    %3042 = vmax.xlane.f32.xlu0 %v3041
    %v3043 = vpop.xlane.xlu0 %3042
    %v3044 = vsub.f32 %v3038, %v3043
    %v3045 = vmul.f32 %v3044, 1.442695
    %v3046 = vpow.pop %v3045
    %v3047 = vsel %vm1461, %v3046, 0.0
    %3048 = vadd.xlane.f32.xlu0 %v3047
    %v3049 = vpop.xlane.xlu0 %3048
    %v3050 = vlog2.pop %v3049
    %v3051 = vmul.f32 %v3050, 0.6931472
    %v3052 = vadd.f32 %v3043, %v3051
    %v3053 = vrot.slane %v88, 4
    %v3055 = vmul.f32 %v3038, %v3053
    %v3056 = vsel %vm1461, %v3055, 0.0
    %3057 = vadd.xlane.f32.xlu0 %v3056
    %v3058 = vpop.xlane.xlu0 %3057
    %v3059 = vsub.f32 %v3052, %v3058
    %v3060 = vrot.slane %v2617, 4
    %v3062 = vmul.f32 %v3059, %v3060
    %v3063 = vsel %vm1466, %v3062, 0.0
    %3064 = vadd.xlane.f32.xlu0 %v3063
    %v3065 = vpop.xlane.xlu0 %3064
    %v3066 = vrot.slane %v3065, 4
    %v3067 = vadd.f32 %v3065, %v3066
    %v3068 = vrot.slane %v3067, 2
    %v3069 = vadd.f32 %v3067, %v3068
    %v3070 = vrot.slane %v3069, 1
    %v3071 = vadd.f32 %v3069, %v3070
    %s3072 = vtos %v3071
    %v3073 = vstv %s3072
    %v3074 = vadd.f32 %v2851, %v3073
    %v3075 = vsel %vm1466, %v3060, 0.0
    %3076 = vadd.xlane.f32.xlu0 %v3075
    %v3077 = vpop.xlane.xlu0 %3076
    %v3078 = vrot.slane %v3077, 4
    %v3079 = vadd.f32 %v3077, %v3078
    %v3080 = vrot.slane %v3079, 2
    %v3081 = vadd.f32 %v3079, %v3080
    %v3082 = vrot.slane %v3081, 1
    %v3083 = vadd.f32 %v3081, %v3082
    %s3084 = vtos %v3083
    %v3085 = vstv %s3084
    %v3086 = vadd.f32 %v2863, %v3085
    %v3087 = vadd.f32 %v1637, %v2195
    %3088 = vmatprep.subr.mxu0 0.0
    %3089 = vmatpush1.msra.mxu0 %v1720
    %3090 = vmatprep.subr.mxu0 0.0
    %3091 = vmatpush1.msra.mxu0 %v1721
    %3092 = vmatprep.subr.mxu0 0.0
    %3093 = vmatpush1.msra.mxu0 %v1722
    %3094 = vmatprep.subr.mxu0 0.0
    %3095 = vmatpush1.msra.mxu0 %v1723
    %3096 = vmatprep.subr.mxu0 0.0
    %3097 = vmatpush1.msra.mxu0 0.0
    %3098 = vmatprep.subr.mxu0 0.0
    %3099 = vmatpush1.msra.mxu0 0.0
    %3100 = vmatprep.subr.mxu0 0.0
    %3101 = vmatpush1.msra.mxu0 0.0
    %3102 = vmatprep.subr.mxu0 0.0
    %3103 = vmatpush1.msra.mxu0 0.0
    %3104 = vmatprep.subr.mxu0 0.0
    %3105 = vmatpush1.msra.mxu0 0.0
    %3106 = vmatprep.subr.mxu0 0.0
    %3107 = vmatpush1.msra.mxu0 0.0
    %3108 = vmatprep.subr.mxu0 0.0
    %3109 = vmatpush1.msra.mxu0 0.0
    %3110 = vmatprep.subr.mxu0 0.0
    %3111 = vmatpush1.msra.mxu0 0.0
    %3112 = vmatprep.subr.mxu0 0.0
    %3113 = vmatpush1.msra.mxu0 0.0
    %3114 = vmatprep.subr.mxu0 0.0
    %3115 = vmatpush1.msra.mxu0 0.0
    %3116 = vmatprep.subr.mxu0 0.0
    %3117 = vmatpush1.msra.mxu0 0.0
    %3118 = vmatprep.subr.mxu0 0.0
    %3119 = vmatpush1.msra.mxu0 0.0
    %3120 = vmatprep.subr.mxu0 0.0
    %3121 = vmatpush1.msra.mxu0 0.0
    %3122 = vmatprep.subr.mxu0 0.0
    %3123 = vmatpush1.msra.mxu0 0.0
    %3124 = vmatprep.subr.mxu0 0.0
    %3125 = vmatpush1.msra.mxu0 0.0
    %3126 = vmatprep.subr.mxu0 0.0
    %3127 = vmatpush1.msra.mxu0 0.0
    %3128 = vmatprep.subr.mxu0 0.0
    %3129 = vmatpush1.msra.mxu0 0.0
    %3130 = vmatprep.subr.mxu0 0.0
    %3131 = vmatpush1.msra.mxu0 0.0
    %3132 = vmatprep.subr.mxu0 0.0
    %3133 = vmatpush1.msra.mxu0 0.0
    %3134 = vmatprep.subr.mxu0 0.0
    %3135 = vmatpush1.msra.mxu0 0.0
    %3136 = vmatprep.subr.mxu0 0.0
    %3137 = vmatpush1.msra.mxu0 0.0
    %3138 = vmatprep.subr.mxu0 0.0
    %3139 = vmatpush1.msra.mxu0 0.0
    %3140 = vmatprep.subr.mxu0 0.0
    %3141 = vmatpush1.msra.mxu0 0.0
    %3142 = vmatprep.subr.mxu0 0.0
    %3143 = vmatpush1.msra.mxu0 0.0
    %3144 = vmatprep.subr.mxu0 0.0
    %3145 = vmatpush1.msra.mxu0 0.0
    %3146 = vmatprep.subr.mxu0 0.0
    %3147 = vmatpush1.msra.mxu0 0.0
    %3148 = vmatprep.subr.mxu0 0.0
    %3149 = vmatpush1.msra.mxu0 0.0
    %3150 = vmatprep.subr.mxu0 0.0
    %3151 = vmatpush1.msra.mxu0 0.0
    %3152 = vmatprep.mubr.f32.mxu0 0.0
    %3153 = vmatmul.mubr.f32.gmra.mrb[0].mxu0 %v2969
    %v3154 = vpop.f32.mrb[0].mxu0
    %v3155 = vadd.f32 %v1729, %v3154
    %v3156 = vpop.f32.mrb[0].mxu0
    %3157 = vdwg.mxu0
    %v3159 = vrot.slane %v3155, 4
    %v3161 = vadd.f32 %v3087, %v3159
    %v3162 = vxor.u32 %v3161, 2147483648
    %v3163 = vmul.f32 %v3162, 1.442695
    %v3164 = vpow.pop %v3163
    %v3165 = vadd.f32 %v3164, 1.0
    %v3166 = vrcp.pop %v3165
    %v3167 = vmul.f32 1.0, %v3166
    %3168 = vrot.lane.b32.xlu0 %v3159, 64
    %v3169 = vpop.permute.xlu0 %3168
    %v3171 = vmul.f32 %v3167, %v3169
    %3173 = vrot.lane.b32.xlu0 %v3171, 64
    %v3174 = vpop.permute.xlu0 %3173
    %v3176 = vadd.f32 %v3087, %v3174
    %v3177 = vtanh.pop %v3176
    %v3178 = vsub.f32 1.0, %v3167
    %3180 = vrot.lane.b32.xlu0 %v3177, 96
    %v3181 = vpop.permute.xlu0 %3180
    %v3183 = vmul.f32 %v3178, %v3181
    %v3184 = vrot.slane %v2964, 6
    %v3186 = vmul.f32 %v3167, %v3184
    %v3187 = vadd.f32 %v3183, %v3186
    %v3189 = vrot.slane %v3187, 4
    %3190 = vrot.lane.b32.xlu0 %v3189, 96
    %v3191 = vpop.permute.xlu0 %3190
    %v3192 = vsel %vm274, %v3191, 0
    %3194 = vmatprep.subr.mxu0 0.0
    %3195 = vmatpush1.msra.mxu0 %v1833
    %3196 = vmatprep.subr.mxu0 0.0
    %3197 = vmatpush1.msra.mxu0 %v1834
    %3198 = vmatprep.subr.mxu0 0.0
    %3199 = vmatpush1.msra.mxu0 %v1835
    %3200 = vmatprep.subr.mxu0 0.0
    %3201 = vmatpush1.msra.mxu0 %v1836
    %3202 = vmatprep.subr.mxu0 0.0
    %3203 = vmatpush1.msra.mxu0 0.0
    %3204 = vmatprep.subr.mxu0 0.0
    %3205 = vmatpush1.msra.mxu0 0.0
    %3206 = vmatprep.subr.mxu0 0.0
    %3207 = vmatpush1.msra.mxu0 0.0
    %3208 = vmatprep.subr.mxu0 0.0
    %3209 = vmatpush1.msra.mxu0 0.0
    %3210 = vmatprep.subr.mxu0 0.0
    %3211 = vmatpush1.msra.mxu0 0.0
    %3212 = vmatprep.subr.mxu0 0.0
    %3213 = vmatpush1.msra.mxu0 0.0
    %3214 = vmatprep.subr.mxu0 0.0
    %3215 = vmatpush1.msra.mxu0 0.0
    %3216 = vmatprep.subr.mxu0 0.0
    %3217 = vmatpush1.msra.mxu0 0.0
    %3218 = vmatprep.subr.mxu0 0.0
    %3219 = vmatpush1.msra.mxu0 0.0
    %3220 = vmatprep.subr.mxu0 0.0
    %3221 = vmatpush1.msra.mxu0 0.0
    %3222 = vmatprep.subr.mxu0 0.0
    %3223 = vmatpush1.msra.mxu0 0.0
    %3224 = vmatprep.subr.mxu0 0.0
    %3225 = vmatpush1.msra.mxu0 0.0
    %3226 = vmatprep.subr.mxu0 0.0
    %3227 = vmatpush1.msra.mxu0 0.0
    %3228 = vmatprep.subr.mxu0 0.0
    %3229 = vmatpush1.msra.mxu0 0.0
    %3230 = vmatprep.subr.mxu0 0.0
    %3231 = vmatpush1.msra.mxu0 0.0
    %3232 = vmatprep.subr.mxu0 0.0
    %3233 = vmatpush1.msra.mxu0 0.0
    %3234 = vmatprep.subr.mxu0 0.0
    %3235 = vmatpush1.msra.mxu0 0.0
    %3236 = vmatprep.subr.mxu0 0.0
    %3237 = vmatpush1.msra.mxu0 0.0
    %3238 = vmatprep.subr.mxu0 0.0
    %3239 = vmatpush1.msra.mxu0 0.0
    %3240 = vmatprep.subr.mxu0 0.0
    %3241 = vmatpush1.msra.mxu0 0.0
    %3242 = vmatprep.subr.mxu0 0.0
    %3243 = vmatpush1.msra.mxu0 0.0
    %3244 = vmatprep.subr.mxu0 0.0
    %3245 = vmatpush1.msra.mxu0 0.0
    %3246 = vmatprep.subr.mxu0 0.0
    %3247 = vmatpush1.msra.mxu0 0.0
    %3248 = vmatprep.subr.mxu0 0.0
    %3249 = vmatpush1.msra.mxu0 0.0
    %3250 = vmatprep.subr.mxu0 0.0
    %3251 = vmatpush1.msra.mxu0 0.0
    %3252 = vmatprep.subr.mxu0 0.0
    %3253 = vmatpush1.msra.mxu0 0.0
    %3254 = vmatprep.subr.mxu0 0.0
    %3255 = vmatpush1.msra.mxu0 0.0
    %3256 = vmatprep.subr.mxu0 0.0
    %3257 = vmatpush1.msra.mxu0 0.0
    %3258 = vmatprep.mubr.f32.mxu0 0.0
    %3259 = vmatmul.mubr.f32.gmra.mrb[0].mxu0 %v3192
    %v3260 = vpop.f32.mrb[0].mxu0
    %v3261 = vadd.f32 %v1842, %v3260
    %v3262 = vpop.f32.mrb[0].mxu0
    %3263 = vdwg.mxu0
    %v3264 = vsel %vm1461, %v3261, -inf
    %3265 = vmax.xlane.f32.xlu0 %v3264
    %v3266 = vpop.xlane.xlu0 %3265
    %v3267 = vsub.f32 %v3261, %v3266
    %v3268 = vmul.f32 %v3267, 1.442695
    %v3269 = vpow.pop %v3268
    %v3270 = vsel %vm1461, %v3269, 0.0
    %3271 = vadd.xlane.f32.xlu0 %v3270
    %v3272 = vpop.xlane.xlu0 %3271
    %v3273 = vlog2.pop %v3272
    %v3274 = vmul.f32 %v3273, 0.6931472
    %v3275 = vadd.f32 %v3266, %v3274
    %v3276 = vrot.slane %v88, 6
    %v3278 = vmul.f32 %v3261, %v3276
    %v3279 = vsel %vm1461, %v3278, 0.0
    %3280 = vadd.xlane.f32.xlu0 %v3279
    %v3281 = vpop.xlane.xlu0 %3280
    %v3282 = vsub.f32 %v3275, %v3281
    %v3283 = vrot.slane %v2617, 6
    %v3285 = vmul.f32 %v3282, %v3283
    %v3286 = vsel %vm1466, %v3285, 0.0
    %3287 = vadd.xlane.f32.xlu0 %v3286
    %v3288 = vpop.xlane.xlu0 %3287
    %v3289 = vrot.slane %v3288, 4
    %v3290 = vadd.f32 %v3288, %v3289
    %v3291 = vrot.slane %v3290, 2
    %v3292 = vadd.f32 %v3290, %v3291
    %v3293 = vrot.slane %v3292, 1
    %v3294 = vadd.f32 %v3292, %v3293
    %s3295 = vtos %v3294
    %v3296 = vstv %s3295
    %v3297 = vadd.f32 %v3074, %v3296
    %v3298 = vsel %vm1466, %v3283, 0.0
    %3299 = vadd.xlane.f32.xlu0 %v3298
    %v3300 = vpop.xlane.xlu0 %3299
    %v3301 = vrot.slane %v3300, 4
    %v3302 = vadd.f32 %v3300, %v3301
    %v3303 = vrot.slane %v3302, 2
    %v3304 = vadd.f32 %v3302, %v3303
    %v3305 = vrot.slane %v3304, 1
    %v3306 = vadd.f32 %v3304, %v3305
    %s3307 = vtos %v3306
    %v3308 = vstv %s3307
    %v3309 = vadd.f32 %v3086, %v3308
    %v3310 = vmax.f32 %v3309, 1.0
    %v3311 = vrcp.pop %v3310
    %v3312 = vmul.f32 %v3297, %v3311
    %3313 = vst.msk [vmem:[#allocation4] sm:$0x1] %vm1480, %v3312
    // Predicated region
    $region86: #{mose_vae_forward.1} parent=1 // pred_check
      _
    $region87: #{mose_vae_forward.1} parent=1 // pred_check_branch
      %3315 = sbr.rel (0) target = $region89
    $region88: #{mose_vae_forward.1} parent=1 // pred_region
      %s3317 = ssub.s32 16, 16
      %3318 = vsyncadd [#allocation3], %s3317
      %s3320 = sshll.u32 [#allocation2], 4
      %s3321 = int_to_ptr.vmem [resolvable:$true] %s3320
      %3323 = dma.vmem_to_hbm [thread:$0]  %s3321, 16, %s21, [#allocation3]
    $region89: #{mose_vae_forward.1} parent=1 // pred_fallthru
      _
    // Predicated region
    $region90: #{mose_vae_forward.1} parent=1 // pred_check
      _
    $region91: #{mose_vae_forward.1} parent=1 // pred_check_branch
      %3325 = sbr.rel (0) target = $region93
    $region92: #{mose_vae_forward.1} parent=1 // pred_region
      %s3327 = ssub.s32 16, 16
      %3328 = vsyncadd [#allocation5], %s3327
      %s3330 = sshll.u32 [#allocation4], 4
      %s3331 = int_to_ptr.vmem [resolvable:$true] %s3330
      %3333 = dma.vmem_to_hbm [thread:$0]  %s3331, 16, %s22, [#allocation5]
    $region93: #{mose_vae_forward.1} parent=1 // pred_fallthru
      _
    // Predicated region
    $region94: #{mose_vae_forward.1} parent=1 // pred_check
      _
    $region95: #{mose_vae_forward.1} parent=1 // pred_check_branch
      %3335 = sbr.rel (0) target = $region97
    $region96: #{mose_vae_forward.1} parent=1 // pred_region
      %3336 = dma.done [#allocation3], 16
    $region97: #{mose_vae_forward.1} parent=1 // pred_fallthru
      _
    // Predicated region
    $region98: #{mose_vae_forward.1} parent=1 // pred_check
      _
    $region99: #{mose_vae_forward.1} parent=1 // pred_check_branch
      %3338 = sbr.rel (0) target = $region101
    $region100: #{mose_vae_forward.1} parent=1 // pred_region
      %3339 = dma.done [#allocation5], 16
    $region101: #{mose_vae_forward.1} parent=1 // pred_fallthru
      _
    %3340 = vsyncpa [#allocation3], 1
    %3341 = vsyncpa [#allocation5], 1

</llo_original>
